<compile_context>
chip_gen: v7x
topology: tpu7x:2x2x1
jax: 0.10.0
libtpu: 0.0.40
codegen_flags: <defaults>
</compile_context>

<pallas_src>
import functools

import jax
import jax.numpy as jnp
from jax.experimental import pallas as pl
from jax.experimental.pallas import tpu as pltpu


# ----------------------------------------------------------------------------
# In-kernel helpers
# ----------------------------------------------------------------------------
def _layer_norm(x, w, b, eps=1e-5):
    # PyTorch LayerNorm: biased variance over last dim.
    mu = jnp.mean(x, axis=-1, keepdims=True)
    xc = x - mu
    var = jnp.mean(xc * xc, axis=-1, keepdims=True)
    return xc * jax.lax.rsqrt(var + eps) * w + b


# ----------------------------------------------------------------------------
# Fused Pallas kernel: all encoder layers + final projection, whole batch in
# one grid step (batch folded into the row/sublane dimension).
# ----------------------------------------------------------------------------
def _fused_kernel(num_heads, num_layers, batch, seq,
                  x_ref, lnp_ref, wqkv_ref, bqkv_ref, wo_ref,
                  w1_ref, b1_ref, w2_ref, projw_ref, projb_ref,
                  o_ref):
    H, L, B, S = num_heads, num_layers, batch, seq
    x = x_ref[...]                                   # (B*S, D) float32
    N, D = x.shape
    dh = D // H

    for li in range(L):                              # static unroll (L is small)
        lnp = lnp_ref[li]                            # (6, D): ln1_w, ln1_b, ln2_w, ln2_b, out_b, b2

        # ---- self-attention block (norm_first) ----
        y = _layer_norm(x, lnp[0:1], lnp[1:2])                                   # (N, D)
        qkv = jnp.dot(y, wqkv_ref[li],
                      preferred_element_type=jnp.float32) + bqkv_ref[li]         # (N, 3D)

        # carve per-(batch, head) tiles with static slices -> (B*H, S, dh)
        # (1/sqrt(dh) is already folded into Wq / bq on the host)
        q3 = jnp.stack([qkv[b * S:(b + 1) * S, h * dh:(h + 1) * dh]
                        for b in range(B) for h in range(H)])
        k3 = jnp.stack([qkv[b * S:(b + 1) * S, D + h * dh:D + (h + 1) * dh]
                        for b in range(B) for h in range(H)])
        v3 = jnp.stack([qkv[b * S:(b + 1) * S, 2 * D + h * dh:2 * D + (h + 1) * dh]
                        for b in range(B) for h in range(H)])

        # (B*H)-batched scores + exact softmax
        s = jnp.einsum('nqe,nke->nqk', q3, k3, preferred_element_type=jnp.float32)
        s = s - jnp.max(s, axis=-1, keepdims=True)
        p = jnp.exp(s)
        p = p / jnp.sum(p, axis=-1, keepdims=True)

        o3 = jnp.einsum('nqk,nke->nqe', p, v3,
                        preferred_element_type=jnp.float32)                      # (B*H, S, dh)

        # merge heads/batch back to (N, D): lane-concat heads, sublane-concat batch
        o = jnp.concatenate(
            [jnp.concatenate([o3[b * H + h] for h in range(H)], axis=-1)
             for b in range(B)], axis=0)                                         # (N, D)

        x = x + jnp.dot(o, wo_ref[li], preferred_element_type=jnp.float32) + lnp[4:5]

        # ---- feed-forward block (norm_first), activation = ReLU ----
        y = _layer_norm(x, lnp[2:3], lnp[3:4])
        h1 = jnp.dot(y, w1_ref[li], preferred_element_type=jnp.float32) + b1_ref[li]
        h1 = jnp.maximum(h1, 0.0)
        x = x + jnp.dot(h1, w2_ref[li], preferred_element_type=jnp.float32) + lnp[5:6]

    # ---- to_raw_patch_projection ----
    o_ref[...] = (jnp.dot(x, projw_ref[...], preferred_element_type=jnp.float32)
                  + projb_ref[...])


# ----------------------------------------------------------------------------
# Wrapper (single pallas_call, single grid step for the whole model)
# ----------------------------------------------------------------------------
_WEIGHT_ORDER = ("lnp", "wqkv", "bqkv", "wo", "w1", "b1", "w2", "proj_w", "proj_b")


def eegpt_style_reconstructor(x, kparams, num_heads):
    B, S, D = x.shape
    L = kparams["lnp"].shape[0]
    P = kparams["proj_w"].shape[-1]
    weights = [kparams[n] for n in _WEIGHT_ORDER]
    xf = x.reshape(B * S, D)          # fold batch into the row/sublane dim (free on host)

    def full_spec(a):
        nd = a.ndim
        return pl.BlockSpec(a.shape, lambda i, _nd=nd: (0,) * _nd)

    out = pl.pallas_call(
        functools.partial(_fused_kernel, num_heads, L, B, S),
        out_shape=jax.ShapeDtypeStruct((B * S, P), jnp.float32),
        grid=(1,),
        in_specs=[full_spec(xf)] + [full_spec(a) for a in weights],
        out_specs=pl.BlockSpec((B * S, P), lambda i: (0, 0)),
        compiler_params=pltpu.CompilerParams(dimension_semantics=("arbitrary",)),
    )(xf, *weights)
    return out.reshape(B, S, P)


# ----------------------------------------------------------------------------
# Host-side weight preparation: PyTorch layout -> kernel layout
#   * all matrices transposed to [in, out]
#   * QKV kept packed as one (D, 3D) matrix; 1/sqrt(dh) folded into Wq / bq
#   * small (1, D) tensors packed into one (6, D) slab per layer
#   * per-layer tensors stacked along a leading L axis
# ----------------------------------------------------------------------------
def prepare_params(pt, num_heads):
    layers = pt["layers"]
    D = layers[0]["out_w"].shape[0]
    dh = D // num_heads
    scale = 1.0 / float(dh) ** 0.5

    def per_layer(lp):
        qkv_w = lp["qkv_w"]              # (3D, D)  [out, in]
        qkv_b = lp["qkv_b"][0]           # (3D,)
        wq = qkv_w[:D] * scale
        wk = qkv_w[D:2 * D]
        wv = qkv_w[2 * D:]
        wqkv = jnp.concatenate([wq, wk, wv], axis=0).T            # (D, 3D) [in, out]
        bqkv = jnp.concatenate([qkv_b[:D] * scale, qkv_b[D:2 * D], qkv_b[2 * D:]])[None, :]
        lnpack = jnp.concatenate([lp["ln1_w"], lp["ln1_b"],
                                  lp["ln2_w"], lp["ln2_b"],
                                  lp["out_b"], lp["b2"]], axis=0)  # (6, D)
        return dict(
            lnp=lnpack,
            wqkv=wqkv, bqkv=bqkv,
            wo=lp["out_w"].T,                                      # (D, D) [in, out]
            w1=lp["w1"].T, b1=lp["b1"],                            # (D, F), (1, F)
            w2=lp["w2"].T,                                         # (F, D)
        )

    per = [per_layer(lp) for lp in layers]
    stacked = {k: jnp.stack([p[k] for p in per]) for k in per[0]}
    stacked["proj_w"] = pt["proj_w"].T            # (D, P)
    stacked["proj_b"] = pt["proj_b"]              # (1, P)
    return stacked


# ----------------------------------------------------------------------------
# Deterministic parameter construction (PyTorch conventions; synthetic)
# ----------------------------------------------------------------------------
def init_params(key, embed_dim, num_layers, ff_dim, original_patch_dim):
    D, F, P = embed_dim, ff_dim, original_patch_dim
    layers = []
    for li in range(num_layers):
        k = jax.random.fold_in(key, li)
        ks = jax.random.split(k, 6)
        layers.append({
            "ln1_w": jnp.ones((1, D), jnp.float32),
            "ln1_b": jnp.zeros((1, D), jnp.float32),
            "qkv_w": 0.05 * jax.random.normal(ks[0], (3 * D, D), jnp.float32),
            "qkv_b": 0.01 * jax.random.normal(ks[1], (1, 3 * D), jnp.float32),
            "out_w": 0.05 * jax.random.normal(ks[2], (D, D), jnp.float32),
            "out_b": jnp.zeros((1, D), jnp.float32),
            "ln2_w": jnp.ones((1, D), jnp.float32),
            "ln2_b": jnp.zeros((1, D), jnp.float32),
            "w1": 0.05 * jax.random.normal(ks[3], (F, D), jnp.float32),
            "b1": 0.01 * jax.random.normal(ks[4], (1, F), jnp.float32),
            "w2": 0.05 * jax.random.normal(ks[5], (D, F), jnp.float32),
            "b2": jnp.zeros((1, D), jnp.float32),
        })
    kp = jax.random.fold_in(key, 1000)
    kp1, kp2 = jax.random.split(kp)
    return {
        "layers": layers,
        "proj_w": 0.05 * jax.random.normal(kp1, (P, D), jnp.float32),
        "proj_b": 0.01 * jax.random.normal(kp2, (1, P), jnp.float32),
    }


# ----------------------------------------------------------------------------
# Pure-JAX reference (mirrors PyTorch eval-mode forward) for the sanity check
# ----------------------------------------------------------------------------
def _ref_forward(x, params, num_heads):
    hp = jax.lax.Precision.HIGHEST

    def ln(v, w, b):
        mu = v.mean(-1, keepdims=True)
        var = ((v - mu) ** 2).mean(-1, keepdims=True)
        return (v - mu) / jnp.sqrt(var + 1e-5) * w[0] + b[0]

    B, S, D = x.shape
    dh = D // num_heads
    for p in params["layers"]:
        y = ln(x, p["ln1_w"], p["ln1_b"])
        qkv = jnp.dot(y, p["qkv_w"].T, precision=hp) + p["qkv_b"][0]
        q, k, v = qkv[..., :D], qkv[..., D:2 * D], qkv[..., 2 * D:]
        q = q.reshape(B, S, num_heads, dh).transpose(0, 2, 1, 3)
        k = k.reshape(B, S, num_heads, dh).transpose(0, 2, 1, 3)
        v = v.reshape(B, S, num_heads, dh).transpose(0, 2, 1, 3)
        s = jnp.einsum("bhqd,bhkd->bhqk", q, k, precision=hp) / jnp.sqrt(dh)
        a = jax.nn.softmax(s, axis=-1)
        o = jnp.einsum("bhqk,bhkd->bhqd", a, v,
                       precision=hp).transpose(0, 2, 1, 3).reshape(B, S, D)
        x = x + jnp.dot(o, p["out_w"].T, precision=hp) + p["out_b"][0]
        y = ln(x, p["ln2_w"], p["ln2_b"])
        h1 = jnp.maximum(jnp.dot(y, p["w1"].T, precision=hp) + p["b1"][0], 0.0)
        x = x + jnp.dot(h1, p["w2"].T, precision=hp) + p["b2"][0]
    return jnp.dot(x, params["proj_w"].T, precision=hp) + params["proj_b"][0]


# ----------------------------------------------------------------------------
if __name__ == "__main__":
    # Small shapes consistent with the module's forward:
    # x: [batch=2, num_tokens=8, embed_dim=32]
    B, S = 2, 8
    embed_dim, num_layers, num_heads, ff_dim = 32, 2, 4, 64
    original_patch_dim = 16

    key = jax.random.PRNGKey(0)
    kx, kp = jax.random.split(key)
    x = jax.random.normal(kx, (B, S, embed_dim), jnp.float32)
    pt_params = init_params(kp, embed_dim, num_layers, ff_dim, original_patch_dim)
    kparams = prepare_params(pt_params, num_heads)

    out = eegpt_style_reconstructor(x, kparams, num_heads)
    out = jax.block_until_ready(out)

    assert out.shape == (B, S, original_patch_dim), out.shape
    ref = _ref_forward(x, pt_params, num_heads)
    max_err = float(jnp.abs(out - ref).max())
    # tolerance covers MXU f32 pass rounding; softmax now uses an exact divide
    assert jnp.allclose(out, ref, rtol=2e-3, atol=2e-3), max_err

    print("KERNEL_OK")
</pallas_src>

<mosaic_0001>
module attributes {stable_mosaic.version = 11 : i64} {
  func.func @_fused_kernel(%arg0: i32, %arg1: memref<16x32xf32, #tpu.memory_space<vmem>>, %arg2: memref<2x6x32xf32, #tpu.memory_space<vmem>>, %arg3: memref<2x32x96xf32, #tpu.memory_space<vmem>>, %arg4: memref<2x1x96xf32, #tpu.memory_space<vmem>>, %arg5: memref<2x32x32xf32, #tpu.memory_space<vmem>>, %arg6: memref<2x32x64xf32, #tpu.memory_space<vmem>>, %arg7: memref<2x1x64xf32, #tpu.memory_space<vmem>>, %arg8: memref<2x64x32xf32, #tpu.memory_space<vmem>>, %arg9: memref<32x16xf32, #tpu.memory_space<vmem>>, %arg10: memref<1x16xf32, #tpu.memory_space<vmem>>, %arg11: memref<16x16xf32, #tpu.memory_space<vmem>>) attributes {dimension_semantics = [#tpu.dimension_semantics<arbitrary>], iteration_bounds = array<i64: 1>, scalar_prefetch = 0 : i64, scratch_operands = 0 : i64, tpu.core_type = #tpu.core_type<tc>, window_params = [{pipeline_mode = #tpu.pipeline_mode<synchronous>, transform_indices = @transform_0, window_bounds = array<i64: 16, 32>}, {pipeline_mode = #tpu.pipeline_mode<synchronous>, transform_indices = @transform_1, window_bounds = array<i64: 2, 6, 32>}, {pipeline_mode = #tpu.pipeline_mode<synchronous>, transform_indices = @transform_2, window_bounds = array<i64: 2, 32, 96>}, {pipeline_mode = #tpu.pipeline_mode<synchronous>, transform_indices = @transform_3, window_bounds = array<i64: 2, 1, 96>}, {pipeline_mode = #tpu.pipeline_mode<synchronous>, transform_indices = @transform_4, window_bounds = array<i64: 2, 32, 32>}, {pipeline_mode = #tpu.pipeline_mode<synchronous>, transform_indices = @transform_5, window_bounds = array<i64: 2, 32, 64>}, {pipeline_mode = #tpu.pipeline_mode<synchronous>, transform_indices = @transform_6, window_bounds = array<i64: 2, 1, 64>}, {pipeline_mode = #tpu.pipeline_mode<synchronous>, transform_indices = @transform_7, window_bounds = array<i64: 2, 64, 32>}, {pipeline_mode = #tpu.pipeline_mode<synchronous>, transform_indices = @transform_8, window_bounds = array<i64: 32, 16>}, {pipeline_mode = #tpu.pipeline_mode<synchronous>, transform_indices = @transform_9, window_bounds = array<i64: 1, 16>}, {pipeline_mode = #tpu.pipeline_mode<synchronous>, transform_indices = @transform_10, window_bounds = array<i64: 16, 16>}]} {
    %c0 = arith.constant 0 : index
    %c0_0 = arith.constant 0 : index
    %0 = vector.load %arg1[%c0, %c0_0] : memref<16x32xf32, #tpu.memory_space<vmem>>, vector<16x32xf32>
    %c0_1 = arith.constant 0 : index
    %c0_2 = arith.constant 0 : index
    %c0_3 = arith.constant 0 : index
    %1 = vector.load %arg2[%c0_1, %c0_2, %c0_3] : memref<2x6x32xf32, #tpu.memory_space<vmem>>, vector<1x6x32xf32>
    %2 = vector.shape_cast %1 : vector<1x6x32xf32> to vector<6x32xf32>
    %3 = vector.extract_strided_slice %2 {offsets = [0, 0], sizes = [1, 32], strides = [1, 1]} : vector<6x32xf32> to vector<1x32xf32>
    %4 = vector.extract_strided_slice %2 {offsets = [1, 0], sizes = [1, 32], strides = [1, 1]} : vector<6x32xf32> to vector<1x32xf32>
    %cst = arith.constant dense<0.000000e+00> : vector<16xf32>
    %5 = vector.multi_reduction <add>, %0, %cst [1] : vector<16x32xf32> to vector<16xf32>
    %6 = vector.shape_cast %5 : vector<16xf32> to vector<16x1xf32>
    %cst_4 = arith.constant 3.200000e+01 : f32
    %7 = vector.broadcast %cst_4 : f32 to vector<16x1xf32>
    %8 = arith.divf %6, %7 : vector<16x1xf32>
    %9 = vector.broadcast %8 : vector<16x1xf32> to vector<16x32xf32>
    %10 = arith.subf %0, %9 : vector<16x32xf32>
    %11 = arith.mulf %10, %10 : vector<16x32xf32>
    %cst_5 = arith.constant dense<0.000000e+00> : vector<16xf32>
    %12 = vector.multi_reduction <add>, %11, %cst_5 [1] : vector<16x32xf32> to vector<16xf32>
    %13 = vector.shape_cast %12 : vector<16xf32> to vector<16x1xf32>
    %cst_6 = arith.constant 3.200000e+01 : f32
    %14 = vector.broadcast %cst_6 : f32 to vector<16x1xf32>
    %15 = arith.divf %13, %14 : vector<16x1xf32>
    %cst_7 = arith.constant 9.99999974E-6 : f32
    %16 = vector.broadcast %cst_7 : f32 to vector<16x1xf32>
    %17 = arith.addf %15, %16 : vector<16x1xf32>
    %18 = math.rsqrt %17 : vector<16x1xf32>
    %19 = vector.broadcast %18 : vector<16x1xf32> to vector<16x32xf32>
    %20 = arith.mulf %10, %19 : vector<16x32xf32>
    %21 = vector.broadcast %3 : vector<1x32xf32> to vector<16x32xf32>
    %22 = arith.mulf %20, %21 : vector<16x32xf32>
    %23 = vector.broadcast %4 : vector<1x32xf32> to vector<16x32xf32>
    %24 = arith.addf %22, %23 : vector<16x32xf32>
    %c0_8 = arith.constant 0 : index
    %c0_9 = arith.constant 0 : index
    %c0_10 = arith.constant 0 : index
    %25 = vector.load %arg3[%c0_8, %c0_9, %c0_10] : memref<2x32x96xf32, #tpu.memory_space<vmem>>, vector<1x32x96xf32>
    %26 = vector.shape_cast %25 : vector<1x32x96xf32> to vector<32x96xf32>
    %cst_11 = arith.constant dense<0.000000e+00> : vector<16x96xf32>
    %27 = tpu.matmul %24, %26, %cst_11 {dimension_numbers = #tpu.dot_dimension_numbers<[1], [0], [0], [1], [0, 0, 1, 1], [], []>} : vector<16x32xf32>, vector<32x96xf32>, vector<16x96xf32> -> vector<16x96xf32>
    %c0_12 = arith.constant 0 : index
    %c0_13 = arith.constant 0 : index
    %c0_14 = arith.constant 0 : index
    %28 = vector.load %arg4[%c0_12, %c0_13, %c0_14] : memref<2x1x96xf32, #tpu.memory_space<vmem>>, vector<1x1x96xf32>
    %29 = vector.shape_cast %28 : vector<1x1x96xf32> to vector<1x96xf32>
    %30 = vector.broadcast %29 : vector<1x96xf32> to vector<16x96xf32>
    %31 = arith.addf %27, %30 : vector<16x96xf32>
    %32 = vector.extract_strided_slice %31 {offsets = [0, 0], sizes = [8, 8], strides = [1, 1]} : vector<16x96xf32> to vector<8x8xf32>
    %33 = vector.extract_strided_slice %31 {offsets = [0, 8], sizes = [8, 8], strides = [1, 1]} : vector<16x96xf32> to vector<8x8xf32>
    %34 = vector.extract_strided_slice %31 {offsets = [0, 16], sizes = [8, 8], strides = [1, 1]} : vector<16x96xf32> to vector<8x8xf32>
    %35 = vector.extract_strided_slice %31 {offsets = [0, 24], sizes = [8, 8], strides = [1, 1]} : vector<16x96xf32> to vector<8x8xf32>
    %36 = vector.extract_strided_slice %31 {offsets = [8, 0], sizes = [8, 8], strides = [1, 1]} : vector<16x96xf32> to vector<8x8xf32>
    %37 = vector.extract_strided_slice %31 {offsets = [8, 8], sizes = [8, 8], strides = [1, 1]} : vector<16x96xf32> to vector<8x8xf32>
    %38 = vector.extract_strided_slice %31 {offsets = [8, 16], sizes = [8, 8], strides = [1, 1]} : vector<16x96xf32> to vector<8x8xf32>
    %39 = vector.extract_strided_slice %31 {offsets = [8, 24], sizes = [8, 8], strides = [1, 1]} : vector<16x96xf32> to vector<8x8xf32>
    %40 = vector.shape_cast %32 : vector<8x8xf32> to vector<1x8x8xf32>
    %41 = vector.shape_cast %33 : vector<8x8xf32> to vector<1x8x8xf32>
    %42 = vector.shape_cast %34 : vector<8x8xf32> to vector<1x8x8xf32>
    %43 = vector.shape_cast %35 : vector<8x8xf32> to vector<1x8x8xf32>
    %44 = vector.shape_cast %36 : vector<8x8xf32> to vector<1x8x8xf32>
    %45 = vector.shape_cast %37 : vector<8x8xf32> to vector<1x8x8xf32>
    %46 = vector.shape_cast %38 : vector<8x8xf32> to vector<1x8x8xf32>
    %47 = vector.shape_cast %39 : vector<8x8xf32> to vector<1x8x8xf32>
    %48 = tpu.concatenate %40, %41, %42, %43, %44, %45, %46, %47 in 0 : vector<1x8x8xf32>, vector<1x8x8xf32>, vector<1x8x8xf32>, vector<1x8x8xf32>, vector<1x8x8xf32>, vector<1x8x8xf32>, vector<1x8x8xf32>, vector<1x8x8xf32> -> vector<8x8x8xf32>
    %49 = vector.extract_strided_slice %31 {offsets = [0, 32], sizes = [8, 8], strides = [1, 1]} : vector<16x96xf32> to vector<8x8xf32>
    %50 = vector.extract_strided_slice %31 {offsets = [0, 40], sizes = [8, 8], strides = [1, 1]} : vector<16x96xf32> to vector<8x8xf32>
    %51 = vector.extract_strided_slice %31 {offsets = [0, 48], sizes = [8, 8], strides = [1, 1]} : vector<16x96xf32> to vector<8x8xf32>
    %52 = vector.extract_strided_slice %31 {offsets = [0, 56], sizes = [8, 8], strides = [1, 1]} : vector<16x96xf32> to vector<8x8xf32>
    %53 = vector.extract_strided_slice %31 {offsets = [8, 32], sizes = [8, 8], strides = [1, 1]} : vector<16x96xf32> to vector<8x8xf32>
    %54 = vector.extract_strided_slice %31 {offsets = [8, 40], sizes = [8, 8], strides = [1, 1]} : vector<16x96xf32> to vector<8x8xf32>
    %55 = vector.extract_strided_slice %31 {offsets = [8, 48], sizes = [8, 8], strides = [1, 1]} : vector<16x96xf32> to vector<8x8xf32>
    %56 = vector.extract_strided_slice %31 {offsets = [8, 56], sizes = [8, 8], strides = [1, 1]} : vector<16x96xf32> to vector<8x8xf32>
    %57 = vector.shape_cast %49 : vector<8x8xf32> to vector<1x8x8xf32>
    %58 = vector.shape_cast %50 : vector<8x8xf32> to vector<1x8x8xf32>
    %59 = vector.shape_cast %51 : vector<8x8xf32> to vector<1x8x8xf32>
    %60 = vector.shape_cast %52 : vector<8x8xf32> to vector<1x8x8xf32>
    %61 = vector.shape_cast %53 : vector<8x8xf32> to vector<1x8x8xf32>
    %62 = vector.shape_cast %54 : vector<8x8xf32> to vector<1x8x8xf32>
    %63 = vector.shape_cast %55 : vector<8x8xf32> to vector<1x8x8xf32>
    %64 = vector.shape_cast %56 : vector<8x8xf32> to vector<1x8x8xf32>
    %65 = tpu.concatenate %57, %58, %59, %60, %61, %62, %63, %64 in 0 : vector<1x8x8xf32>, vector<1x8x8xf32>, vector<1x8x8xf32>, vector<1x8x8xf32>, vector<1x8x8xf32>, vector<1x8x8xf32>, vector<1x8x8xf32>, vector<1x8x8xf32> -> vector<8x8x8xf32>
    %66 = vector.extract_strided_slice %31 {offsets = [0, 64], sizes = [8, 8], strides = [1, 1]} : vector<16x96xf32> to vector<8x8xf32>
    %67 = vector.extract_strided_slice %31 {offsets = [0, 72], sizes = [8, 8], strides = [1, 1]} : vector<16x96xf32> to vector<8x8xf32>
    %68 = vector.extract_strided_slice %31 {offsets = [0, 80], sizes = [8, 8], strides = [1, 1]} : vector<16x96xf32> to vector<8x8xf32>
    %69 = vector.extract_strided_slice %31 {offsets = [0, 88], sizes = [8, 8], strides = [1, 1]} : vector<16x96xf32> to vector<8x8xf32>
    %70 = vector.extract_strided_slice %31 {offsets = [8, 64], sizes = [8, 8], strides = [1, 1]} : vector<16x96xf32> to vector<8x8xf32>
    %71 = vector.extract_strided_slice %31 {offsets = [8, 72], sizes = [8, 8], strides = [1, 1]} : vector<16x96xf32> to vector<8x8xf32>
    %72 = vector.extract_strided_slice %31 {offsets = [8, 80], sizes = [8, 8], strides = [1, 1]} : vector<16x96xf32> to vector<8x8xf32>
    %73 = vector.extract_strided_slice %31 {offsets = [8, 88], sizes = [8, 8], strides = [1, 1]} : vector<16x96xf32> to vector<8x8xf32>
    %74 = vector.shape_cast %66 : vector<8x8xf32> to vector<1x8x8xf32>
    %75 = vector.shape_cast %67 : vector<8x8xf32> to vector<1x8x8xf32>
    %76 = vector.shape_cast %68 : vector<8x8xf32> to vector<1x8x8xf32>
    %77 = vector.shape_cast %69 : vector<8x8xf32> to vector<1x8x8xf32>
    %78 = vector.shape_cast %70 : vector<8x8xf32> to vector<1x8x8xf32>
    %79 = vector.shape_cast %71 : vector<8x8xf32> to vector<1x8x8xf32>
    %80 = vector.shape_cast %72 : vector<8x8xf32> to vector<1x8x8xf32>
    %81 = vector.shape_cast %73 : vector<8x8xf32> to vector<1x8x8xf32>
    %82 = tpu.concatenate %74, %75, %76, %77, %78, %79, %80, %81 in 0 : vector<1x8x8xf32>, vector<1x8x8xf32>, vector<1x8x8xf32>, vector<1x8x8xf32>, vector<1x8x8xf32>, vector<1x8x8xf32>, vector<1x8x8xf32>, vector<1x8x8xf32> -> vector<8x8x8xf32>
    "tpu.trace_start"() <{level = 10 : i32, message = "nqe,nke->nqk"}> : () -> ()
    %cst_15 = arith.constant dense<0.000000e+00> : vector<8x8x8xf32>
    %83 = tpu.matmul %48, %65, %cst_15 {dimension_numbers = #tpu.dot_dimension_numbers<[2], [2], [1], [1], [0, 0, 0, 1, 1, 1], [0], [0]>} : vector<8x8x8xf32>, vector<8x8x8xf32>, vector<8x8x8xf32> -> vector<8x8x8xf32>
    "tpu.trace_stop"() : () -> ()
    %cst_16 = arith.constant dense<0xFF800000> : vector<8x8xf32>
    %84 = vector.multi_reduction <maximumf>, %83, %cst_16 [2] : vector<8x8x8xf32> to vector<8x8xf32>
    %85 = vector.shape_cast %84 : vector<8x8xf32> to vector<8x8x1xf32>
    %86 = vector.broadcast %85 : vector<8x8x1xf32> to vector<8x8x8xf32>
    %87 = arith.subf %83, %86 : vector<8x8x8xf32>
    %88 = math.exp %87 : vector<8x8x8xf32>
    %cst_17 = arith.constant dense<0.000000e+00> : vector<8x8xf32>
    %89 = vector.multi_reduction <add>, %88, %cst_17 [2] : vector<8x8x8xf32> to vector<8x8xf32>
    %90 = vector.shape_cast %89 : vector<8x8xf32> to vector<8x8x1xf32>
    %91 = vector.broadcast %90 : vector<8x8x1xf32> to vector<8x8x8xf32>
    %92 = arith.divf %88, %91 : vector<8x8x8xf32>
    "tpu.trace_start"() <{level = 10 : i32, message = "nqk,nke->nqe"}> : () -> ()
    %cst_18 = arith.constant dense<0.000000e+00> : vector<8x8x8xf32>
    %93 = tpu.matmul %92, %82, %cst_18 {dimension_numbers = #tpu.dot_dimension_numbers<[2], [1], [1], [2], [0, 0, 0, 1, 1, 2], [0], [0]>} : vector<8x8x8xf32>, vector<8x8x8xf32>, vector<8x8x8xf32> -> vector<8x8x8xf32>
    "tpu.trace_stop"() : () -> ()
    %94 = vector.extract_strided_slice %93 {offsets = [0, 0, 0], sizes = [1, 8, 8], strides = [1, 1, 1]} : vector<8x8x8xf32> to vector<1x8x8xf32>
    %95 = vector.shape_cast %94 : vector<1x8x8xf32> to vector<8x8xf32>
    %96 = vector.extract_strided_slice %93 {offsets = [1, 0, 0], sizes = [1, 8, 8], strides = [1, 1, 1]} : vector<8x8x8xf32> to vector<1x8x8xf32>
    %97 = vector.shape_cast %96 : vector<1x8x8xf32> to vector<8x8xf32>
    %98 = vector.extract_strided_slice %93 {offsets = [2, 0, 0], sizes = [1, 8, 8], strides = [1, 1, 1]} : vector<8x8x8xf32> to vector<1x8x8xf32>
    %99 = vector.shape_cast %98 : vector<1x8x8xf32> to vector<8x8xf32>
    %100 = vector.extract_strided_slice %93 {offsets = [3, 0, 0], sizes = [1, 8, 8], strides = [1, 1, 1]} : vector<8x8x8xf32> to vector<1x8x8xf32>
    %101 = vector.shape_cast %100 : vector<1x8x8xf32> to vector<8x8xf32>
    %102 = tpu.concatenate %95, %97, %99, %101 in 1 : vector<8x8xf32>, vector<8x8xf32>, vector<8x8xf32>, vector<8x8xf32> -> vector<8x32xf32>
    %103 = vector.extract_strided_slice %93 {offsets = [4, 0, 0], sizes = [1, 8, 8], strides = [1, 1, 1]} : vector<8x8x8xf32> to vector<1x8x8xf32>
    %104 = vector.shape_cast %103 : vector<1x8x8xf32> to vector<8x8xf32>
    %105 = vector.extract_strided_slice %93 {offsets = [5, 0, 0], sizes = [1, 8, 8], strides = [1, 1, 1]} : vector<8x8x8xf32> to vector<1x8x8xf32>
    %106 = vector.shape_cast %105 : vector<1x8x8xf32> to vector<8x8xf32>
    %107 = vector.extract_strided_slice %93 {offsets = [6, 0, 0], sizes = [1, 8, 8], strides = [1, 1, 1]} : vector<8x8x8xf32> to vector<1x8x8xf32>
    %108 = vector.shape_cast %107 : vector<1x8x8xf32> to vector<8x8xf32>
    %109 = vector.extract_strided_slice %93 {offsets = [7, 0, 0], sizes = [1, 8, 8], strides = [1, 1, 1]} : vector<8x8x8xf32> to vector<1x8x8xf32>
    %110 = vector.shape_cast %109 : vector<1x8x8xf32> to vector<8x8xf32>
    %111 = tpu.concatenate %104, %106, %108, %110 in 1 : vector<8x8xf32>, vector<8x8xf32>, vector<8x8xf32>, vector<8x8xf32> -> vector<8x32xf32>
    %112 = tpu.concatenate %102, %111 in 0 : vector<8x32xf32>, vector<8x32xf32> -> vector<16x32xf32>
    %c0_19 = arith.constant 0 : index
    %c0_20 = arith.constant 0 : index
    %c0_21 = arith.constant 0 : index
    %113 = vector.load %arg5[%c0_19, %c0_20, %c0_21] : memref<2x32x32xf32, #tpu.memory_space<vmem>>, vector<1x32x32xf32>
    %114 = vector.shape_cast %113 : vector<1x32x32xf32> to vector<32x32xf32>
    %cst_22 = arith.constant dense<0.000000e+00> : vector<16x32xf32>
    %115 = tpu.matmul %112, %114, %cst_22 {dimension_numbers = #tpu.dot_dimension_numbers<[1], [0], [0], [1], [0, 0, 1, 1], [], []>} : vector<16x32xf32>, vector<32x32xf32>, vector<16x32xf32> -> vector<16x32xf32>
    %116 = arith.addf %0, %115 : vector<16x32xf32>
    %117 = vector.extract_strided_slice %2 {offsets = [4, 0], sizes = [1, 32], strides = [1, 1]} : vector<6x32xf32> to vector<1x32xf32>
    %118 = vector.broadcast %117 : vector<1x32xf32> to vector<16x32xf32>
    %119 = arith.addf %116, %118 : vector<16x32xf32>
    %120 = vector.extract_strided_slice %2 {offsets = [2, 0], sizes = [1, 32], strides = [1, 1]} : vector<6x32xf32> to vector<1x32xf32>
    %121 = vector.extract_strided_slice %2 {offsets = [3, 0], sizes = [1, 32], strides = [1, 1]} : vector<6x32xf32> to vector<1x32xf32>
    %cst_23 = arith.constant dense<0.000000e+00> : vector<16xf32>
    %122 = vector.multi_reduction <add>, %119, %cst_23 [1] : vector<16x32xf32> to vector<16xf32>
    %123 = vector.shape_cast %122 : vector<16xf32> to vector<16x1xf32>
    %cst_24 = arith.constant 3.200000e+01 : f32
    %124 = vector.broadcast %cst_24 : f32 to vector<16x1xf32>
    %125 = arith.divf %123, %124 : vector<16x1xf32>
    %126 = vector.broadcast %125 : vector<16x1xf32> to vector<16x32xf32>
    %127 = arith.subf %119, %126 : vector<16x32xf32>
    %128 = arith.mulf %127, %127 : vector<16x32xf32>
    %cst_25 = arith.constant dense<0.000000e+00> : vector<16xf32>
    %129 = vector.multi_reduction <add>, %128, %cst_25 [1] : vector<16x32xf32> to vector<16xf32>
    %130 = vector.shape_cast %129 : vector<16xf32> to vector<16x1xf32>
    %cst_26 = arith.constant 3.200000e+01 : f32
    %131 = vector.broadcast %cst_26 : f32 to vector<16x1xf32>
    %132 = arith.divf %130, %131 : vector<16x1xf32>
    %cst_27 = arith.constant 9.99999974E-6 : f32
    %133 = vector.broadcast %cst_27 : f32 to vector<16x1xf32>
    %134 = arith.addf %132, %133 : vector<16x1xf32>
    %135 = math.rsqrt %134 : vector<16x1xf32>
    %136 = vector.broadcast %135 : vector<16x1xf32> to vector<16x32xf32>
    %137 = arith.mulf %127, %136 : vector<16x32xf32>
    %138 = vector.broadcast %120 : vector<1x32xf32> to vector<16x32xf32>
    %139 = arith.mulf %137, %138 : vector<16x32xf32>
    %140 = vector.broadcast %121 : vector<1x32xf32> to vector<16x32xf32>
    %141 = arith.addf %139, %140 : vector<16x32xf32>
    %c0_28 = arith.constant 0 : index
    %c0_29 = arith.constant 0 : index
    %c0_30 = arith.constant 0 : index
    %142 = vector.load %arg6[%c0_28, %c0_29, %c0_30] : memref<2x32x64xf32, #tpu.memory_space<vmem>>, vector<1x32x64xf32>
    %143 = vector.shape_cast %142 : vector<1x32x64xf32> to vector<32x64xf32>
    %cst_31 = arith.constant dense<0.000000e+00> : vector<16x64xf32>
    %144 = tpu.matmul %141, %143, %cst_31 {dimension_numbers = #tpu.dot_dimension_numbers<[1], [0], [0], [1], [0, 0, 1, 1], [], []>} : vector<16x32xf32>, vector<32x64xf32>, vector<16x64xf32> -> vector<16x64xf32>
    %c0_32 = arith.constant 0 : index
    %c0_33 = arith.constant 0 : index
    %c0_34 = arith.constant 0 : index
    %145 = vector.load %arg7[%c0_32, %c0_33, %c0_34] : memref<2x1x64xf32, #tpu.memory_space<vmem>>, vector<1x1x64xf32>
    %146 = vector.shape_cast %145 : vector<1x1x64xf32> to vector<1x64xf32>
    %147 = vector.broadcast %146 : vector<1x64xf32> to vector<16x64xf32>
    %148 = arith.addf %144, %147 : vector<16x64xf32>
    %cst_35 = arith.constant 0.000000e+00 : f32
    %149 = vector.broadcast %cst_35 : f32 to vector<16x64xf32>
    %150 = arith.maximumf %148, %149 : vector<16x64xf32>
    %c0_36 = arith.constant 0 : index
    %c0_37 = arith.constant 0 : index
    %c0_38 = arith.constant 0 : index
    %151 = vector.load %arg8[%c0_36, %c0_37, %c0_38] : memref<2x64x32xf32, #tpu.memory_space<vmem>>, vector<1x64x32xf32>
    %152 = vector.shape_cast %151 : vector<1x64x32xf32> to vector<64x32xf32>
    %cst_39 = arith.constant dense<0.000000e+00> : vector<16x32xf32>
    %153 = tpu.matmul %150, %152, %cst_39 {dimension_numbers = #tpu.dot_dimension_numbers<[1], [0], [0], [1], [0, 0, 1, 1], [], []>} : vector<16x64xf32>, vector<64x32xf32>, vector<16x32xf32> -> vector<16x32xf32>
    %154 = arith.addf %119, %153 : vector<16x32xf32>
    %155 = vector.extract_strided_slice %2 {offsets = [5, 0], sizes = [1, 32], strides = [1, 1]} : vector<6x32xf32> to vector<1x32xf32>
    %156 = vector.broadcast %155 : vector<1x32xf32> to vector<16x32xf32>
    %157 = arith.addf %154, %156 : vector<16x32xf32>
    %c1 = arith.constant 1 : index
    %c0_40 = arith.constant 0 : index
    %c0_41 = arith.constant 0 : index
    %158 = vector.load %arg2[%c1, %c0_40, %c0_41] : memref<2x6x32xf32, #tpu.memory_space<vmem>>, vector<1x6x32xf32>
    %159 = vector.shape_cast %158 : vector<1x6x32xf32> to vector<6x32xf32>
    %160 = vector.extract_strided_slice %159 {offsets = [0, 0], sizes = [1, 32], strides = [1, 1]} : vector<6x32xf32> to vector<1x32xf32>
    %161 = vector.extract_strided_slice %159 {offsets = [1, 0], sizes = [1, 32], strides = [1, 1]} : vector<6x32xf32> to vector<1x32xf32>
    %cst_42 = arith.constant dense<0.000000e+00> : vector<16xf32>
    %162 = vector.multi_reduction <add>, %157, %cst_42 [1] : vector<16x32xf32> to vector<16xf32>
    %163 = vector.shape_cast %162 : vector<16xf32> to vector<16x1xf32>
    %cst_43 = arith.constant 3.200000e+01 : f32
    %164 = vector.broadcast %cst_43 : f32 to vector<16x1xf32>
    %165 = arith.divf %163, %164 : vector<16x1xf32>
    %166 = vector.broadcast %165 : vector<16x1xf32> to vector<16x32xf32>
    %167 = arith.subf %157, %166 : vector<16x32xf32>
    %168 = arith.mulf %167, %167 : vector<16x32xf32>
    %cst_44 = arith.constant dense<0.000000e+00> : vector<16xf32>
    %169 = vector.multi_reduction <add>, %168, %cst_44 [1] : vector<16x32xf32> to vector<16xf32>
    %170 = vector.shape_cast %169 : vector<16xf32> to vector<16x1xf32>
    %cst_45 = arith.constant 3.200000e+01 : f32
    %171 = vector.broadcast %cst_45 : f32 to vector<16x1xf32>
    %172 = arith.divf %170, %171 : vector<16x1xf32>
    %cst_46 = arith.constant 9.99999974E-6 : f32
    %173 = vector.broadcast %cst_46 : f32 to vector<16x1xf32>
    %174 = arith.addf %172, %173 : vector<16x1xf32>
    %175 = math.rsqrt %174 : vector<16x1xf32>
    %176 = vector.broadcast %175 : vector<16x1xf32> to vector<16x32xf32>
    %177 = arith.mulf %167, %176 : vector<16x32xf32>
    %178 = vector.broadcast %160 : vector<1x32xf32> to vector<16x32xf32>
    %179 = arith.mulf %177, %178 : vector<16x32xf32>
    %180 = vector.broadcast %161 : vector<1x32xf32> to vector<16x32xf32>
    %181 = arith.addf %179, %180 : vector<16x32xf32>
    %c1_47 = arith.constant 1 : index
    %c0_48 = arith.constant 0 : index
    %c0_49 = arith.constant 0 : index
    %182 = vector.load %arg3[%c1_47, %c0_48, %c0_49] : memref<2x32x96xf32, #tpu.memory_space<vmem>>, vector<1x32x96xf32>
    %183 = vector.shape_cast %182 : vector<1x32x96xf32> to vector<32x96xf32>
    %cst_50 = arith.constant dense<0.000000e+00> : vector<16x96xf32>
    %184 = tpu.matmul %181, %183, %cst_50 {dimension_numbers = #tpu.dot_dimension_numbers<[1], [0], [0], [1], [0, 0, 1, 1], [], []>} : vector<16x32xf32>, vector<32x96xf32>, vector<16x96xf32> -> vector<16x96xf32>
    %c1_51 = arith.constant 1 : index
    %c0_52 = arith.constant 0 : index
    %c0_53 = arith.constant 0 : index
    %185 = vector.load %arg4[%c1_51, %c0_52, %c0_53] : memref<2x1x96xf32, #tpu.memory_space<vmem>>, vector<1x1x96xf32>
    %186 = vector.shape_cast %185 : vector<1x1x96xf32> to vector<1x96xf32>
    %187 = vector.broadcast %186 : vector<1x96xf32> to vector<16x96xf32>
    %188 = arith.addf %184, %187 : vector<16x96xf32>
    %189 = vector.extract_strided_slice %188 {offsets = [0, 0], sizes = [8, 8], strides = [1, 1]} : vector<16x96xf32> to vector<8x8xf32>
    %190 = vector.extract_strided_slice %188 {offsets = [0, 8], sizes = [8, 8], strides = [1, 1]} : vector<16x96xf32> to vector<8x8xf32>
    %191 = vector.extract_strided_slice %188 {offsets = [0, 16], sizes = [8, 8], strides = [1, 1]} : vector<16x96xf32> to vector<8x8xf32>
    %192 = vector.extract_strided_slice %188 {offsets = [0, 24], sizes = [8, 8], strides = [1, 1]} : vector<16x96xf32> to vector<8x8xf32>
    %193 = vector.extract_strided_slice %188 {offsets = [8, 0], sizes = [8, 8], strides = [1, 1]} : vector<16x96xf32> to vector<8x8xf32>
    %194 = vector.extract_strided_slice %188 {offsets = [8, 8], sizes = [8, 8], strides = [1, 1]} : vector<16x96xf32> to vector<8x8xf32>
    %195 = vector.extract_strided_slice %188 {offsets = [8, 16], sizes = [8, 8], strides = [1, 1]} : vector<16x96xf32> to vector<8x8xf32>
    %196 = vector.extract_strided_slice %188 {offsets = [8, 24], sizes = [8, 8], strides = [1, 1]} : vector<16x96xf32> to vector<8x8xf32>
    %197 = vector.shape_cast %189 : vector<8x8xf32> to vector<1x8x8xf32>
    %198 = vector.shape_cast %190 : vector<8x8xf32> to vector<1x8x8xf32>
    %199 = vector.shape_cast %191 : vector<8x8xf32> to vector<1x8x8xf32>
    %200 = vector.shape_cast %192 : vector<8x8xf32> to vector<1x8x8xf32>
    %201 = vector.shape_cast %193 : vector<8x8xf32> to vector<1x8x8xf32>
    %202 = vector.shape_cast %194 : vector<8x8xf32> to vector<1x8x8xf32>
    %203 = vector.shape_cast %195 : vector<8x8xf32> to vector<1x8x8xf32>
    %204 = vector.shape_cast %196 : vector<8x8xf32> to vector<1x8x8xf32>
    %205 = tpu.concatenate %197, %198, %199, %200, %201, %202, %203, %204 in 0 : vector<1x8x8xf32>, vector<1x8x8xf32>, vector<1x8x8xf32>, vector<1x8x8xf32>, vector<1x8x8xf32>, vector<1x8x8xf32>, vector<1x8x8xf32>, vector<1x8x8xf32> -> vector<8x8x8xf32>
    %206 = vector.extract_strided_slice %188 {offsets = [0, 32], sizes = [8, 8], strides = [1, 1]} : vector<16x96xf32> to vector<8x8xf32>
    %207 = vector.extract_strided_slice %188 {offsets = [0, 40], sizes = [8, 8], strides = [1, 1]} : vector<16x96xf32> to vector<8x8xf32>
    %208 = vector.extract_strided_slice %188 {offsets = [0, 48], sizes = [8, 8], strides = [1, 1]} : vector<16x96xf32> to vector<8x8xf32>
    %209 = vector.extract_strided_slice %188 {offsets = [0, 56], sizes = [8, 8], strides = [1, 1]} : vector<16x96xf32> to vector<8x8xf32>
    %210 = vector.extract_strided_slice %188 {offsets = [8, 32], sizes = [8, 8], strides = [1, 1]} : vector<16x96xf32> to vector<8x8xf32>
    %211 = vector.extract_strided_slice %188 {offsets = [8, 40], sizes = [8, 8], strides = [1, 1]} : vector<16x96xf32> to vector<8x8xf32>
    %212 = vector.extract_strided_slice %188 {offsets = [8, 48], sizes = [8, 8], strides = [1, 1]} : vector<16x96xf32> to vector<8x8xf32>
    %213 = vector.extract_strided_slice %188 {offsets = [8, 56], sizes = [8, 8], strides = [1, 1]} : vector<16x96xf32> to vector<8x8xf32>
    %214 = vector.shape_cast %206 : vector<8x8xf32> to vector<1x8x8xf32>
    %215 = vector.shape_cast %207 : vector<8x8xf32> to vector<1x8x8xf32>
    %216 = vector.shape_cast %208 : vector<8x8xf32> to vector<1x8x8xf32>
    %217 = vector.shape_cast %209 : vector<8x8xf32> to vector<1x8x8xf32>
    %218 = vector.shape_cast %210 : vector<8x8xf32> to vector<1x8x8xf32>
    %219 = vector.shape_cast %211 : vector<8x8xf32> to vector<1x8x8xf32>
    %220 = vector.shape_cast %212 : vector<8x8xf32> to vector<1x8x8xf32>
    %221 = vector.shape_cast %213 : vector<8x8xf32> to vector<1x8x8xf32>
    %222 = tpu.concatenate %214, %215, %216, %217, %218, %219, %220, %221 in 0 : vector<1x8x8xf32>, vector<1x8x8xf32>, vector<1x8x8xf32>, vector<1x8x8xf32>, vector<1x8x8xf32>, vector<1x8x8xf32>, vector<1x8x8xf32>, vector<1x8x8xf32> -> vector<8x8x8xf32>
    %223 = vector.extract_strided_slice %188 {offsets = [0, 64], sizes = [8, 8], strides = [1, 1]} : vector<16x96xf32> to vector<8x8xf32>
    %224 = vector.extract_strided_slice %188 {offsets = [0, 72], sizes = [8, 8], strides = [1, 1]} : vector<16x96xf32> to vector<8x8xf32>
    %225 = vector.extract_strided_slice %188 {offsets = [0, 80], sizes = [8, 8], strides = [1, 1]} : vector<16x96xf32> to vector<8x8xf32>
    %226 = vector.extract_strided_slice %188 {offsets = [0, 88], sizes = [8, 8], strides = [1, 1]} : vector<16x96xf32> to vector<8x8xf32>
    %227 = vector.extract_strided_slice %188 {offsets = [8, 64], sizes = [8, 8], strides = [1, 1]} : vector<16x96xf32> to vector<8x8xf32>
    %228 = vector.extract_strided_slice %188 {offsets = [8, 72], sizes = [8, 8], strides = [1, 1]} : vector<16x96xf32> to vector<8x8xf32>
    %229 = vector.extract_strided_slice %188 {offsets = [8, 80], sizes = [8, 8], strides = [1, 1]} : vector<16x96xf32> to vector<8x8xf32>
    %230 = vector.extract_strided_slice %188 {offsets = [8, 88], sizes = [8, 8], strides = [1, 1]} : vector<16x96xf32> to vector<8x8xf32>
    %231 = vector.shape_cast %223 : vector<8x8xf32> to vector<1x8x8xf32>
    %232 = vector.shape_cast %224 : vector<8x8xf32> to vector<1x8x8xf32>
    %233 = vector.shape_cast %225 : vector<8x8xf32> to vector<1x8x8xf32>
    %234 = vector.shape_cast %226 : vector<8x8xf32> to vector<1x8x8xf32>
    %235 = vector.shape_cast %227 : vector<8x8xf32> to vector<1x8x8xf32>
    %236 = vector.shape_cast %228 : vector<8x8xf32> to vector<1x8x8xf32>
    %237 = vector.shape_cast %229 : vector<8x8xf32> to vector<1x8x8xf32>
    %238 = vector.shape_cast %230 : vector<8x8xf32> to vector<1x8x8xf32>
    %239 = tpu.concatenate %231, %232, %233, %234, %235, %236, %237, %238 in 0 : vector<1x8x8xf32>, vector<1x8x8xf32>, vector<1x8x8xf32>, vector<1x8x8xf32>, vector<1x8x8xf32>, vector<1x8x8xf32>, vector<1x8x8xf32>, vector<1x8x8xf32> -> vector<8x8x8xf32>
    "tpu.trace_start"() <{level = 10 : i32, message = "nqe,nke->nqk"}> : () -> ()
    %cst_54 = arith.constant dense<0.000000e+00> : vector<8x8x8xf32>
    %240 = tpu.matmul %205, %222, %cst_54 {dimension_numbers = #tpu.dot_dimension_numbers<[2], [2], [1], [1], [0, 0, 0, 1, 1, 1], [0], [0]>} : vector<8x8x8xf32>, vector<8x8x8xf32>, vector<8x8x8xf32> -> vector<8x8x8xf32>
    "tpu.trace_stop"() : () -> ()
    %cst_55 = arith.constant dense<0xFF800000> : vector<8x8xf32>
    %241 = vector.multi_reduction <maximumf>, %240, %cst_55 [2] : vector<8x8x8xf32> to vector<8x8xf32>
    %242 = vector.shape_cast %241 : vector<8x8xf32> to vector<8x8x1xf32>
    %243 = vector.broadcast %242 : vector<8x8x1xf32> to vector<8x8x8xf32>
    %244 = arith.subf %240, %243 : vector<8x8x8xf32>
    %245 = math.exp %244 : vector<8x8x8xf32>
    %cst_56 = arith.constant dense<0.000000e+00> : vector<8x8xf32>
    %246 = vector.multi_reduction <add>, %245, %cst_56 [2] : vector<8x8x8xf32> to vector<8x8xf32>
    %247 = vector.shape_cast %246 : vector<8x8xf32> to vector<8x8x1xf32>
    %248 = vector.broadcast %247 : vector<8x8x1xf32> to vector<8x8x8xf32>
    %249 = arith.divf %245, %248 : vector<8x8x8xf32>
    "tpu.trace_start"() <{level = 10 : i32, message = "nqk,nke->nqe"}> : () -> ()
    %cst_57 = arith.constant dense<0.000000e+00> : vector<8x8x8xf32>
    %250 = tpu.matmul %249, %239, %cst_57 {dimension_numbers = #tpu.dot_dimension_numbers<[2], [1], [1], [2], [0, 0, 0, 1, 1, 2], [0], [0]>} : vector<8x8x8xf32>, vector<8x8x8xf32>, vector<8x8x8xf32> -> vector<8x8x8xf32>
    "tpu.trace_stop"() : () -> ()
    %251 = vector.extract_strided_slice %250 {offsets = [0, 0, 0], sizes = [1, 8, 8], strides = [1, 1, 1]} : vector<8x8x8xf32> to vector<1x8x8xf32>
    %252 = vector.shape_cast %251 : vector<1x8x8xf32> to vector<8x8xf32>
    %253 = vector.extract_strided_slice %250 {offsets = [1, 0, 0], sizes = [1, 8, 8], strides = [1, 1, 1]} : vector<8x8x8xf32> to vector<1x8x8xf32>
    %254 = vector.shape_cast %253 : vector<1x8x8xf32> to vector<8x8xf32>
    %255 = vector.extract_strided_slice %250 {offsets = [2, 0, 0], sizes = [1, 8, 8], strides = [1, 1, 1]} : vector<8x8x8xf32> to vector<1x8x8xf32>
    %256 = vector.shape_cast %255 : vector<1x8x8xf32> to vector<8x8xf32>
    %257 = vector.extract_strided_slice %250 {offsets = [3, 0, 0], sizes = [1, 8, 8], strides = [1, 1, 1]} : vector<8x8x8xf32> to vector<1x8x8xf32>
    %258 = vector.shape_cast %257 : vector<1x8x8xf32> to vector<8x8xf32>
    %259 = tpu.concatenate %252, %254, %256, %258 in 1 : vector<8x8xf32>, vector<8x8xf32>, vector<8x8xf32>, vector<8x8xf32> -> vector<8x32xf32>
    %260 = vector.extract_strided_slice %250 {offsets = [4, 0, 0], sizes = [1, 8, 8], strides = [1, 1, 1]} : vector<8x8x8xf32> to vector<1x8x8xf32>
    %261 = vector.shape_cast %260 : vector<1x8x8xf32> to vector<8x8xf32>
    %262 = vector.extract_strided_slice %250 {offsets = [5, 0, 0], sizes = [1, 8, 8], strides = [1, 1, 1]} : vector<8x8x8xf32> to vector<1x8x8xf32>
    %263 = vector.shape_cast %262 : vector<1x8x8xf32> to vector<8x8xf32>
    %264 = vector.extract_strided_slice %250 {offsets = [6, 0, 0], sizes = [1, 8, 8], strides = [1, 1, 1]} : vector<8x8x8xf32> to vector<1x8x8xf32>
    %265 = vector.shape_cast %264 : vector<1x8x8xf32> to vector<8x8xf32>
    %266 = vector.extract_strided_slice %250 {offsets = [7, 0, 0], sizes = [1, 8, 8], strides = [1, 1, 1]} : vector<8x8x8xf32> to vector<1x8x8xf32>
    %267 = vector.shape_cast %266 : vector<1x8x8xf32> to vector<8x8xf32>
    %268 = tpu.concatenate %261, %263, %265, %267 in 1 : vector<8x8xf32>, vector<8x8xf32>, vector<8x8xf32>, vector<8x8xf32> -> vector<8x32xf32>
    %269 = tpu.concatenate %259, %268 in 0 : vector<8x32xf32>, vector<8x32xf32> -> vector<16x32xf32>
    %c1_58 = arith.constant 1 : index
    %c0_59 = arith.constant 0 : index
    %c0_60 = arith.constant 0 : index
    %270 = vector.load %arg5[%c1_58, %c0_59, %c0_60] : memref<2x32x32xf32, #tpu.memory_space<vmem>>, vector<1x32x32xf32>
    %271 = vector.shape_cast %270 : vector<1x32x32xf32> to vector<32x32xf32>
    %cst_61 = arith.constant dense<0.000000e+00> : vector<16x32xf32>
    %272 = tpu.matmul %269, %271, %cst_61 {dimension_numbers = #tpu.dot_dimension_numbers<[1], [0], [0], [1], [0, 0, 1, 1], [], []>} : vector<16x32xf32>, vector<32x32xf32>, vector<16x32xf32> -> vector<16x32xf32>
    %273 = arith.addf %157, %272 : vector<16x32xf32>
    %274 = vector.extract_strided_slice %159 {offsets = [4, 0], sizes = [1, 32], strides = [1, 1]} : vector<6x32xf32> to vector<1x32xf32>
    %275 = vector.broadcast %274 : vector<1x32xf32> to vector<16x32xf32>
    %276 = arith.addf %273, %275 : vector<16x32xf32>
    %277 = vector.extract_strided_slice %159 {offsets = [2, 0], sizes = [1, 32], strides = [1, 1]} : vector<6x32xf32> to vector<1x32xf32>
    %278 = vector.extract_strided_slice %159 {offsets = [3, 0], sizes = [1, 32], strides = [1, 1]} : vector<6x32xf32> to vector<1x32xf32>
    %cst_62 = arith.constant dense<0.000000e+00> : vector<16xf32>
    %279 = vector.multi_reduction <add>, %276, %cst_62 [1] : vector<16x32xf32> to vector<16xf32>
    %280 = vector.shape_cast %279 : vector<16xf32> to vector<16x1xf32>
    %cst_63 = arith.constant 3.200000e+01 : f32
    %281 = vector.broadcast %cst_63 : f32 to vector<16x1xf32>
    %282 = arith.divf %280, %281 : vector<16x1xf32>
    %283 = vector.broadcast %282 : vector<16x1xf32> to vector<16x32xf32>
    %284 = arith.subf %276, %283 : vector<16x32xf32>
    %285 = arith.mulf %284, %284 : vector<16x32xf32>
    %cst_64 = arith.constant dense<0.000000e+00> : vector<16xf32>
    %286 = vector.multi_reduction <add>, %285, %cst_64 [1] : vector<16x32xf32> to vector<16xf32>
    %287 = vector.shape_cast %286 : vector<16xf32> to vector<16x1xf32>
    %cst_65 = arith.constant 3.200000e+01 : f32
    %288 = vector.broadcast %cst_65 : f32 to vector<16x1xf32>
    %289 = arith.divf %287, %288 : vector<16x1xf32>
    %cst_66 = arith.constant 9.99999974E-6 : f32
    %290 = vector.broadcast %cst_66 : f32 to vector<16x1xf32>
    %291 = arith.addf %289, %290 : vector<16x1xf32>
    %292 = math.rsqrt %291 : vector<16x1xf32>
    %293 = vector.broadcast %292 : vector<16x1xf32> to vector<16x32xf32>
    %294 = arith.mulf %284, %293 : vector<16x32xf32>
    %295 = vector.broadcast %277 : vector<1x32xf32> to vector<16x32xf32>
    %296 = arith.mulf %294, %295 : vector<16x32xf32>
    %297 = vector.broadcast %278 : vector<1x32xf32> to vector<16x32xf32>
    %298 = arith.addf %296, %297 : vector<16x32xf32>
    %c1_67 = arith.constant 1 : index
    %c0_68 = arith.constant 0 : index
    %c0_69 = arith.constant 0 : index
    %299 = vector.load %arg6[%c1_67, %c0_68, %c0_69] : memref<2x32x64xf32, #tpu.memory_space<vmem>>, vector<1x32x64xf32>
    %300 = vector.shape_cast %299 : vector<1x32x64xf32> to vector<32x64xf32>
    %cst_70 = arith.constant dense<0.000000e+00> : vector<16x64xf32>
    %301 = tpu.matmul %298, %300, %cst_70 {dimension_numbers = #tpu.dot_dimension_numbers<[1], [0], [0], [1], [0, 0, 1, 1], [], []>} : vector<16x32xf32>, vector<32x64xf32>, vector<16x64xf32> -> vector<16x64xf32>
    %c1_71 = arith.constant 1 : index
    %c0_72 = arith.constant 0 : index
    %c0_73 = arith.constant 0 : index
    %302 = vector.load %arg7[%c1_71, %c0_72, %c0_73] : memref<2x1x64xf32, #tpu.memory_space<vmem>>, vector<1x1x64xf32>
    %303 = vector.shape_cast %302 : vector<1x1x64xf32> to vector<1x64xf32>
    %304 = vector.broadcast %303 : vector<1x64xf32> to vector<16x64xf32>
    %305 = arith.addf %301, %304 : vector<16x64xf32>
    %cst_74 = arith.constant 0.000000e+00 : f32
    %306 = vector.broadcast %cst_74 : f32 to vector<16x64xf32>
    %307 = arith.maximumf %305, %306 : vector<16x64xf32>
    %c1_75 = arith.constant 1 : index
    %c0_76 = arith.constant 0 : index
    %c0_77 = arith.constant 0 : index
    %308 = vector.load %arg8[%c1_75, %c0_76, %c0_77] : memref<2x64x32xf32, #tpu.memory_space<vmem>>, vector<1x64x32xf32>
    %309 = vector.shape_cast %308 : vector<1x64x32xf32> to vector<64x32xf32>
    %cst_78 = arith.constant dense<0.000000e+00> : vector<16x32xf32>
    %310 = tpu.matmul %307, %309, %cst_78 {dimension_numbers = #tpu.dot_dimension_numbers<[1], [0], [0], [1], [0, 0, 1, 1], [], []>} : vector<16x64xf32>, vector<64x32xf32>, vector<16x32xf32> -> vector<16x32xf32>
    %311 = arith.addf %276, %310 : vector<16x32xf32>
    %312 = vector.extract_strided_slice %159 {offsets = [5, 0], sizes = [1, 32], strides = [1, 1]} : vector<6x32xf32> to vector<1x32xf32>
    %313 = vector.broadcast %312 : vector<1x32xf32> to vector<16x32xf32>
    %314 = arith.addf %311, %313 : vector<16x32xf32>
    %c0_79 = arith.constant 0 : index
    %c0_80 = arith.constant 0 : index
    %315 = vector.load %arg9[%c0_79, %c0_80] : memref<32x16xf32, #tpu.memory_space<vmem>>, vector<32x16xf32>
    %cst_81 = arith.constant dense<0.000000e+00> : vector<16x16xf32>
    %316 = tpu.matmul %314, %315, %cst_81 {dimension_numbers = #tpu.dot_dimension_numbers<[1], [0], [0], [1], [0, 0, 1, 1], [], []>} : vector<16x32xf32>, vector<32x16xf32>, vector<16x16xf32> -> vector<16x16xf32>
    %c0_82 = arith.constant 0 : index
    %c0_83 = arith.constant 0 : index
    %317 = vector.load %arg10[%c0_82, %c0_83] : memref<1x16xf32, #tpu.memory_space<vmem>>, vector<1x16xf32>
    %318 = vector.broadcast %317 : vector<1x16xf32> to vector<16x16xf32>
    %319 = arith.addf %316, %318 : vector<16x16xf32>
    %c0_84 = arith.constant 0 : index
    %c0_85 = arith.constant 0 : index
    %320 = vector.load %arg11[%c0_84, %c0_85] : memref<16x16xf32, #tpu.memory_space<vmem>>, vector<16x16xf32>
    tpu.vector_store %arg11[%c0_84, %c0_85], %319 {strides = array<i32>} : memref<16x16xf32, #tpu.memory_space<vmem>>, vector<16x16xf32>,
    return
  }
  func.func @transform_0(%arg0: i32) -> (i32, i32) {
    %c0_i32 = arith.constant 0 : i32
    %c0_i32_0 = arith.constant 0 : i32
    %c0_i32_1 = arith.constant 0 : i32
    return %c0_i32, %c0_i32_0 : i32, i32
  }
  func.func @transform_1(%arg0: i32) -> (i32, i32, i32) {
    %c0_i32 = arith.constant 0 : i32
    %c0_i32_0 = arith.constant 0 : i32
    %c0_i32_1 = arith.constant 0 : i32
    %c0_i32_2 = arith.constant 0 : i32
    return %c0_i32, %c0_i32_0, %c0_i32_1 : i32, i32, i32
  }
  func.func @transform_2(%arg0: i32) -> (i32, i32, i32) {
    %c0_i32 = arith.constant 0 : i32
    %c0_i32_0 = arith.constant 0 : i32
    %c0_i32_1 = arith.constant 0 : i32
    %c0_i32_2 = arith.constant 0 : i32
    return %c0_i32, %c0_i32_0, %c0_i32_1 : i32, i32, i32
  }
  func.func @transform_3(%arg0: i32) -> (i32, i32, i32) {
    %c0_i32 = arith.constant 0 : i32
    %c0_i32_0 = arith.constant 0 : i32
    %c0_i32_1 = arith.constant 0 : i32
    %c0_i32_2 = arith.constant 0 : i32
    return %c0_i32, %c0_i32_0, %c0_i32_1 : i32, i32, i32
  }
  func.func @transform_4(%arg0: i32) -> (i32, i32, i32) {
    %c0_i32 = arith.constant 0 : i32
    %c0_i32_0 = arith.constant 0 : i32
    %c0_i32_1 = arith.constant 0 : i32
    %c0_i32_2 = arith.constant 0 : i32
    return %c0_i32, %c0_i32_0, %c0_i32_1 : i32, i32, i32
  }
  func.func @transform_5(%arg0: i32) -> (i32, i32, i32) {
    %c0_i32 = arith.constant 0 : i32
    %c0_i32_0 = arith.constant 0 : i32
    %c0_i32_1 = arith.constant 0 : i32
    %c0_i32_2 = arith.constant 0 : i32
    return %c0_i32, %c0_i32_0, %c0_i32_1 : i32, i32, i32
  }
  func.func @transform_6(%arg0: i32) -> (i32, i32, i32) {
    %c0_i32 = arith.constant 0 : i32
    %c0_i32_0 = arith.constant 0 : i32
    %c0_i32_1 = arith.constant 0 : i32
    %c0_i32_2 = arith.constant 0 : i32
    return %c0_i32, %c0_i32_0, %c0_i32_1 : i32, i32, i32
  }
  func.func @transform_7(%arg0: i32) -> (i32, i32, i32) {
    %c0_i32 = arith.constant 0 : i32
    %c0_i32_0 = arith.constant 0 : i32
    %c0_i32_1 = arith.constant 0 : i32
    %c0_i32_2 = arith.constant 0 : i32
    return %c0_i32, %c0_i32_0, %c0_i32_1 : i32, i32, i32
  }
  func.func @transform_8(%arg0: i32) -> (i32, i32) {
    %c0_i32 = arith.constant 0 : i32
    %c0_i32_0 = arith.constant 0 : i32
    %c0_i32_1 = arith.constant 0 : i32
    return %c0_i32, %c0_i32_0 : i32, i32
  }
  func.func @transform_9(%arg0: i32) -> (i32, i32) {
    %c0_i32 = arith.constant 0 : i32
    %c0_i32_0 = arith.constant 0 : i32
    %c0_i32_1 = arith.constant 0 : i32
    return %c0_i32, %c0_i32_0 : i32, i32
  }
  func.func @transform_10(%arg0: i32) -> (i32, i32) {
    %c0_i32 = arith.constant 0 : i32
    %c0_i32_0 = arith.constant 0 : i32
    %c0_i32_1 = arith.constant 0 : i32
    return %c0_i32, %c0_i32_0 : i32, i32
  }
}

</mosaic_0001>

<llo_original>
// kernel: tpu_custom_call.1
$region0: #{tpu_custom_call.1}
  #allocation0 [shape = 'u32[]', space=smem, size = 0x4, offset = 0x4, fixed_abs, tag = 'smem constant byte address 0x4 - core index']
  #allocation1 [shape = 'u32[144,128]{1,0:T(1,128)}', space=vmem, size = 0x12000, scoped, tag = 'internal scratch']
  %s0 = inlined_call_operand.vmem [shape: f32[16,32], index: 0, kind: input, shape index: {}]
  %s1 = inlined_call_operand.vmem [shape: f32[2,6,32], index: 1, kind: input, shape index: {}]
  %s2 = inlined_call_operand.vmem [shape: f32[2,32,96], index: 2, kind: input, shape index: {}]
  %s3 = inlined_call_operand.vmem [shape: f32[2,1,96], index: 3, kind: input, shape index: {}]
  %s4 = inlined_call_operand.vmem [shape: f32[2,32,32], index: 4, kind: input, shape index: {}]
  %s5 = inlined_call_operand.vmem [shape: f32[2,32,64], index: 5, kind: input, shape index: {}]
  %s6 = inlined_call_operand.vmem [shape: f32[2,1,64], index: 6, kind: input, shape index: {}]
  %s7 = inlined_call_operand.vmem [shape: f32[2,64,32], index: 7, kind: input, shape index: {}]
  %s8 = inlined_call_operand.vmem [shape: f32[32,16], index: 8, kind: input, shape index: {}]
  %s9 = inlined_call_operand.vmem [shape: f32[1,16], index: 9, kind: input, shape index: {}]
  %s10 = inlined_call_operand.hbm [shape: f32[16,16], index: 10, kind: output, shape index: {}]
  %s11 = sld [smem:[#allocation0]]
  $region50: #{tpu_custom_call.1} parent=0
    _
  %s13 = ssub.s32 1, %s11
  %s14 = scalar_select 0, %s13, %s11
  $region1: #{tpu_custom_call.1} parent=0
    #allocation2 [shape = 'u8[8192]{0}', space=vmem, size = 0x2000, scoped, tag = 'output window, operand 0, single buffered']
    #allocation3 [shape = 's32[1]{0}', space=sflag, size = 0x4, scoped, tag = 'scoped memory for tpu_custom_call.1']
    %15 = vsyncpa [#allocation3], 0
    // Predicated region
    $region2: #{tpu_custom_call.1} parent=1 // pred_check
      _
    $region3: #{tpu_custom_call.1} parent=1 // pred_check_branch
      %17 = sbr.rel (0) target = $region5
    $region4: #{tpu_custom_call.1} parent=1 // pred_region
      _
    $region5: #{tpu_custom_call.1} parent=1 // pred_fallthru
      _
    // Predicated region
    $region6: #{tpu_custom_call.1} parent=1 // pred_check
      _
    $region7: #{tpu_custom_call.1} parent=1 // pred_check_branch
      %19 = sbr.rel (0) target = $region9
    $region8: #{tpu_custom_call.1} parent=1 // pred_region
      _
    $region9: #{tpu_custom_call.1} parent=1 // pred_fallthru
      _
    // Predicated region
    $region10: #{tpu_custom_call.1} parent=1 // pred_check
      _
    $region11: #{tpu_custom_call.1} parent=1 // pred_check_branch
      %21 = sbr.rel (0) target = $region13
    $region12: #{tpu_custom_call.1} parent=1 // pred_region
      _
    $region13: #{tpu_custom_call.1} parent=1 // pred_fallthru
      _
    // Predicated region
    $region14: #{tpu_custom_call.1} parent=1 // pred_check
      _
    $region15: #{tpu_custom_call.1} parent=1 // pred_check_branch
      %23 = sbr.rel (0) target = $region17
    $region16: #{tpu_custom_call.1} parent=1 // pred_region
      _
    $region17: #{tpu_custom_call.1} parent=1 // pred_fallthru
      _
    // Predicated region
    $region18: #{tpu_custom_call.1} parent=1 // pred_check
      _
    $region19: #{tpu_custom_call.1} parent=1 // pred_check_branch
      %25 = sbr.rel (0) target = $region21
    $region20: #{tpu_custom_call.1} parent=1 // pred_region
      _
    $region21: #{tpu_custom_call.1} parent=1 // pred_fallthru
      _
    // Predicated region
    $region22: #{tpu_custom_call.1} parent=1 // pred_check
      _
    $region23: #{tpu_custom_call.1} parent=1 // pred_check_branch
      %27 = sbr.rel (0) target = $region25
    $region24: #{tpu_custom_call.1} parent=1 // pred_region
      _
    $region25: #{tpu_custom_call.1} parent=1 // pred_fallthru
      _
    // Predicated region
    $region26: #{tpu_custom_call.1} parent=1 // pred_check
      _
    $region27: #{tpu_custom_call.1} parent=1 // pred_check_branch
      %29 = sbr.rel (0) target = $region29
    $region28: #{tpu_custom_call.1} parent=1 // pred_region
      _
    $region29: #{tpu_custom_call.1} parent=1 // pred_fallthru
      _
    // Predicated region
    $region30: #{tpu_custom_call.1} parent=1 // pred_check
      _
    $region31: #{tpu_custom_call.1} parent=1 // pred_check_branch
      %31 = sbr.rel (0) target = $region33
    $region32: #{tpu_custom_call.1} parent=1 // pred_region
      _
    $region33: #{tpu_custom_call.1} parent=1 // pred_fallthru
      _
    // Predicated region
    $region34: #{tpu_custom_call.1} parent=1 // pred_check
      _
    $region35: #{tpu_custom_call.1} parent=1 // pred_check_branch
      %33 = sbr.rel (0) target = $region37
    $region36: #{tpu_custom_call.1} parent=1 // pred_region
      _
    $region37: #{tpu_custom_call.1} parent=1 // pred_fallthru
      _
    // Predicated region
    $region38: #{tpu_custom_call.1} parent=1 // pred_check
      _
    $region39: #{tpu_custom_call.1} parent=1 // pred_check_branch
      %35 = sbr.rel (0) target = $region41
    $region40: #{tpu_custom_call.1} parent=1 // pred_region
      _
    $region41: #{tpu_custom_call.1} parent=1 // pred_fallthru
      _
    %v36 = vld [vmem:[%s0] sm:$0xff]
    %v37 = vld [vmem:[%s0 + $0x8] sm:$0xff]
    %v38 = vld [vmem:[%s1] sm:$0x3f]
    %vm39 = vcmask 261120
    %v40 = vsel %vm39, %v36, 0.0
    %41 = vadd.xlane.f32.xlu0 %v40
    %v42 = vpop.xlane.xlu0 %41
    %v43 = vsel %vm39, %v37, 0.0
    %44 = vadd.xlane.f32.xlu0 %v43
    %v45 = vpop.xlane.xlu0 %44
    %v46 = vrcp.pop 32.0
    %v47 = vmul.f32 %v42, %v46
    %v48 = vmul.f32 %v45, %v46
    %v49 = vsub.f32 %v36, %v47
    %v50 = vsub.f32 %v37, %v48
    %v51 = vmul.f32 %v49, %v49
    %v52 = vmul.f32 %v50, %v50
    %v53 = vsel %vm39, %v51, 0.0
    %54 = vadd.xlane.f32.xlu0 %v53
    %v55 = vpop.xlane.xlu0 %54
    %v56 = vsel %vm39, %v52, 0.0
    %57 = vadd.xlane.f32.xlu0 %v56
    %v58 = vpop.xlane.xlu0 %57
    %v59 = vmul.f32 %v55, %v46
    %v60 = vmul.f32 %v58, %v46
    %v61 = vadd.f32 %v59, 1e-05
    %v62 = vadd.f32 %v60, 1e-05
    %v63 = vrsqrt.pop %v61
    %v64 = vrsqrt.pop %v62
    %v65 = vmul.f32 %v49, %v63
    %v66 = vmul.f32 %v50, %v64
    %v67 = vlaneseq
    %v68 = vshrl.u32 %v67, 7
    %v69 = vsub.s32 0, %v68
    %v70 = vrot.slane %v38, %v69
    %v71 = vmul.f32 %v65, %v70
    %v72 = vmul.f32 %v66, %v70
    %v73 = vlaneseq
    %v74 = vshrl.u32 %v73, 7
    %v75 = vsub.s32 1, %v74
    %v76 = vrot.slane %v38, %v75
    %v77 = vadd.f32 %v71, %v76
    %v78 = vadd.f32 %v72, %v76
    %v79 = vld [vmem:[%s2] sm:$0xff]
    %v80 = vld [vmem:[%s2 + $0x8] sm:$0xff]
    %v81 = vld [vmem:[%s2 + $0x10] sm:$0xff]
    %v82 = vld [vmem:[%s2 + $0x18] sm:$0xff]
    %v83 = vld [vmem:[%s3] sm:$0x1]
    %v85 = vlaneseq
    %v86 = vshrl.u32 %v85, 7
    %v87 = vsub.s32 0, %v86
    %v88 = vrot.slane %v83, %v87
    %v91 = vsel %vm39, %v77, 0
    %v94 = vsel %vm39, %v78, 0
    %96 = vmatprep.subr.mxu0 0.0
    %97 = vmatpush1.msra.mxu0 %v79
    %98 = vmatprep.subr.mxu0 0.0
    %99 = vmatpush1.msra.mxu0 %v80
    %100 = vmatprep.subr.mxu0 0.0
    %101 = vmatpush1.msra.mxu0 %v81
    %102 = vmatprep.subr.mxu0 0.0
    %103 = vmatpush1.msra.mxu0 %v82
    %104 = vmatprep.subr.mxu0 0.0
    %105 = vmatpush1.msra.mxu0 0.0
    %106 = vmatprep.subr.mxu0 0.0
    %107 = vmatpush1.msra.mxu0 0.0
    %108 = vmatprep.subr.mxu0 0.0
    %109 = vmatpush1.msra.mxu0 0.0
    %110 = vmatprep.subr.mxu0 0.0
    %111 = vmatpush1.msra.mxu0 0.0
    %112 = vmatprep.subr.mxu0 0.0
    %113 = vmatpush1.msra.mxu0 0.0
    %114 = vmatprep.subr.mxu0 0.0
    %115 = vmatpush1.msra.mxu0 0.0
    %116 = vmatprep.subr.mxu0 0.0
    %117 = vmatpush1.msra.mxu0 0.0
    %118 = vmatprep.subr.mxu0 0.0
    %119 = vmatpush1.msra.mxu0 0.0
    %120 = vmatprep.subr.mxu0 0.0
    %121 = vmatpush1.msra.mxu0 0.0
    %122 = vmatprep.subr.mxu0 0.0
    %123 = vmatpush1.msra.mxu0 0.0
    %124 = vmatprep.subr.mxu0 0.0
    %125 = vmatpush1.msra.mxu0 0.0
    %126 = vmatprep.subr.mxu0 0.0
    %127 = vmatpush1.msra.mxu0 0.0
    %128 = vmatprep.subr.mxu0 0.0
    %129 = vmatpush1.msra.mxu0 0.0
    %130 = vmatprep.subr.mxu0 0.0
    %131 = vmatpush1.msra.mxu0 0.0
    %132 = vmatprep.subr.mxu0 0.0
    %133 = vmatpush1.msra.mxu0 0.0
    %134 = vmatprep.subr.mxu0 0.0
    %135 = vmatpush1.msra.mxu0 0.0
    %136 = vmatprep.subr.mxu0 0.0
    %137 = vmatpush1.msra.mxu0 0.0
    %138 = vmatprep.subr.mxu0 0.0
    %139 = vmatpush1.msra.mxu0 0.0
    %140 = vmatprep.subr.mxu0 0.0
    %141 = vmatpush1.msra.mxu0 0.0
    %142 = vmatprep.subr.mxu0 0.0
    %143 = vmatpush1.msra.mxu0 0.0
    %144 = vmatprep.subr.mxu0 0.0
    %145 = vmatpush1.msra.mxu0 0.0
    %146 = vmatprep.subr.mxu0 0.0
    %147 = vmatpush1.msra.mxu0 0.0
    %148 = vmatprep.subr.mxu0 0.0
    %149 = vmatpush1.msra.mxu0 0.0
    %150 = vmatprep.subr.mxu0 0.0
    %151 = vmatpush1.msra.mxu0 0.0
    %152 = vmatprep.subr.mxu0 0.0
    %153 = vmatpush1.msra.mxu0 0.0
    %154 = vmatprep.subr.mxu0 0.0
    %155 = vmatpush1.msra.mxu0 0.0
    %156 = vmatprep.subr.mxu0 0.0
    %157 = vmatpush1.msra.mxu0 0.0
    %158 = vmatprep.subr.mxu0 0.0
    %159 = vmatpush1.msra.mxu0 0.0
    %160 = vmatprep.mubr.f32.mxu0 0.0
    %161 = vmatmul.mubr.f32.gmra.mrb[0].mxu0 %v91
    %v162 = vpop.f32.mrb[0].mxu0
    %v163 = vadd.f32 %v88, %v162
    %v164 = vpop.f32.mrb[0].mxu0
    %165 = vmatprep.mubr.f32.mxu0 0.0
    %166 = vmatmul.mubr.f32.gmra.mrb[0].mxu0 %v94
    %v167 = vpop.f32.mrb[0].mxu0
    %v168 = vadd.f32 %v88, %v167
    %v169 = vpop.f32.mrb[0].mxu0
    %170 = vdwg.mxu0
    %172 = vrot.lane.b32.xlu0 %v163, 120
    %v173 = vpop.permute.xlu0 %172
    %174 = vrot.lane.b32.xlu0 %v163, 112
    %v175 = vpop.permute.xlu0 %174
    %176 = vrot.lane.b32.xlu0 %v163, 104
    %v177 = vpop.permute.xlu0 %176
    %179 = vrot.lane.b32.xlu0 %v168, 120
    %v180 = vpop.permute.xlu0 %179
    %181 = vrot.lane.b32.xlu0 %v168, 112
    %v182 = vpop.permute.xlu0 %181
    %183 = vrot.lane.b32.xlu0 %v168, 104
    %v184 = vpop.permute.xlu0 %183
    %185 = vrot.lane.b32.xlu0 %v163, 96
    %v186 = vpop.permute.xlu0 %185
    %vm187 = vcmask 64512
    %v188 = vsel %vm187, %v163, 0
    %v190 = vsel %vm187, %v186, 0
    %192 = vmatprep.subr.mxu0 0.0
    %193 = vmatpush1.xpose.msra.mxu0 %v190
    %194 = vmatprep.subr.mxu0 0.0
    %195 = vmatpush1.xpose.msra.mxu0 0.0
    %196 = vmatprep.subr.mxu0 0.0
    %197 = vmatpush1.xpose.msra.mxu0 0.0
    %198 = vmatprep.subr.mxu0 0.0
    %199 = vmatpush1.xpose.msra.mxu0 0.0
    %200 = vmatprep.subr.mxu0 0.0
    %201 = vmatpush1.xpose.msra.mxu0 0.0
    %202 = vmatprep.subr.mxu0 0.0
    %203 = vmatpush1.xpose.msra.mxu0 0.0
    %204 = vmatprep.subr.mxu0 0.0
    %205 = vmatpush1.xpose.msra.mxu0 0.0
    %206 = vmatprep.subr.mxu0 0.0
    %207 = vmatpush1.xpose.msra.mxu0 0.0
    %208 = vmatprep.subr.mxu0 0.0
    %209 = vmatpush1.xpose.msra.mxu0 0.0
    %210 = vmatprep.subr.mxu0 0.0
    %211 = vmatpush1.xpose.msra.mxu0 0.0
    %212 = vmatprep.subr.mxu0 0.0
    %213 = vmatpush1.xpose.msra.mxu0 0.0
    %214 = vmatprep.subr.mxu0 0.0
    %215 = vmatpush1.xpose.msra.mxu0 0.0
    %216 = vmatprep.subr.mxu0 0.0
    %217 = vmatpush1.xpose.msra.mxu0 0.0
    %218 = vmatprep.subr.mxu0 0.0
    %219 = vmatpush1.xpose.msra.mxu0 0.0
    %220 = vmatprep.subr.mxu0 0.0
    %221 = vmatpush1.xpose.msra.mxu0 0.0
    %222 = vmatprep.subr.mxu0 0.0
    %223 = vmatpush1.xpose.msra.mxu0 0.0
    %224 = vmatprep.subr.mxu0 0.0
    %225 = vmatpush1.xpose.msra.mxu0 0.0
    %226 = vmatprep.subr.mxu0 0.0
    %227 = vmatpush1.xpose.msra.mxu0 0.0
    %228 = vmatprep.subr.mxu0 0.0
    %229 = vmatpush1.xpose.msra.mxu0 0.0
    %230 = vmatprep.subr.mxu0 0.0
    %231 = vmatpush1.xpose.msra.mxu0 0.0
    %232 = vmatprep.subr.mxu0 0.0
    %233 = vmatpush1.xpose.msra.mxu0 0.0
    %234 = vmatprep.subr.mxu0 0.0
    %235 = vmatpush1.xpose.msra.mxu0 0.0
    %236 = vmatprep.subr.mxu0 0.0
    %237 = vmatpush1.xpose.msra.mxu0 0.0
    %238 = vmatprep.subr.mxu0 0.0
    %239 = vmatpush1.xpose.msra.mxu0 0.0
    %240 = vmatprep.subr.mxu0 0.0
    %241 = vmatpush1.xpose.msra.mxu0 0.0
    %242 = vmatprep.subr.mxu0 0.0
    %243 = vmatpush1.xpose.msra.mxu0 0.0
    %244 = vmatprep.subr.mxu0 0.0
    %245 = vmatpush1.xpose.msra.mxu0 0.0
    %246 = vmatprep.subr.mxu0 0.0
    %247 = vmatpush1.xpose.msra.mxu0 0.0
    %248 = vmatprep.subr.mxu0 0.0
    %249 = vmatpush1.xpose.msra.mxu0 0.0
    %250 = vmatprep.subr.mxu0 0.0
    %251 = vmatpush1.xpose.msra.mxu0 0.0
    %252 = vmatprep.subr.mxu0 0.0
    %253 = vmatpush1.xpose.msra.mxu0 0.0
    %254 = vmatprep.subr.mxu0 0.0
    %255 = vmatpush1.xpose.msra.mxu0 0.0
    %256 = vmatprep.mubr.f32.mxu0 0.0
    %257 = vmatmul.mubr.f32.gmra.mrb[0].mxu0 %v188
    %v258 = vpop.f32.mrb[0].mxu0
    %v259 = vadd.f32 0.0, %v258
    %v260 = vpop.f32.mrb[0].mxu0
    %261 = vdwg.mxu0
    %262 = vrot.lane.b32.xlu0 %v173, 96
    %v263 = vpop.permute.xlu0 %262
    %v264 = vsel %vm187, %v173, 0
    %v266 = vsel %vm187, %v263, 0
    %268 = vmatprep.subr.mxu0 0.0
    %269 = vmatpush1.xpose.msra.mxu0 %v266
    %270 = vmatprep.subr.mxu0 0.0
    %271 = vmatpush1.xpose.msra.mxu0 0.0
    %272 = vmatprep.subr.mxu0 0.0
    %273 = vmatpush1.xpose.msra.mxu0 0.0
    %274 = vmatprep.subr.mxu0 0.0
    %275 = vmatpush1.xpose.msra.mxu0 0.0
    %276 = vmatprep.subr.mxu0 0.0
    %277 = vmatpush1.xpose.msra.mxu0 0.0
    %278 = vmatprep.subr.mxu0 0.0
    %279 = vmatpush1.xpose.msra.mxu0 0.0
    %280 = vmatprep.subr.mxu0 0.0
    %281 = vmatpush1.xpose.msra.mxu0 0.0
    %282 = vmatprep.subr.mxu0 0.0
    %283 = vmatpush1.xpose.msra.mxu0 0.0
    %284 = vmatprep.subr.mxu0 0.0
    %285 = vmatpush1.xpose.msra.mxu0 0.0
    %286 = vmatprep.subr.mxu0 0.0
    %287 = vmatpush1.xpose.msra.mxu0 0.0
    %288 = vmatprep.subr.mxu0 0.0
    %289 = vmatpush1.xpose.msra.mxu0 0.0
    %290 = vmatprep.subr.mxu0 0.0
    %291 = vmatpush1.xpose.msra.mxu0 0.0
    %292 = vmatprep.subr.mxu0 0.0
    %293 = vmatpush1.xpose.msra.mxu0 0.0
    %294 = vmatprep.subr.mxu0 0.0
    %295 = vmatpush1.xpose.msra.mxu0 0.0
    %296 = vmatprep.subr.mxu0 0.0
    %297 = vmatpush1.xpose.msra.mxu0 0.0
    %298 = vmatprep.subr.mxu0 0.0
    %299 = vmatpush1.xpose.msra.mxu0 0.0
    %300 = vmatprep.subr.mxu0 0.0
    %301 = vmatpush1.xpose.msra.mxu0 0.0
    %302 = vmatprep.subr.mxu0 0.0
    %303 = vmatpush1.xpose.msra.mxu0 0.0
    %304 = vmatprep.subr.mxu0 0.0
    %305 = vmatpush1.xpose.msra.mxu0 0.0
    %306 = vmatprep.subr.mxu0 0.0
    %307 = vmatpush1.xpose.msra.mxu0 0.0
    %308 = vmatprep.subr.mxu0 0.0
    %309 = vmatpush1.xpose.msra.mxu0 0.0
    %310 = vmatprep.subr.mxu0 0.0
    %311 = vmatpush1.xpose.msra.mxu0 0.0
    %312 = vmatprep.subr.mxu0 0.0
    %313 = vmatpush1.xpose.msra.mxu0 0.0
    %314 = vmatprep.subr.mxu0 0.0
    %315 = vmatpush1.xpose.msra.mxu0 0.0
    %316 = vmatprep.subr.mxu0 0.0
    %317 = vmatpush1.xpose.msra.mxu0 0.0
    %318 = vmatprep.subr.mxu0 0.0
    %319 = vmatpush1.xpose.msra.mxu0 0.0
    %320 = vmatprep.subr.mxu0 0.0
    %321 = vmatpush1.xpose.msra.mxu0 0.0
    %322 = vmatprep.subr.mxu0 0.0
    %323 = vmatpush1.xpose.msra.mxu0 0.0
    %324 = vmatprep.subr.mxu0 0.0
    %325 = vmatpush1.xpose.msra.mxu0 0.0
    %326 = vmatprep.subr.mxu0 0.0
    %327 = vmatpush1.xpose.msra.mxu0 0.0
    %328 = vmatprep.subr.mxu0 0.0
    %329 = vmatpush1.xpose.msra.mxu0 0.0
    %330 = vmatprep.subr.mxu0 0.0
    %331 = vmatpush1.xpose.msra.mxu0 0.0
    %332 = vmatprep.mubr.f32.mxu0 0.0
    %333 = vmatmul.mubr.f32.gmra.mrb[0].mxu0 %v264
    %v334 = vpop.f32.mrb[0].mxu0
    %v335 = vadd.f32 0.0, %v334
    %v336 = vpop.f32.mrb[0].mxu0
    %337 = vdwg.mxu0
    %338 = vrot.lane.b32.xlu0 %v175, 96
    %v339 = vpop.permute.xlu0 %338
    %v340 = vsel %vm187, %v175, 0
    %v342 = vsel %vm187, %v339, 0
    %344 = vmatprep.subr.mxu0 0.0
    %345 = vmatpush1.xpose.msra.mxu0 %v342
    %346 = vmatprep.subr.mxu0 0.0
    %347 = vmatpush1.xpose.msra.mxu0 0.0
    %348 = vmatprep.subr.mxu0 0.0
    %349 = vmatpush1.xpose.msra.mxu0 0.0
    %350 = vmatprep.subr.mxu0 0.0
    %351 = vmatpush1.xpose.msra.mxu0 0.0
    %352 = vmatprep.subr.mxu0 0.0
    %353 = vmatpush1.xpose.msra.mxu0 0.0
    %354 = vmatprep.subr.mxu0 0.0
    %355 = vmatpush1.xpose.msra.mxu0 0.0
    %356 = vmatprep.subr.mxu0 0.0
    %357 = vmatpush1.xpose.msra.mxu0 0.0
    %358 = vmatprep.subr.mxu0 0.0
    %359 = vmatpush1.xpose.msra.mxu0 0.0
    %360 = vmatprep.subr.mxu0 0.0
    %361 = vmatpush1.xpose.msra.mxu0 0.0
    %362 = vmatprep.subr.mxu0 0.0
    %363 = vmatpush1.xpose.msra.mxu0 0.0
    %364 = vmatprep.subr.mxu0 0.0
    %365 = vmatpush1.xpose.msra.mxu0 0.0
    %366 = vmatprep.subr.mxu0 0.0
    %367 = vmatpush1.xpose.msra.mxu0 0.0
    %368 = vmatprep.subr.mxu0 0.0
    %369 = vmatpush1.xpose.msra.mxu0 0.0
    %370 = vmatprep.subr.mxu0 0.0
    %371 = vmatpush1.xpose.msra.mxu0 0.0
    %372 = vmatprep.subr.mxu0 0.0
    %373 = vmatpush1.xpose.msra.mxu0 0.0
    %374 = vmatprep.subr.mxu0 0.0
    %375 = vmatpush1.xpose.msra.mxu0 0.0
    %376 = vmatprep.subr.mxu0 0.0
    %377 = vmatpush1.xpose.msra.mxu0 0.0
    %378 = vmatprep.subr.mxu0 0.0
    %379 = vmatpush1.xpose.msra.mxu0 0.0
    %380 = vmatprep.subr.mxu0 0.0
    %381 = vmatpush1.xpose.msra.mxu0 0.0
    %382 = vmatprep.subr.mxu0 0.0
    %383 = vmatpush1.xpose.msra.mxu0 0.0
    %384 = vmatprep.subr.mxu0 0.0
    %385 = vmatpush1.xpose.msra.mxu0 0.0
    %386 = vmatprep.subr.mxu0 0.0
    %387 = vmatpush1.xpose.msra.mxu0 0.0
    %388 = vmatprep.subr.mxu0 0.0
    %389 = vmatpush1.xpose.msra.mxu0 0.0
    %390 = vmatprep.subr.mxu0 0.0
    %391 = vmatpush1.xpose.msra.mxu0 0.0
    %392 = vmatprep.subr.mxu0 0.0
    %393 = vmatpush1.xpose.msra.mxu0 0.0
    %394 = vmatprep.subr.mxu0 0.0
    %395 = vmatpush1.xpose.msra.mxu0 0.0
    %396 = vmatprep.subr.mxu0 0.0
    %397 = vmatpush1.xpose.msra.mxu0 0.0
    %398 = vmatprep.subr.mxu0 0.0
    %399 = vmatpush1.xpose.msra.mxu0 0.0
    %400 = vmatprep.subr.mxu0 0.0
    %401 = vmatpush1.xpose.msra.mxu0 0.0
    %402 = vmatprep.subr.mxu0 0.0
    %403 = vmatpush1.xpose.msra.mxu0 0.0
    %404 = vmatprep.subr.mxu0 0.0
    %405 = vmatpush1.xpose.msra.mxu0 0.0
    %406 = vmatprep.subr.mxu0 0.0
    %407 = vmatpush1.xpose.msra.mxu0 0.0
    %408 = vmatprep.mubr.f32.mxu0 0.0
    %409 = vmatmul.mubr.f32.gmra.mrb[0].mxu0 %v340
    %v410 = vpop.f32.mrb[0].mxu0
    %v411 = vadd.f32 0.0, %v410
    %v412 = vpop.f32.mrb[0].mxu0
    %413 = vdwg.mxu0
    %414 = vrot.lane.b32.xlu0 %v177, 96
    %v415 = vpop.permute.xlu0 %414
    %v416 = vsel %vm187, %v177, 0
    %v418 = vsel %vm187, %v415, 0
    %420 = vmatprep.subr.mxu0 0.0
    %421 = vmatpush1.xpose.msra.mxu0 %v418
    %422 = vmatprep.subr.mxu0 0.0
    %423 = vmatpush1.xpose.msra.mxu0 0.0
    %424 = vmatprep.subr.mxu0 0.0
    %425 = vmatpush1.xpose.msra.mxu0 0.0
    %426 = vmatprep.subr.mxu0 0.0
    %427 = vmatpush1.xpose.msra.mxu0 0.0
    %428 = vmatprep.subr.mxu0 0.0
    %429 = vmatpush1.xpose.msra.mxu0 0.0
    %430 = vmatprep.subr.mxu0 0.0
    %431 = vmatpush1.xpose.msra.mxu0 0.0
    %432 = vmatprep.subr.mxu0 0.0
    %433 = vmatpush1.xpose.msra.mxu0 0.0
    %434 = vmatprep.subr.mxu0 0.0
    %435 = vmatpush1.xpose.msra.mxu0 0.0
    %436 = vmatprep.subr.mxu0 0.0
    %437 = vmatpush1.xpose.msra.mxu0 0.0
    %438 = vmatprep.subr.mxu0 0.0
    %439 = vmatpush1.xpose.msra.mxu0 0.0
    %440 = vmatprep.subr.mxu0 0.0
    %441 = vmatpush1.xpose.msra.mxu0 0.0
    %442 = vmatprep.subr.mxu0 0.0
    %443 = vmatpush1.xpose.msra.mxu0 0.0
    %444 = vmatprep.subr.mxu0 0.0
    %445 = vmatpush1.xpose.msra.mxu0 0.0
    %446 = vmatprep.subr.mxu0 0.0
    %447 = vmatpush1.xpose.msra.mxu0 0.0
    %448 = vmatprep.subr.mxu0 0.0
    %449 = vmatpush1.xpose.msra.mxu0 0.0
    %450 = vmatprep.subr.mxu0 0.0
    %451 = vmatpush1.xpose.msra.mxu0 0.0
    %452 = vmatprep.subr.mxu0 0.0
    %453 = vmatpush1.xpose.msra.mxu0 0.0
    %454 = vmatprep.subr.mxu0 0.0
    %455 = vmatpush1.xpose.msra.mxu0 0.0
    %456 = vmatprep.subr.mxu0 0.0
    %457 = vmatpush1.xpose.msra.mxu0 0.0
    %458 = vmatprep.subr.mxu0 0.0
    %459 = vmatpush1.xpose.msra.mxu0 0.0
    %460 = vmatprep.subr.mxu0 0.0
    %461 = vmatpush1.xpose.msra.mxu0 0.0
    %462 = vmatprep.subr.mxu0 0.0
    %463 = vmatpush1.xpose.msra.mxu0 0.0
    %464 = vmatprep.subr.mxu0 0.0
    %465 = vmatpush1.xpose.msra.mxu0 0.0
    %466 = vmatprep.subr.mxu0 0.0
    %467 = vmatpush1.xpose.msra.mxu0 0.0
    %468 = vmatprep.subr.mxu0 0.0
    %469 = vmatpush1.xpose.msra.mxu0 0.0
    %470 = vmatprep.subr.mxu0 0.0
    %471 = vmatpush1.xpose.msra.mxu0 0.0
    %472 = vmatprep.subr.mxu0 0.0
    %473 = vmatpush1.xpose.msra.mxu0 0.0
    %474 = vmatprep.subr.mxu0 0.0
    %475 = vmatpush1.xpose.msra.mxu0 0.0
    %476 = vmatprep.subr.mxu0 0.0
    %477 = vmatpush1.xpose.msra.mxu0 0.0
    %478 = vmatprep.subr.mxu0 0.0
    %479 = vmatpush1.xpose.msra.mxu0 0.0
    %480 = vmatprep.subr.mxu0 0.0
    %481 = vmatpush1.xpose.msra.mxu0 0.0
    %482 = vmatprep.subr.mxu0 0.0
    %483 = vmatpush1.xpose.msra.mxu0 0.0
    %484 = vmatprep.mubr.f32.mxu0 0.0
    %485 = vmatmul.mubr.f32.gmra.mrb[0].mxu0 %v416
    %v486 = vpop.f32.mrb[0].mxu0
    %v487 = vadd.f32 0.0, %v486
    %v488 = vpop.f32.mrb[0].mxu0
    %489 = vdwg.mxu0
    %490 = vrot.lane.b32.xlu0 %v168, 96
    %v491 = vpop.permute.xlu0 %490
    %v492 = vsel %vm187, %v168, 0
    %v494 = vsel %vm187, %v491, 0
    %496 = vmatprep.subr.mxu0 0.0
    %497 = vmatpush1.xpose.msra.mxu0 %v494
    %498 = vmatprep.subr.mxu0 0.0
    %499 = vmatpush1.xpose.msra.mxu0 0.0
    %500 = vmatprep.subr.mxu0 0.0
    %501 = vmatpush1.xpose.msra.mxu0 0.0
    %502 = vmatprep.subr.mxu0 0.0
    %503 = vmatpush1.xpose.msra.mxu0 0.0
    %504 = vmatprep.subr.mxu0 0.0
    %505 = vmatpush1.xpose.msra.mxu0 0.0
    %506 = vmatprep.subr.mxu0 0.0
    %507 = vmatpush1.xpose.msra.mxu0 0.0
    %508 = vmatprep.subr.mxu0 0.0
    %509 = vmatpush1.xpose.msra.mxu0 0.0
    %510 = vmatprep.subr.mxu0 0.0
    %511 = vmatpush1.xpose.msra.mxu0 0.0
    %512 = vmatprep.subr.mxu0 0.0
    %513 = vmatpush1.xpose.msra.mxu0 0.0
    %514 = vmatprep.subr.mxu0 0.0
    %515 = vmatpush1.xpose.msra.mxu0 0.0
    %516 = vmatprep.subr.mxu0 0.0
    %517 = vmatpush1.xpose.msra.mxu0 0.0
    %518 = vmatprep.subr.mxu0 0.0
    %519 = vmatpush1.xpose.msra.mxu0 0.0
    %520 = vmatprep.subr.mxu0 0.0
    %521 = vmatpush1.xpose.msra.mxu0 0.0
    %522 = vmatprep.subr.mxu0 0.0
    %523 = vmatpush1.xpose.msra.mxu0 0.0
    %524 = vmatprep.subr.mxu0 0.0
    %525 = vmatpush1.xpose.msra.mxu0 0.0
    %526 = vmatprep.subr.mxu0 0.0
    %527 = vmatpush1.xpose.msra.mxu0 0.0
    %528 = vmatprep.subr.mxu0 0.0
    %529 = vmatpush1.xpose.msra.mxu0 0.0
    %530 = vmatprep.subr.mxu0 0.0
    %531 = vmatpush1.xpose.msra.mxu0 0.0
    %532 = vmatprep.subr.mxu0 0.0
    %533 = vmatpush1.xpose.msra.mxu0 0.0
    %534 = vmatprep.subr.mxu0 0.0
    %535 = vmatpush1.xpose.msra.mxu0 0.0
    %536 = vmatprep.subr.mxu0 0.0
    %537 = vmatpush1.xpose.msra.mxu0 0.0
    %538 = vmatprep.subr.mxu0 0.0
    %539 = vmatpush1.xpose.msra.mxu0 0.0
    %540 = vmatprep.subr.mxu0 0.0
    %541 = vmatpush1.xpose.msra.mxu0 0.0
    %542 = vmatprep.subr.mxu0 0.0
    %543 = vmatpush1.xpose.msra.mxu0 0.0
    %544 = vmatprep.subr.mxu0 0.0
    %545 = vmatpush1.xpose.msra.mxu0 0.0
    %546 = vmatprep.subr.mxu0 0.0
    %547 = vmatpush1.xpose.msra.mxu0 0.0
    %548 = vmatprep.subr.mxu0 0.0
    %549 = vmatpush1.xpose.msra.mxu0 0.0
    %550 = vmatprep.subr.mxu0 0.0
    %551 = vmatpush1.xpose.msra.mxu0 0.0
    %552 = vmatprep.subr.mxu0 0.0
    %553 = vmatpush1.xpose.msra.mxu0 0.0
    %554 = vmatprep.subr.mxu0 0.0
    %555 = vmatpush1.xpose.msra.mxu0 0.0
    %556 = vmatprep.subr.mxu0 0.0
    %557 = vmatpush1.xpose.msra.mxu0 0.0
    %558 = vmatprep.subr.mxu0 0.0
    %559 = vmatpush1.xpose.msra.mxu0 0.0
    %560 = vmatprep.mubr.f32.mxu0 0.0
    %561 = vmatmul.mubr.f32.gmra.mrb[0].mxu0 %v492
    %v562 = vpop.f32.mrb[0].mxu0
    %v563 = vadd.f32 0.0, %v562
    %v564 = vpop.f32.mrb[0].mxu0
    %565 = vdwg.mxu0
    %566 = vrot.lane.b32.xlu0 %v180, 96
    %v567 = vpop.permute.xlu0 %566
    %v568 = vsel %vm187, %v180, 0
    %v570 = vsel %vm187, %v567, 0
    %572 = vmatprep.subr.mxu0 0.0
    %573 = vmatpush1.xpose.msra.mxu0 %v570
    %574 = vmatprep.subr.mxu0 0.0
    %575 = vmatpush1.xpose.msra.mxu0 0.0
    %576 = vmatprep.subr.mxu0 0.0
    %577 = vmatpush1.xpose.msra.mxu0 0.0
    %578 = vmatprep.subr.mxu0 0.0
    %579 = vmatpush1.xpose.msra.mxu0 0.0
    %580 = vmatprep.subr.mxu0 0.0
    %581 = vmatpush1.xpose.msra.mxu0 0.0
    %582 = vmatprep.subr.mxu0 0.0
    %583 = vmatpush1.xpose.msra.mxu0 0.0
    %584 = vmatprep.subr.mxu0 0.0
    %585 = vmatpush1.xpose.msra.mxu0 0.0
    %586 = vmatprep.subr.mxu0 0.0
    %587 = vmatpush1.xpose.msra.mxu0 0.0
    %588 = vmatprep.subr.mxu0 0.0
    %589 = vmatpush1.xpose.msra.mxu0 0.0
    %590 = vmatprep.subr.mxu0 0.0
    %591 = vmatpush1.xpose.msra.mxu0 0.0
    %592 = vmatprep.subr.mxu0 0.0
    %593 = vmatpush1.xpose.msra.mxu0 0.0
    %594 = vmatprep.subr.mxu0 0.0
    %595 = vmatpush1.xpose.msra.mxu0 0.0
    %596 = vmatprep.subr.mxu0 0.0
    %597 = vmatpush1.xpose.msra.mxu0 0.0
    %598 = vmatprep.subr.mxu0 0.0
    %599 = vmatpush1.xpose.msra.mxu0 0.0
    %600 = vmatprep.subr.mxu0 0.0
    %601 = vmatpush1.xpose.msra.mxu0 0.0
    %602 = vmatprep.subr.mxu0 0.0
    %603 = vmatpush1.xpose.msra.mxu0 0.0
    %604 = vmatprep.subr.mxu0 0.0
    %605 = vmatpush1.xpose.msra.mxu0 0.0
    %606 = vmatprep.subr.mxu0 0.0
    %607 = vmatpush1.xpose.msra.mxu0 0.0
    %608 = vmatprep.subr.mxu0 0.0
    %609 = vmatpush1.xpose.msra.mxu0 0.0
    %610 = vmatprep.subr.mxu0 0.0
    %611 = vmatpush1.xpose.msra.mxu0 0.0
    %612 = vmatprep.subr.mxu0 0.0
    %613 = vmatpush1.xpose.msra.mxu0 0.0
    %614 = vmatprep.subr.mxu0 0.0
    %615 = vmatpush1.xpose.msra.mxu0 0.0
    %616 = vmatprep.subr.mxu0 0.0
    %617 = vmatpush1.xpose.msra.mxu0 0.0
    %618 = vmatprep.subr.mxu0 0.0
    %619 = vmatpush1.xpose.msra.mxu0 0.0
    %620 = vmatprep.subr.mxu0 0.0
    %621 = vmatpush1.xpose.msra.mxu0 0.0
    %622 = vmatprep.subr.mxu0 0.0
    %623 = vmatpush1.xpose.msra.mxu0 0.0
    %624 = vmatprep.subr.mxu0 0.0
    %625 = vmatpush1.xpose.msra.mxu0 0.0
    %626 = vmatprep.subr.mxu0 0.0
    %627 = vmatpush1.xpose.msra.mxu0 0.0
    %628 = vmatprep.subr.mxu0 0.0
    %629 = vmatpush1.xpose.msra.mxu0 0.0
    %630 = vmatprep.subr.mxu0 0.0
    %631 = vmatpush1.xpose.msra.mxu0 0.0
    %632 = vmatprep.subr.mxu0 0.0
    %633 = vmatpush1.xpose.msra.mxu0 0.0
    %634 = vmatprep.subr.mxu0 0.0
    %635 = vmatpush1.xpose.msra.mxu0 0.0
    %636 = vmatprep.mubr.f32.mxu0 0.0
    %637 = vmatmul.mubr.f32.gmra.mrb[0].mxu0 %v568
    %v638 = vpop.f32.mrb[0].mxu0
    %v639 = vadd.f32 0.0, %v638
    %v640 = vpop.f32.mrb[0].mxu0
    %641 = vdwg.mxu0
    %642 = vrot.lane.b32.xlu0 %v182, 96
    %v643 = vpop.permute.xlu0 %642
    %v644 = vsel %vm187, %v182, 0
    %v646 = vsel %vm187, %v643, 0
    %648 = vmatprep.subr.mxu0 0.0
    %649 = vmatpush1.xpose.msra.mxu0 %v646
    %650 = vmatprep.subr.mxu0 0.0
    %651 = vmatpush1.xpose.msra.mxu0 0.0
    %652 = vmatprep.subr.mxu0 0.0
    %653 = vmatpush1.xpose.msra.mxu0 0.0
    %654 = vmatprep.subr.mxu0 0.0
    %655 = vmatpush1.xpose.msra.mxu0 0.0
    %656 = vmatprep.subr.mxu0 0.0
    %657 = vmatpush1.xpose.msra.mxu0 0.0
    %658 = vmatprep.subr.mxu0 0.0
    %659 = vmatpush1.xpose.msra.mxu0 0.0
    %660 = vmatprep.subr.mxu0 0.0
    %661 = vmatpush1.xpose.msra.mxu0 0.0
    %662 = vmatprep.subr.mxu0 0.0
    %663 = vmatpush1.xpose.msra.mxu0 0.0
    %664 = vmatprep.subr.mxu0 0.0
    %665 = vmatpush1.xpose.msra.mxu0 0.0
    %666 = vmatprep.subr.mxu0 0.0
    %667 = vmatpush1.xpose.msra.mxu0 0.0
    %668 = vmatprep.subr.mxu0 0.0
    %669 = vmatpush1.xpose.msra.mxu0 0.0
    %670 = vmatprep.subr.mxu0 0.0
    %671 = vmatpush1.xpose.msra.mxu0 0.0
    %672 = vmatprep.subr.mxu0 0.0
    %673 = vmatpush1.xpose.msra.mxu0 0.0
    %674 = vmatprep.subr.mxu0 0.0
    %675 = vmatpush1.xpose.msra.mxu0 0.0
    %676 = vmatprep.subr.mxu0 0.0
    %677 = vmatpush1.xpose.msra.mxu0 0.0
    %678 = vmatprep.subr.mxu0 0.0
    %679 = vmatpush1.xpose.msra.mxu0 0.0
    %680 = vmatprep.subr.mxu0 0.0
    %681 = vmatpush1.xpose.msra.mxu0 0.0
    %682 = vmatprep.subr.mxu0 0.0
    %683 = vmatpush1.xpose.msra.mxu0 0.0
    %684 = vmatprep.subr.mxu0 0.0
    %685 = vmatpush1.xpose.msra.mxu0 0.0
    %686 = vmatprep.subr.mxu0 0.0
    %687 = vmatpush1.xpose.msra.mxu0 0.0
    %688 = vmatprep.subr.mxu0 0.0
    %689 = vmatpush1.xpose.msra.mxu0 0.0
    %690 = vmatprep.subr.mxu0 0.0
    %691 = vmatpush1.xpose.msra.mxu0 0.0
    %692 = vmatprep.subr.mxu0 0.0
    %693 = vmatpush1.xpose.msra.mxu0 0.0
    %694 = vmatprep.subr.mxu0 0.0
    %695 = vmatpush1.xpose.msra.mxu0 0.0
    %696 = vmatprep.subr.mxu0 0.0
    %697 = vmatpush1.xpose.msra.mxu0 0.0
    %698 = vmatprep.subr.mxu0 0.0
    %699 = vmatpush1.xpose.msra.mxu0 0.0
    %700 = vmatprep.subr.mxu0 0.0
    %701 = vmatpush1.xpose.msra.mxu0 0.0
    %702 = vmatprep.subr.mxu0 0.0
    %703 = vmatpush1.xpose.msra.mxu0 0.0
    %704 = vmatprep.subr.mxu0 0.0
    %705 = vmatpush1.xpose.msra.mxu0 0.0
    %706 = vmatprep.subr.mxu0 0.0
    %707 = vmatpush1.xpose.msra.mxu0 0.0
    %708 = vmatprep.subr.mxu0 0.0
    %709 = vmatpush1.xpose.msra.mxu0 0.0
    %710 = vmatprep.subr.mxu0 0.0
    %711 = vmatpush1.xpose.msra.mxu0 0.0
    %712 = vmatprep.mubr.f32.mxu0 0.0
    %713 = vmatmul.mubr.f32.gmra.mrb[0].mxu0 %v644
    %v714 = vpop.f32.mrb[0].mxu0
    %v715 = vadd.f32 0.0, %v714
    %v716 = vpop.f32.mrb[0].mxu0
    %717 = vdwg.mxu0
    %718 = vrot.lane.b32.xlu0 %v184, 96
    %v719 = vpop.permute.xlu0 %718
    %v720 = vsel %vm187, %v184, 0
    %v722 = vsel %vm187, %v719, 0
    %724 = vmatprep.subr.mxu0 0.0
    %725 = vmatpush1.xpose.msra.mxu0 %v722
    %726 = vmatprep.subr.mxu0 0.0
    %727 = vmatpush1.xpose.msra.mxu0 0.0
    %728 = vmatprep.subr.mxu0 0.0
    %729 = vmatpush1.xpose.msra.mxu0 0.0
    %730 = vmatprep.subr.mxu0 0.0
    %731 = vmatpush1.xpose.msra.mxu0 0.0
    %732 = vmatprep.subr.mxu0 0.0
    %733 = vmatpush1.xpose.msra.mxu0 0.0
    %734 = vmatprep.subr.mxu0 0.0
    %735 = vmatpush1.xpose.msra.mxu0 0.0
    %736 = vmatprep.subr.mxu0 0.0
    %737 = vmatpush1.xpose.msra.mxu0 0.0
    %738 = vmatprep.subr.mxu0 0.0
    %739 = vmatpush1.xpose.msra.mxu0 0.0
    %740 = vmatprep.subr.mxu0 0.0
    %741 = vmatpush1.xpose.msra.mxu0 0.0
    %742 = vmatprep.subr.mxu0 0.0
    %743 = vmatpush1.xpose.msra.mxu0 0.0
    %744 = vmatprep.subr.mxu0 0.0
    %745 = vmatpush1.xpose.msra.mxu0 0.0
    %746 = vmatprep.subr.mxu0 0.0
    %747 = vmatpush1.xpose.msra.mxu0 0.0
    %748 = vmatprep.subr.mxu0 0.0
    %749 = vmatpush1.xpose.msra.mxu0 0.0
    %750 = vmatprep.subr.mxu0 0.0
    %751 = vmatpush1.xpose.msra.mxu0 0.0
    %752 = vmatprep.subr.mxu0 0.0
    %753 = vmatpush1.xpose.msra.mxu0 0.0
    %754 = vmatprep.subr.mxu0 0.0
    %755 = vmatpush1.xpose.msra.mxu0 0.0
    %756 = vmatprep.subr.mxu0 0.0
    %757 = vmatpush1.xpose.msra.mxu0 0.0
    %758 = vmatprep.subr.mxu0 0.0
    %759 = vmatpush1.xpose.msra.mxu0 0.0
    %760 = vmatprep.subr.mxu0 0.0
    %761 = vmatpush1.xpose.msra.mxu0 0.0
    %762 = vmatprep.subr.mxu0 0.0
    %763 = vmatpush1.xpose.msra.mxu0 0.0
    %764 = vmatprep.subr.mxu0 0.0
    %765 = vmatpush1.xpose.msra.mxu0 0.0
    %766 = vmatprep.subr.mxu0 0.0
    %767 = vmatpush1.xpose.msra.mxu0 0.0
    %768 = vmatprep.subr.mxu0 0.0
    %769 = vmatpush1.xpose.msra.mxu0 0.0
    %770 = vmatprep.subr.mxu0 0.0
    %771 = vmatpush1.xpose.msra.mxu0 0.0
    %772 = vmatprep.subr.mxu0 0.0
    %773 = vmatpush1.xpose.msra.mxu0 0.0
    %774 = vmatprep.subr.mxu0 0.0
    %775 = vmatpush1.xpose.msra.mxu0 0.0
    %776 = vmatprep.subr.mxu0 0.0
    %777 = vmatpush1.xpose.msra.mxu0 0.0
    %778 = vmatprep.subr.mxu0 0.0
    %779 = vmatpush1.xpose.msra.mxu0 0.0
    %780 = vmatprep.subr.mxu0 0.0
    %781 = vmatpush1.xpose.msra.mxu0 0.0
    %782 = vmatprep.subr.mxu0 0.0
    %783 = vmatpush1.xpose.msra.mxu0 0.0
    %784 = vmatprep.subr.mxu0 0.0
    %785 = vmatpush1.xpose.msra.mxu0 0.0
    %786 = vmatprep.subr.mxu0 0.0
    %787 = vmatpush1.xpose.msra.mxu0 0.0
    %788 = vmatprep.mubr.f32.mxu0 0.0
    %789 = vmatmul.mubr.f32.gmra.mrb[0].mxu0 %v720
    %v790 = vpop.f32.mrb[0].mxu0
    %v791 = vadd.f32 0.0, %v790
    %v792 = vpop.f32.mrb[0].mxu0
    %793 = vdwg.mxu0
    %v794 = vsel %vm187, %v259, -inf
    %795 = vmax.xlane.f32.xlu0 %v794
    %v796 = vpop.xlane.xlu0 %795
    %v797 = vsel %vm187, %v335, -inf
    %798 = vmax.xlane.f32.xlu0 %v797
    %v799 = vpop.xlane.xlu0 %798
    %v800 = vsel %vm187, %v411, -inf
    %801 = vmax.xlane.f32.xlu0 %v800
    %v802 = vpop.xlane.xlu0 %801
    %v803 = vsel %vm187, %v487, -inf
    %804 = vmax.xlane.f32.xlu0 %v803
    %v805 = vpop.xlane.xlu0 %804
    %v806 = vsel %vm187, %v563, -inf
    %807 = vmax.xlane.f32.xlu0 %v806
    %v808 = vpop.xlane.xlu0 %807
    %v809 = vsel %vm187, %v639, -inf
    %810 = vmax.xlane.f32.xlu0 %v809
    %v811 = vpop.xlane.xlu0 %810
    %v812 = vsel %vm187, %v715, -inf
    %813 = vmax.xlane.f32.xlu0 %v812
    %v814 = vpop.xlane.xlu0 %813
    %v815 = vsel %vm187, %v791, -inf
    %816 = vmax.xlane.f32.xlu0 %v815
    %v817 = vpop.xlane.xlu0 %816
    %v818 = vsub.f32 %v259, %v796
    %v819 = vsub.f32 %v335, %v799
    %v820 = vsub.f32 %v411, %v802
    %v821 = vsub.f32 %v487, %v805
    %v822 = vsub.f32 %v563, %v808
    %v823 = vsub.f32 %v639, %v811
    %v824 = vsub.f32 %v715, %v814
    %v825 = vsub.f32 %v791, %v817
    %v826 = vmul.f32 %v818, 1.442695
    %v827 = vpow.pop %v826
    %v828 = vmul.f32 %v819, 1.442695
    %v829 = vpow.pop %v828
    %v830 = vmul.f32 %v820, 1.442695
    %v831 = vpow.pop %v830
    %v832 = vmul.f32 %v821, 1.442695
    %v833 = vpow.pop %v832
    %v834 = vmul.f32 %v822, 1.442695
    %v835 = vpow.pop %v834
    %v836 = vmul.f32 %v823, 1.442695
    %v837 = vpow.pop %v836
    %v838 = vmul.f32 %v824, 1.442695
    %v839 = vpow.pop %v838
    %v840 = vmul.f32 %v825, 1.442695
    %v841 = vpow.pop %v840
    %v842 = vsel %vm187, %v827, 0.0
    %843 = vadd.xlane.f32.xlu0 %v842
    %v844 = vpop.xlane.xlu0 %843
    %v845 = vsel %vm187, %v829, 0.0
    %846 = vadd.xlane.f32.xlu0 %v845
    %v847 = vpop.xlane.xlu0 %846
    %v848 = vsel %vm187, %v831, 0.0
    %849 = vadd.xlane.f32.xlu0 %v848
    %v850 = vpop.xlane.xlu0 %849
    %v851 = vsel %vm187, %v833, 0.0
    %852 = vadd.xlane.f32.xlu0 %v851
    %v853 = vpop.xlane.xlu0 %852
    %v854 = vsel %vm187, %v835, 0.0
    %855 = vadd.xlane.f32.xlu0 %v854
    %v856 = vpop.xlane.xlu0 %855
    %v857 = vsel %vm187, %v837, 0.0
    %858 = vadd.xlane.f32.xlu0 %v857
    %v859 = vpop.xlane.xlu0 %858
    %v860 = vsel %vm187, %v839, 0.0
    %861 = vadd.xlane.f32.xlu0 %v860
    %v862 = vpop.xlane.xlu0 %861
    %v863 = vsel %vm187, %v841, 0.0
    %864 = vadd.xlane.f32.xlu0 %v863
    %v865 = vpop.xlane.xlu0 %864
    %v866 = vrcp.pop %v844
    %v867 = vmul.f32 %v827, %v866
    %v868 = vrcp.pop %v847
    %v869 = vmul.f32 %v829, %v868
    %v870 = vrcp.pop %v850
    %v871 = vmul.f32 %v831, %v870
    %v872 = vrcp.pop %v853
    %v873 = vmul.f32 %v833, %v872
    %v874 = vrcp.pop %v856
    %v875 = vmul.f32 %v835, %v874
    %v876 = vrcp.pop %v859
    %v877 = vmul.f32 %v837, %v876
    %v878 = vrcp.pop %v862
    %v879 = vmul.f32 %v839, %v878
    %v880 = vrcp.pop %v865
    %v881 = vmul.f32 %v841, %v880
    %882 = vrot.lane.b32.xlu0 %v163, 64
    %v883 = vpop.permute.xlu0 %882
    %v886 = vsel %vm187, %v867, 0
    %888 = vmatprep.subr.mxu0 0.0
    %889 = vmatpush1.msra.mxu0 %v883
    %890 = vmatprep.subr.mxu0 0.0
    %891 = vmatpush1.msra.mxu0 0.0
    %892 = vmatprep.subr.mxu0 0.0
    %893 = vmatpush1.msra.mxu0 0.0
    %894 = vmatprep.subr.mxu0 0.0
    %895 = vmatpush1.msra.mxu0 0.0
    %896 = vmatprep.subr.mxu0 0.0
    %897 = vmatpush1.msra.mxu0 0.0
    %898 = vmatprep.subr.mxu0 0.0
    %899 = vmatpush1.msra.mxu0 0.0
    %900 = vmatprep.subr.mxu0 0.0
    %901 = vmatpush1.msra.mxu0 0.0
    %902 = vmatprep.subr.mxu0 0.0
    %903 = vmatpush1.msra.mxu0 0.0
    %904 = vmatprep.subr.mxu0 0.0
    %905 = vmatpush1.msra.mxu0 0.0
    %906 = vmatprep.subr.mxu0 0.0
    %907 = vmatpush1.msra.mxu0 0.0
    %908 = vmatprep.subr.mxu0 0.0
    %909 = vmatpush1.msra.mxu0 0.0
    %910 = vmatprep.subr.mxu0 0.0
    %911 = vmatpush1.msra.mxu0 0.0
    %912 = vmatprep.subr.mxu0 0.0
    %913 = vmatpush1.msra.mxu0 0.0
    %914 = vmatprep.subr.mxu0 0.0
    %915 = vmatpush1.msra.mxu0 0.0
    %916 = vmatprep.subr.mxu0 0.0
    %917 = vmatpush1.msra.mxu0 0.0
    %918 = vmatprep.subr.mxu0 0.0
    %919 = vmatpush1.msra.mxu0 0.0
    %920 = vmatprep.subr.mxu0 0.0
    %921 = vmatpush1.msra.mxu0 0.0
    %922 = vmatprep.subr.mxu0 0.0
    %923 = vmatpush1.msra.mxu0 0.0
    %924 = vmatprep.subr.mxu0 0.0
    %925 = vmatpush1.msra.mxu0 0.0
    %926 = vmatprep.subr.mxu0 0.0
    %927 = vmatpush1.msra.mxu0 0.0
    %928 = vmatprep.subr.mxu0 0.0
    %929 = vmatpush1.msra.mxu0 0.0
    %930 = vmatprep.subr.mxu0 0.0
    %931 = vmatpush1.msra.mxu0 0.0
    %932 = vmatprep.subr.mxu0 0.0
    %933 = vmatpush1.msra.mxu0 0.0
    %934 = vmatprep.subr.mxu0 0.0
    %935 = vmatpush1.msra.mxu0 0.0
    %936 = vmatprep.subr.mxu0 0.0
    %937 = vmatpush1.msra.mxu0 0.0
    %938 = vmatprep.subr.mxu0 0.0
    %939 = vmatpush1.msra.mxu0 0.0
    %940 = vmatprep.subr.mxu0 0.0
    %941 = vmatpush1.msra.mxu0 0.0
    %942 = vmatprep.subr.mxu0 0.0
    %943 = vmatpush1.msra.mxu0 0.0
    %944 = vmatprep.subr.mxu0 0.0
    %945 = vmatpush1.msra.mxu0 0.0
    %946 = vmatprep.subr.mxu0 0.0
    %947 = vmatpush1.msra.mxu0 0.0
    %948 = vmatprep.subr.mxu0 0.0
    %949 = vmatpush1.msra.mxu0 0.0
    %950 = vmatprep.subr.mxu0 0.0
    %951 = vmatpush1.msra.mxu0 0.0
    %952 = vmatprep.mubr.f32.mxu0 0.0
    %953 = vmatmul.mubr.f32.gmra.mrb[0].mxu0 %v886
    %v954 = vpop.f32.mrb[0].mxu0
    %v955 = vadd.f32 0.0, %v954
    %v956 = vpop.f32.mrb[0].mxu0
    %957 = vdwg.mxu0
    %958 = vrot.lane.b32.xlu0 %v173, 64
    %v959 = vpop.permute.xlu0 %958
    %v962 = vsel %vm187, %v869, 0
    %964 = vmatprep.subr.mxu0 0.0
    %965 = vmatpush1.msra.mxu0 %v959
    %966 = vmatprep.subr.mxu0 0.0
    %967 = vmatpush1.msra.mxu0 0.0
    %968 = vmatprep.subr.mxu0 0.0
    %969 = vmatpush1.msra.mxu0 0.0
    %970 = vmatprep.subr.mxu0 0.0
    %971 = vmatpush1.msra.mxu0 0.0
    %972 = vmatprep.subr.mxu0 0.0
    %973 = vmatpush1.msra.mxu0 0.0
    %974 = vmatprep.subr.mxu0 0.0
    %975 = vmatpush1.msra.mxu0 0.0
    %976 = vmatprep.subr.mxu0 0.0
    %977 = vmatpush1.msra.mxu0 0.0
    %978 = vmatprep.subr.mxu0 0.0
    %979 = vmatpush1.msra.mxu0 0.0
    %980 = vmatprep.subr.mxu0 0.0
    %981 = vmatpush1.msra.mxu0 0.0
    %982 = vmatprep.subr.mxu0 0.0
    %983 = vmatpush1.msra.mxu0 0.0
    %984 = vmatprep.subr.mxu0 0.0
    %985 = vmatpush1.msra.mxu0 0.0
    %986 = vmatprep.subr.mxu0 0.0
    %987 = vmatpush1.msra.mxu0 0.0
    %988 = vmatprep.subr.mxu0 0.0
    %989 = vmatpush1.msra.mxu0 0.0
    %990 = vmatprep.subr.mxu0 0.0
    %991 = vmatpush1.msra.mxu0 0.0
    %992 = vmatprep.subr.mxu0 0.0
    %993 = vmatpush1.msra.mxu0 0.0
    %994 = vmatprep.subr.mxu0 0.0
    %995 = vmatpush1.msra.mxu0 0.0
    %996 = vmatprep.subr.mxu0 0.0
    %997 = vmatpush1.msra.mxu0 0.0
    %998 = vmatprep.subr.mxu0 0.0
    %999 = vmatpush1.msra.mxu0 0.0
    %1000 = vmatprep.subr.mxu0 0.0
    %1001 = vmatpush1.msra.mxu0 0.0
    %1002 = vmatprep.subr.mxu0 0.0
    %1003 = vmatpush1.msra.mxu0 0.0
    %1004 = vmatprep.subr.mxu0 0.0
    %1005 = vmatpush1.msra.mxu0 0.0
    %1006 = vmatprep.subr.mxu0 0.0
    %1007 = vmatpush1.msra.mxu0 0.0
    %1008 = vmatprep.subr.mxu0 0.0
    %1009 = vmatpush1.msra.mxu0 0.0
    %1010 = vmatprep.subr.mxu0 0.0
    %1011 = vmatpush1.msra.mxu0 0.0
    %1012 = vmatprep.subr.mxu0 0.0
    %1013 = vmatpush1.msra.mxu0 0.0
    %1014 = vmatprep.subr.mxu0 0.0
    %1015 = vmatpush1.msra.mxu0 0.0
    %1016 = vmatprep.subr.mxu0 0.0
    %1017 = vmatpush1.msra.mxu0 0.0
    %1018 = vmatprep.subr.mxu0 0.0
    %1019 = vmatpush1.msra.mxu0 0.0
    %1020 = vmatprep.subr.mxu0 0.0
    %1021 = vmatpush1.msra.mxu0 0.0
    %1022 = vmatprep.subr.mxu0 0.0
    %1023 = vmatpush1.msra.mxu0 0.0
    %1024 = vmatprep.subr.mxu0 0.0
    %1025 = vmatpush1.msra.mxu0 0.0
    %1026 = vmatprep.subr.mxu0 0.0
    %1027 = vmatpush1.msra.mxu0 0.0
    %1028 = vmatprep.mubr.f32.mxu0 0.0
    %1029 = vmatmul.mubr.f32.gmra.mrb[0].mxu0 %v962
    %v1030 = vpop.f32.mrb[0].mxu0
    %v1031 = vadd.f32 0.0, %v1030
    %v1032 = vpop.f32.mrb[0].mxu0
    %1033 = vdwg.mxu0
    %1034 = vrot.lane.b32.xlu0 %v175, 64
    %v1035 = vpop.permute.xlu0 %1034
    %v1038 = vsel %vm187, %v871, 0
    %1040 = vmatprep.subr.mxu0 0.0
    %1041 = vmatpush1.msra.mxu0 %v1035
    %1042 = vmatprep.subr.mxu0 0.0
    %1043 = vmatpush1.msra.mxu0 0.0
    %1044 = vmatprep.subr.mxu0 0.0
    %1045 = vmatpush1.msra.mxu0 0.0
    %1046 = vmatprep.subr.mxu0 0.0
    %1047 = vmatpush1.msra.mxu0 0.0
    %1048 = vmatprep.subr.mxu0 0.0
    %1049 = vmatpush1.msra.mxu0 0.0
    %1050 = vmatprep.subr.mxu0 0.0
    %1051 = vmatpush1.msra.mxu0 0.0
    %1052 = vmatprep.subr.mxu0 0.0
    %1053 = vmatpush1.msra.mxu0 0.0
    %1054 = vmatprep.subr.mxu0 0.0
    %1055 = vmatpush1.msra.mxu0 0.0
    %1056 = vmatprep.subr.mxu0 0.0
    %1057 = vmatpush1.msra.mxu0 0.0
    %1058 = vmatprep.subr.mxu0 0.0
    %1059 = vmatpush1.msra.mxu0 0.0
    %1060 = vmatprep.subr.mxu0 0.0
    %1061 = vmatpush1.msra.mxu0 0.0
    %1062 = vmatprep.subr.mxu0 0.0
    %1063 = vmatpush1.msra.mxu0 0.0
    %1064 = vmatprep.subr.mxu0 0.0
    %1065 = vmatpush1.msra.mxu0 0.0
    %1066 = vmatprep.subr.mxu0 0.0
    %1067 = vmatpush1.msra.mxu0 0.0
    %1068 = vmatprep.subr.mxu0 0.0
    %1069 = vmatpush1.msra.mxu0 0.0
    %1070 = vmatprep.subr.mxu0 0.0
    %1071 = vmatpush1.msra.mxu0 0.0
    %1072 = vmatprep.subr.mxu0 0.0
    %1073 = vmatpush1.msra.mxu0 0.0
    %1074 = vmatprep.subr.mxu0 0.0
    %1075 = vmatpush1.msra.mxu0 0.0
    %1076 = vmatprep.subr.mxu0 0.0
    %1077 = vmatpush1.msra.mxu0 0.0
    %1078 = vmatprep.subr.mxu0 0.0
    %1079 = vmatpush1.msra.mxu0 0.0
    %1080 = vmatprep.subr.mxu0 0.0
    %1081 = vmatpush1.msra.mxu0 0.0
    %1082 = vmatprep.subr.mxu0 0.0
    %1083 = vmatpush1.msra.mxu0 0.0
    %1084 = vmatprep.subr.mxu0 0.0
    %1085 = vmatpush1.msra.mxu0 0.0
    %1086 = vmatprep.subr.mxu0 0.0
    %1087 = vmatpush1.msra.mxu0 0.0
    %1088 = vmatprep.subr.mxu0 0.0
    %1089 = vmatpush1.msra.mxu0 0.0
    %1090 = vmatprep.subr.mxu0 0.0
    %1091 = vmatpush1.msra.mxu0 0.0
    %1092 = vmatprep.subr.mxu0 0.0
    %1093 = vmatpush1.msra.mxu0 0.0
    %1094 = vmatprep.subr.mxu0 0.0
    %1095 = vmatpush1.msra.mxu0 0.0
    %1096 = vmatprep.subr.mxu0 0.0
    %1097 = vmatpush1.msra.mxu0 0.0
    %1098 = vmatprep.subr.mxu0 0.0
    %1099 = vmatpush1.msra.mxu0 0.0
    %1100 = vmatprep.subr.mxu0 0.0
    %1101 = vmatpush1.msra.mxu0 0.0
    %1102 = vmatprep.subr.mxu0 0.0
    %1103 = vmatpush1.msra.mxu0 0.0
    %1104 = vmatprep.mubr.f32.mxu0 0.0
    %1105 = vmatmul.mubr.f32.gmra.mrb[0].mxu0 %v1038
    %v1106 = vpop.f32.mrb[0].mxu0
    %v1107 = vadd.f32 0.0, %v1106
    %v1108 = vpop.f32.mrb[0].mxu0
    %1109 = vdwg.mxu0
    %1110 = vrot.lane.b32.xlu0 %v177, 64
    %v1111 = vpop.permute.xlu0 %1110
    %v1114 = vsel %vm187, %v873, 0
    %1116 = vmatprep.subr.mxu0 0.0
    %1117 = vmatpush1.msra.mxu0 %v1111
    %1118 = vmatprep.subr.mxu0 0.0
    %1119 = vmatpush1.msra.mxu0 0.0
    %1120 = vmatprep.subr.mxu0 0.0
    %1121 = vmatpush1.msra.mxu0 0.0
    %1122 = vmatprep.subr.mxu0 0.0
    %1123 = vmatpush1.msra.mxu0 0.0
    %1124 = vmatprep.subr.mxu0 0.0
    %1125 = vmatpush1.msra.mxu0 0.0
    %1126 = vmatprep.subr.mxu0 0.0
    %1127 = vmatpush1.msra.mxu0 0.0
    %1128 = vmatprep.subr.mxu0 0.0
    %1129 = vmatpush1.msra.mxu0 0.0
    %1130 = vmatprep.subr.mxu0 0.0
    %1131 = vmatpush1.msra.mxu0 0.0
    %1132 = vmatprep.subr.mxu0 0.0
    %1133 = vmatpush1.msra.mxu0 0.0
    %1134 = vmatprep.subr.mxu0 0.0
    %1135 = vmatpush1.msra.mxu0 0.0
    %1136 = vmatprep.subr.mxu0 0.0
    %1137 = vmatpush1.msra.mxu0 0.0
    %1138 = vmatprep.subr.mxu0 0.0
    %1139 = vmatpush1.msra.mxu0 0.0
    %1140 = vmatprep.subr.mxu0 0.0
    %1141 = vmatpush1.msra.mxu0 0.0
    %1142 = vmatprep.subr.mxu0 0.0
    %1143 = vmatpush1.msra.mxu0 0.0
    %1144 = vmatprep.subr.mxu0 0.0
    %1145 = vmatpush1.msra.mxu0 0.0
    %1146 = vmatprep.subr.mxu0 0.0
    %1147 = vmatpush1.msra.mxu0 0.0
    %1148 = vmatprep.subr.mxu0 0.0
    %1149 = vmatpush1.msra.mxu0 0.0
    %1150 = vmatprep.subr.mxu0 0.0
    %1151 = vmatpush1.msra.mxu0 0.0
    %1152 = vmatprep.subr.mxu0 0.0
    %1153 = vmatpush1.msra.mxu0 0.0
    %1154 = vmatprep.subr.mxu0 0.0
    %1155 = vmatpush1.msra.mxu0 0.0
    %1156 = vmatprep.subr.mxu0 0.0
    %1157 = vmatpush1.msra.mxu0 0.0
    %1158 = vmatprep.subr.mxu0 0.0
    %1159 = vmatpush1.msra.mxu0 0.0
    %1160 = vmatprep.subr.mxu0 0.0
    %1161 = vmatpush1.msra.mxu0 0.0
    %1162 = vmatprep.subr.mxu0 0.0
    %1163 = vmatpush1.msra.mxu0 0.0
    %1164 = vmatprep.subr.mxu0 0.0
    %1165 = vmatpush1.msra.mxu0 0.0
    %1166 = vmatprep.subr.mxu0 0.0
    %1167 = vmatpush1.msra.mxu0 0.0
    %1168 = vmatprep.subr.mxu0 0.0
    %1169 = vmatpush1.msra.mxu0 0.0
    %1170 = vmatprep.subr.mxu0 0.0
    %1171 = vmatpush1.msra.mxu0 0.0
    %1172 = vmatprep.subr.mxu0 0.0
    %1173 = vmatpush1.msra.mxu0 0.0
    %1174 = vmatprep.subr.mxu0 0.0
    %1175 = vmatpush1.msra.mxu0 0.0
    %1176 = vmatprep.subr.mxu0 0.0
    %1177 = vmatpush1.msra.mxu0 0.0
    %1178 = vmatprep.subr.mxu0 0.0
    %1179 = vmatpush1.msra.mxu0 0.0
    %1180 = vmatprep.mubr.f32.mxu0 0.0
    %1181 = vmatmul.mubr.f32.gmra.mrb[0].mxu0 %v1114
    %v1182 = vpop.f32.mrb[0].mxu0
    %v1183 = vadd.f32 0.0, %v1182
    %v1184 = vpop.f32.mrb[0].mxu0
    %1185 = vdwg.mxu0
    %1186 = vrot.lane.b32.xlu0 %v168, 64
    %v1187 = vpop.permute.xlu0 %1186
    %v1190 = vsel %vm187, %v875, 0
    %1192 = vmatprep.subr.mxu0 0.0
    %1193 = vmatpush1.msra.mxu0 %v1187
    %1194 = vmatprep.subr.mxu0 0.0
    %1195 = vmatpush1.msra.mxu0 0.0
    %1196 = vmatprep.subr.mxu0 0.0
    %1197 = vmatpush1.msra.mxu0 0.0
    %1198 = vmatprep.subr.mxu0 0.0
    %1199 = vmatpush1.msra.mxu0 0.0
    %1200 = vmatprep.subr.mxu0 0.0
    %1201 = vmatpush1.msra.mxu0 0.0
    %1202 = vmatprep.subr.mxu0 0.0
    %1203 = vmatpush1.msra.mxu0 0.0
    %1204 = vmatprep.subr.mxu0 0.0
    %1205 = vmatpush1.msra.mxu0 0.0
    %1206 = vmatprep.subr.mxu0 0.0
    %1207 = vmatpush1.msra.mxu0 0.0
    %1208 = vmatprep.subr.mxu0 0.0
    %1209 = vmatpush1.msra.mxu0 0.0
    %1210 = vmatprep.subr.mxu0 0.0
    %1211 = vmatpush1.msra.mxu0 0.0
    %1212 = vmatprep.subr.mxu0 0.0
    %1213 = vmatpush1.msra.mxu0 0.0
    %1214 = vmatprep.subr.mxu0 0.0
    %1215 = vmatpush1.msra.mxu0 0.0
    %1216 = vmatprep.subr.mxu0 0.0
    %1217 = vmatpush1.msra.mxu0 0.0
    %1218 = vmatprep.subr.mxu0 0.0
    %1219 = vmatpush1.msra.mxu0 0.0
    %1220 = vmatprep.subr.mxu0 0.0
    %1221 = vmatpush1.msra.mxu0 0.0
    %1222 = vmatprep.subr.mxu0 0.0
    %1223 = vmatpush1.msra.mxu0 0.0
    %1224 = vmatprep.subr.mxu0 0.0
    %1225 = vmatpush1.msra.mxu0 0.0
    %1226 = vmatprep.subr.mxu0 0.0
    %1227 = vmatpush1.msra.mxu0 0.0
    %1228 = vmatprep.subr.mxu0 0.0
    %1229 = vmatpush1.msra.mxu0 0.0
    %1230 = vmatprep.subr.mxu0 0.0
    %1231 = vmatpush1.msra.mxu0 0.0
    %1232 = vmatprep.subr.mxu0 0.0
    %1233 = vmatpush1.msra.mxu0 0.0
    %1234 = vmatprep.subr.mxu0 0.0
    %1235 = vmatpush1.msra.mxu0 0.0
    %1236 = vmatprep.subr.mxu0 0.0
    %1237 = vmatpush1.msra.mxu0 0.0
    %1238 = vmatprep.subr.mxu0 0.0
    %1239 = vmatpush1.msra.mxu0 0.0
    %1240 = vmatprep.subr.mxu0 0.0
    %1241 = vmatpush1.msra.mxu0 0.0
    %1242 = vmatprep.subr.mxu0 0.0
    %1243 = vmatpush1.msra.mxu0 0.0
    %1244 = vmatprep.subr.mxu0 0.0
    %1245 = vmatpush1.msra.mxu0 0.0
    %1246 = vmatprep.subr.mxu0 0.0
    %1247 = vmatpush1.msra.mxu0 0.0
    %1248 = vmatprep.subr.mxu0 0.0
    %1249 = vmatpush1.msra.mxu0 0.0
    %1250 = vmatprep.subr.mxu0 0.0
    %1251 = vmatpush1.msra.mxu0 0.0
    %1252 = vmatprep.subr.mxu0 0.0
    %1253 = vmatpush1.msra.mxu0 0.0
    %1254 = vmatprep.subr.mxu0 0.0
    %1255 = vmatpush1.msra.mxu0 0.0
    %1256 = vmatprep.mubr.f32.mxu0 0.0
    %1257 = vmatmul.mubr.f32.gmra.mrb[0].mxu0 %v1190
    %v1258 = vpop.f32.mrb[0].mxu0
    %v1259 = vadd.f32 0.0, %v1258
    %v1260 = vpop.f32.mrb[0].mxu0
    %1261 = vdwg.mxu0
    %1262 = vrot.lane.b32.xlu0 %v180, 64
    %v1263 = vpop.permute.xlu0 %1262
    %v1266 = vsel %vm187, %v877, 0
    %1268 = vmatprep.subr.mxu0 0.0
    %1269 = vmatpush1.msra.mxu0 %v1263
    %1270 = vmatprep.subr.mxu0 0.0
    %1271 = vmatpush1.msra.mxu0 0.0
    %1272 = vmatprep.subr.mxu0 0.0
    %1273 = vmatpush1.msra.mxu0 0.0
    %1274 = vmatprep.subr.mxu0 0.0
    %1275 = vmatpush1.msra.mxu0 0.0
    %1276 = vmatprep.subr.mxu0 0.0
    %1277 = vmatpush1.msra.mxu0 0.0
    %1278 = vmatprep.subr.mxu0 0.0
    %1279 = vmatpush1.msra.mxu0 0.0
    %1280 = vmatprep.subr.mxu0 0.0
    %1281 = vmatpush1.msra.mxu0 0.0
    %1282 = vmatprep.subr.mxu0 0.0
    %1283 = vmatpush1.msra.mxu0 0.0
    %1284 = vmatprep.subr.mxu0 0.0
    %1285 = vmatpush1.msra.mxu0 0.0
    %1286 = vmatprep.subr.mxu0 0.0
    %1287 = vmatpush1.msra.mxu0 0.0
    %1288 = vmatprep.subr.mxu0 0.0
    %1289 = vmatpush1.msra.mxu0 0.0
    %1290 = vmatprep.subr.mxu0 0.0
    %1291 = vmatpush1.msra.mxu0 0.0
    %1292 = vmatprep.subr.mxu0 0.0
    %1293 = vmatpush1.msra.mxu0 0.0
    %1294 = vmatprep.subr.mxu0 0.0
    %1295 = vmatpush1.msra.mxu0 0.0
    %1296 = vmatprep.subr.mxu0 0.0
    %1297 = vmatpush1.msra.mxu0 0.0
    %1298 = vmatprep.subr.mxu0 0.0
    %1299 = vmatpush1.msra.mxu0 0.0
    %1300 = vmatprep.subr.mxu0 0.0
    %1301 = vmatpush1.msra.mxu0 0.0
    %1302 = vmatprep.subr.mxu0 0.0
    %1303 = vmatpush1.msra.mxu0 0.0
    %1304 = vmatprep.subr.mxu0 0.0
    %1305 = vmatpush1.msra.mxu0 0.0
    %1306 = vmatprep.subr.mxu0 0.0
    %1307 = vmatpush1.msra.mxu0 0.0
    %1308 = vmatprep.subr.mxu0 0.0
    %1309 = vmatpush1.msra.mxu0 0.0
    %1310 = vmatprep.subr.mxu0 0.0
    %1311 = vmatpush1.msra.mxu0 0.0
    %1312 = vmatprep.subr.mxu0 0.0
    %1313 = vmatpush1.msra.mxu0 0.0
    %1314 = vmatprep.subr.mxu0 0.0
    %1315 = vmatpush1.msra.mxu0 0.0
    %1316 = vmatprep.subr.mxu0 0.0
    %1317 = vmatpush1.msra.mxu0 0.0
    %1318 = vmatprep.subr.mxu0 0.0
    %1319 = vmatpush1.msra.mxu0 0.0
    %1320 = vmatprep.subr.mxu0 0.0
    %1321 = vmatpush1.msra.mxu0 0.0
    %1322 = vmatprep.subr.mxu0 0.0
    %1323 = vmatpush1.msra.mxu0 0.0
    %1324 = vmatprep.subr.mxu0 0.0
    %1325 = vmatpush1.msra.mxu0 0.0
    %1326 = vmatprep.subr.mxu0 0.0
    %1327 = vmatpush1.msra.mxu0 0.0
    %1328 = vmatprep.subr.mxu0 0.0
    %1329 = vmatpush1.msra.mxu0 0.0
    %1330 = vmatprep.subr.mxu0 0.0
    %1331 = vmatpush1.msra.mxu0 0.0
    %1332 = vmatprep.mubr.f32.mxu0 0.0
    %1333 = vmatmul.mubr.f32.gmra.mrb[0].mxu0 %v1266
    %v1334 = vpop.f32.mrb[0].mxu0
    %v1335 = vadd.f32 0.0, %v1334
    %v1336 = vpop.f32.mrb[0].mxu0
    %1337 = vdwg.mxu0
    %1338 = vrot.lane.b32.xlu0 %v182, 64
    %v1339 = vpop.permute.xlu0 %1338
    %v1342 = vsel %vm187, %v879, 0
    %1344 = vmatprep.subr.mxu0 0.0
    %1345 = vmatpush1.msra.mxu0 %v1339
    %1346 = vmatprep.subr.mxu0 0.0
    %1347 = vmatpush1.msra.mxu0 0.0
    %1348 = vmatprep.subr.mxu0 0.0
    %1349 = vmatpush1.msra.mxu0 0.0
    %1350 = vmatprep.subr.mxu0 0.0
    %1351 = vmatpush1.msra.mxu0 0.0
    %1352 = vmatprep.subr.mxu0 0.0
    %1353 = vmatpush1.msra.mxu0 0.0
    %1354 = vmatprep.subr.mxu0 0.0
    %1355 = vmatpush1.msra.mxu0 0.0
    %1356 = vmatprep.subr.mxu0 0.0
    %1357 = vmatpush1.msra.mxu0 0.0
    %1358 = vmatprep.subr.mxu0 0.0
    %1359 = vmatpush1.msra.mxu0 0.0
    %1360 = vmatprep.subr.mxu0 0.0
    %1361 = vmatpush1.msra.mxu0 0.0
    %1362 = vmatprep.subr.mxu0 0.0
    %1363 = vmatpush1.msra.mxu0 0.0
    %1364 = vmatprep.subr.mxu0 0.0
    %1365 = vmatpush1.msra.mxu0 0.0
    %1366 = vmatprep.subr.mxu0 0.0
    %1367 = vmatpush1.msra.mxu0 0.0
    %1368 = vmatprep.subr.mxu0 0.0
    %1369 = vmatpush1.msra.mxu0 0.0
    %1370 = vmatprep.subr.mxu0 0.0
    %1371 = vmatpush1.msra.mxu0 0.0
    %1372 = vmatprep.subr.mxu0 0.0
    %1373 = vmatpush1.msra.mxu0 0.0
    %1374 = vmatprep.subr.mxu0 0.0
    %1375 = vmatpush1.msra.mxu0 0.0
    %1376 = vmatprep.subr.mxu0 0.0
    %1377 = vmatpush1.msra.mxu0 0.0
    %1378 = vmatprep.subr.mxu0 0.0
    %1379 = vmatpush1.msra.mxu0 0.0
    %1380 = vmatprep.subr.mxu0 0.0
    %1381 = vmatpush1.msra.mxu0 0.0
    %1382 = vmatprep.subr.mxu0 0.0
    %1383 = vmatpush1.msra.mxu0 0.0
    %1384 = vmatprep.subr.mxu0 0.0
    %1385 = vmatpush1.msra.mxu0 0.0
    %1386 = vmatprep.subr.mxu0 0.0
    %1387 = vmatpush1.msra.mxu0 0.0
    %1388 = vmatprep.subr.mxu0 0.0
    %1389 = vmatpush1.msra.mxu0 0.0
    %1390 = vmatprep.subr.mxu0 0.0
    %1391 = vmatpush1.msra.mxu0 0.0
    %1392 = vmatprep.subr.mxu0 0.0
    %1393 = vmatpush1.msra.mxu0 0.0
    %1394 = vmatprep.subr.mxu0 0.0
    %1395 = vmatpush1.msra.mxu0 0.0
    %1396 = vmatprep.subr.mxu0 0.0
    %1397 = vmatpush1.msra.mxu0 0.0
    %1398 = vmatprep.subr.mxu0 0.0
    %1399 = vmatpush1.msra.mxu0 0.0
    %1400 = vmatprep.subr.mxu0 0.0
    %1401 = vmatpush1.msra.mxu0 0.0
    %1402 = vmatprep.subr.mxu0 0.0
    %1403 = vmatpush1.msra.mxu0 0.0
    %1404 = vmatprep.subr.mxu0 0.0
    %1405 = vmatpush1.msra.mxu0 0.0
    %1406 = vmatprep.subr.mxu0 0.0
    %1407 = vmatpush1.msra.mxu0 0.0
    %1408 = vmatprep.mubr.f32.mxu0 0.0
    %1409 = vmatmul.mubr.f32.gmra.mrb[0].mxu0 %v1342
    %v1410 = vpop.f32.mrb[0].mxu0
    %v1411 = vadd.f32 0.0, %v1410
    %v1412 = vpop.f32.mrb[0].mxu0
    %1413 = vdwg.mxu0
    %1414 = vrot.lane.b32.xlu0 %v184, 64
    %v1415 = vpop.permute.xlu0 %1414
    %v1418 = vsel %vm187, %v881, 0
    %1420 = vmatprep.subr.mxu0 0.0
    %1421 = vmatpush1.msra.mxu0 %v1415
    %1422 = vmatprep.subr.mxu0 0.0
    %1423 = vmatpush1.msra.mxu0 0.0
    %1424 = vmatprep.subr.mxu0 0.0
    %1425 = vmatpush1.msra.mxu0 0.0
    %1426 = vmatprep.subr.mxu0 0.0
    %1427 = vmatpush1.msra.mxu0 0.0
    %1428 = vmatprep.subr.mxu0 0.0
    %1429 = vmatpush1.msra.mxu0 0.0
    %1430 = vmatprep.subr.mxu0 0.0
    %1431 = vmatpush1.msra.mxu0 0.0
    %1432 = vmatprep.subr.mxu0 0.0
    %1433 = vmatpush1.msra.mxu0 0.0
    %1434 = vmatprep.subr.mxu0 0.0
    %1435 = vmatpush1.msra.mxu0 0.0
    %1436 = vmatprep.subr.mxu0 0.0
    %1437 = vmatpush1.msra.mxu0 0.0
    %1438 = vmatprep.subr.mxu0 0.0
    %1439 = vmatpush1.msra.mxu0 0.0
    %1440 = vmatprep.subr.mxu0 0.0
    %1441 = vmatpush1.msra.mxu0 0.0
    %1442 = vmatprep.subr.mxu0 0.0
    %1443 = vmatpush1.msra.mxu0 0.0
    %1444 = vmatprep.subr.mxu0 0.0
    %1445 = vmatpush1.msra.mxu0 0.0
    %1446 = vmatprep.subr.mxu0 0.0
    %1447 = vmatpush1.msra.mxu0 0.0
    %1448 = vmatprep.subr.mxu0 0.0
    %1449 = vmatpush1.msra.mxu0 0.0
    %1450 = vmatprep.subr.mxu0 0.0
    %1451 = vmatpush1.msra.mxu0 0.0
    %1452 = vmatprep.subr.mxu0 0.0
    %1453 = vmatpush1.msra.mxu0 0.0
    %1454 = vmatprep.subr.mxu0 0.0
    %1455 = vmatpush1.msra.mxu0 0.0
    %1456 = vmatprep.subr.mxu0 0.0
    %1457 = vmatpush1.msra.mxu0 0.0
    %1458 = vmatprep.subr.mxu0 0.0
    %1459 = vmatpush1.msra.mxu0 0.0
    %1460 = vmatprep.subr.mxu0 0.0
    %1461 = vmatpush1.msra.mxu0 0.0
    %1462 = vmatprep.subr.mxu0 0.0
    %1463 = vmatpush1.msra.mxu0 0.0
    %1464 = vmatprep.subr.mxu0 0.0
    %1465 = vmatpush1.msra.mxu0 0.0
    %1466 = vmatprep.subr.mxu0 0.0
    %1467 = vmatpush1.msra.mxu0 0.0
    %1468 = vmatprep.subr.mxu0 0.0
    %1469 = vmatpush1.msra.mxu0 0.0
    %1470 = vmatprep.subr.mxu0 0.0
    %1471 = vmatpush1.msra.mxu0 0.0
    %1472 = vmatprep.subr.mxu0 0.0
    %1473 = vmatpush1.msra.mxu0 0.0
    %1474 = vmatprep.subr.mxu0 0.0
    %1475 = vmatpush1.msra.mxu0 0.0
    %1476 = vmatprep.subr.mxu0 0.0
    %1477 = vmatpush1.msra.mxu0 0.0
    %1478 = vmatprep.subr.mxu0 0.0
    %1479 = vmatpush1.msra.mxu0 0.0
    %1480 = vmatprep.subr.mxu0 0.0
    %1481 = vmatpush1.msra.mxu0 0.0
    %1482 = vmatprep.subr.mxu0 0.0
    %1483 = vmatpush1.msra.mxu0 0.0
    %1484 = vmatprep.mubr.f32.mxu0 0.0
    %1485 = vmatmul.mubr.f32.gmra.mrb[0].mxu0 %v1418
    %v1486 = vpop.f32.mrb[0].mxu0
    %v1487 = vadd.f32 0.0, %v1486
    %v1488 = vpop.f32.mrb[0].mxu0
    %1489 = vdwg.mxu0
    %1491 = vrot.lane.b32.xlu0 %v1031, 8
    %v1492 = vpop.permute.xlu0 %1491
    %1495 = vrot.lane.b32.xlu0 %v1107, 16
    %v1496 = vpop.permute.xlu0 %1495
    %1499 = vrot.lane.b32.xlu0 %v1183, 24
    %v1500 = vpop.permute.xlu0 %1499
    %v1502 = vsel %vm187, %v955, %v1492
    %vm1503 = vcmask 130048
    %v1504 = vsel %vm1503, %v1502, %v1496
    %vm1505 = vcmask 195584
    %v1506 = vsel %vm1505, %v1504, %v1500
    %1508 = vrot.lane.b32.xlu0 %v1335, 8
    %v1509 = vpop.permute.xlu0 %1508
    %1512 = vrot.lane.b32.xlu0 %v1411, 16
    %v1513 = vpop.permute.xlu0 %1512
    %1516 = vrot.lane.b32.xlu0 %v1487, 24
    %v1517 = vpop.permute.xlu0 %1516
    %v1519 = vsel %vm187, %v1259, %v1509
    %v1520 = vsel %vm1503, %v1519, %v1513
    %v1521 = vsel %vm1505, %v1520, %v1517
    %v1522 = vld [vmem:[%s4] sm:$0xff]
    %v1523 = vld [vmem:[%s4 + $0x8] sm:$0xff]
    %v1524 = vld [vmem:[%s4 + $0x10] sm:$0xff]
    %v1525 = vld [vmem:[%s4 + $0x18] sm:$0xff]
    %v1527 = vsel %vm39, %v1506, 0
    %v1530 = vsel %vm39, %v1521, 0
    %1532 = vmatprep.subr.mxu0 0.0
    %1533 = vmatpush1.msra.mxu0 %v1522
    %1534 = vmatprep.subr.mxu0 0.0
    %1535 = vmatpush1.msra.mxu0 %v1523
    %1536 = vmatprep.subr.mxu0 0.0
    %1537 = vmatpush1.msra.mxu0 %v1524
    %1538 = vmatprep.subr.mxu0 0.0
    %1539 = vmatpush1.msra.mxu0 %v1525
    %1540 = vmatprep.subr.mxu0 0.0
    %1541 = vmatpush1.msra.mxu0 0.0
    %1542 = vmatprep.subr.mxu0 0.0
    %1543 = vmatpush1.msra.mxu0 0.0
    %1544 = vmatprep.subr.mxu0 0.0
    %1545 = vmatpush1.msra.mxu0 0.0
    %1546 = vmatprep.subr.mxu0 0.0
    %1547 = vmatpush1.msra.mxu0 0.0
    %1548 = vmatprep.subr.mxu0 0.0
    %1549 = vmatpush1.msra.mxu0 0.0
    %1550 = vmatprep.subr.mxu0 0.0
    %1551 = vmatpush1.msra.mxu0 0.0
    %1552 = vmatprep.subr.mxu0 0.0
    %1553 = vmatpush1.msra.mxu0 0.0
    %1554 = vmatprep.subr.mxu0 0.0
    %1555 = vmatpush1.msra.mxu0 0.0
    %1556 = vmatprep.subr.mxu0 0.0
    %1557 = vmatpush1.msra.mxu0 0.0
    %1558 = vmatprep.subr.mxu0 0.0
    %1559 = vmatpush1.msra.mxu0 0.0
    %1560 = vmatprep.subr.mxu0 0.0
    %1561 = vmatpush1.msra.mxu0 0.0
    %1562 = vmatprep.subr.mxu0 0.0
    %1563 = vmatpush1.msra.mxu0 0.0
    %1564 = vmatprep.subr.mxu0 0.0
    %1565 = vmatpush1.msra.mxu0 0.0
    %1566 = vmatprep.subr.mxu0 0.0
    %1567 = vmatpush1.msra.mxu0 0.0
    %1568 = vmatprep.subr.mxu0 0.0
    %1569 = vmatpush1.msra.mxu0 0.0
    %1570 = vmatprep.subr.mxu0 0.0
    %1571 = vmatpush1.msra.mxu0 0.0
    %1572 = vmatprep.subr.mxu0 0.0
    %1573 = vmatpush1.msra.mxu0 0.0
    %1574 = vmatprep.subr.mxu0 0.0
    %1575 = vmatpush1.msra.mxu0 0.0
    %1576 = vmatprep.subr.mxu0 0.0
    %1577 = vmatpush1.msra.mxu0 0.0
    %1578 = vmatprep.subr.mxu0 0.0
    %1579 = vmatpush1.msra.mxu0 0.0
    %1580 = vmatprep.subr.mxu0 0.0
    %1581 = vmatpush1.msra.mxu0 0.0
    %1582 = vmatprep.subr.mxu0 0.0
    %1583 = vmatpush1.msra.mxu0 0.0
    %1584 = vmatprep.subr.mxu0 0.0
    %1585 = vmatpush1.msra.mxu0 0.0
    %1586 = vmatprep.subr.mxu0 0.0
    %1587 = vmatpush1.msra.mxu0 0.0
    %1588 = vmatprep.subr.mxu0 0.0
    %1589 = vmatpush1.msra.mxu0 0.0
    %1590 = vmatprep.subr.mxu0 0.0
    %1591 = vmatpush1.msra.mxu0 0.0
    %1592 = vmatprep.subr.mxu0 0.0
    %1593 = vmatpush1.msra.mxu0 0.0
    %1594 = vmatprep.subr.mxu0 0.0
    %1595 = vmatpush1.msra.mxu0 0.0
    %1596 = vmatprep.mubr.f32.mxu0 0.0
    %1597 = vmatmul.mubr.f32.gmra.mrb[0].mxu0 %v1527
    %v1598 = vpop.f32.mrb[0].mxu0
    %v1599 = vadd.f32 0.0, %v1598
    %v1600 = vpop.f32.mrb[0].mxu0
    %1601 = vmatprep.mubr.f32.mxu0 0.0
    %1602 = vmatmul.mubr.f32.gmra.mrb[0].mxu0 %v1530
    %v1603 = vpop.f32.mrb[0].mxu0
    %v1604 = vadd.f32 0.0, %v1603
    %v1605 = vpop.f32.mrb[0].mxu0
    %1606 = vdwg.mxu0
    %v1607 = vadd.f32 %v36, %v1599
    %v1608 = vadd.f32 %v37, %v1604
    %v1609 = vlaneseq
    %v1610 = vshrl.u32 %v1609, 7
    %v1611 = vsub.s32 4, %v1610
    %v1612 = vrot.slane %v38, %v1611
    %v1613 = vadd.f32 %v1607, %v1612
    %v1614 = vadd.f32 %v1608, %v1612
    %v1615 = vsel %vm39, %v1613, 0.0
    %1616 = vadd.xlane.f32.xlu0 %v1615
    %v1617 = vpop.xlane.xlu0 %1616
    %v1618 = vsel %vm39, %v1614, 0.0
    %1619 = vadd.xlane.f32.xlu0 %v1618
    %v1620 = vpop.xlane.xlu0 %1619
    %v1621 = vmul.f32 %v1617, %v46
    %v1622 = vmul.f32 %v1620, %v46
    %v1623 = vsub.f32 %v1613, %v1621
    %v1624 = vsub.f32 %v1614, %v1622
    %v1625 = vmul.f32 %v1623, %v1623
    %v1626 = vmul.f32 %v1624, %v1624
    %v1627 = vsel %vm39, %v1625, 0.0
    %1628 = vadd.xlane.f32.xlu0 %v1627
    %v1629 = vpop.xlane.xlu0 %1628
    %v1630 = vsel %vm39, %v1626, 0.0
    %1631 = vadd.xlane.f32.xlu0 %v1630
    %v1632 = vpop.xlane.xlu0 %1631
    %v1633 = vmul.f32 %v1629, %v46
    %v1634 = vmul.f32 %v1632, %v46
    %v1635 = vadd.f32 %v1633, 1e-05
    %v1636 = vadd.f32 %v1634, 1e-05
    %v1637 = vrsqrt.pop %v1635
    %v1638 = vrsqrt.pop %v1636
    %v1639 = vmul.f32 %v1623, %v1637
    %v1640 = vmul.f32 %v1624, %v1638
    %v1641 = vlaneseq
    %v1642 = vshrl.u32 %v1641, 7
    %v1643 = vsub.s32 2, %v1642
    %v1644 = vrot.slane %v38, %v1643
    %v1645 = vmul.f32 %v1639, %v1644
    %v1646 = vmul.f32 %v1640, %v1644
    %v1647 = vlaneseq
    %v1648 = vshrl.u32 %v1647, 7
    %v1649 = vsub.s32 3, %v1648
    %v1650 = vrot.slane %v38, %v1649
    %v1651 = vadd.f32 %v1645, %v1650
    %v1652 = vadd.f32 %v1646, %v1650
    %v1653 = vld [vmem:[%s5] sm:$0xff]
    %v1654 = vld [vmem:[%s5 + $0x8] sm:$0xff]
    %v1655 = vld [vmem:[%s5 + $0x10] sm:$0xff]
    %v1656 = vld [vmem:[%s5 + $0x18] sm:$0xff]
    %v1657 = vld [vmem:[%s6] sm:$0x1]
    %v1659 = vlaneseq
    %v1660 = vshrl.u32 %v1659, 7
    %v1661 = vsub.s32 0, %v1660
    %v1662 = vrot.slane %v1657, %v1661
    %v1665 = vsel %vm39, %v1651, 0
    %v1668 = vsel %vm39, %v1652, 0
    %1670 = vmatprep.subr.mxu0 0.0
    %1671 = vmatpush1.msra.mxu0 %v1653
    %1672 = vmatprep.subr.mxu0 0.0
    %1673 = vmatpush1.msra.mxu0 %v1654
    %1674 = vmatprep.subr.mxu0 0.0
    %1675 = vmatpush1.msra.mxu0 %v1655
    %1676 = vmatprep.subr.mxu0 0.0
    %1677 = vmatpush1.msra.mxu0 %v1656
    %1678 = vmatprep.subr.mxu0 0.0
    %1679 = vmatpush1.msra.mxu0 0.0
    %1680 = vmatprep.subr.mxu0 0.0
    %1681 = vmatpush1.msra.mxu0 0.0
    %1682 = vmatprep.subr.mxu0 0.0
    %1683 = vmatpush1.msra.mxu0 0.0
    %1684 = vmatprep.subr.mxu0 0.0
    %1685 = vmatpush1.msra.mxu0 0.0
    %1686 = vmatprep.subr.mxu0 0.0
    %1687 = vmatpush1.msra.mxu0 0.0
    %1688 = vmatprep.subr.mxu0 0.0
    %1689 = vmatpush1.msra.mxu0 0.0
    %1690 = vmatprep.subr.mxu0 0.0
    %1691 = vmatpush1.msra.mxu0 0.0
    %1692 = vmatprep.subr.mxu0 0.0
    %1693 = vmatpush1.msra.mxu0 0.0
    %1694 = vmatprep.subr.mxu0 0.0
    %1695 = vmatpush1.msra.mxu0 0.0
    %1696 = vmatprep.subr.mxu0 0.0
    %1697 = vmatpush1.msra.mxu0 0.0
    %1698 = vmatprep.subr.mxu0 0.0
    %1699 = vmatpush1.msra.mxu0 0.0
    %1700 = vmatprep.subr.mxu0 0.0
    %1701 = vmatpush1.msra.mxu0 0.0
    %1702 = vmatprep.subr.mxu0 0.0
    %1703 = vmatpush1.msra.mxu0 0.0
    %1704 = vmatprep.subr.mxu0 0.0
    %1705 = vmatpush1.msra.mxu0 0.0
    %1706 = vmatprep.subr.mxu0 0.0
    %1707 = vmatpush1.msra.mxu0 0.0
    %1708 = vmatprep.subr.mxu0 0.0
    %1709 = vmatpush1.msra.mxu0 0.0
    %1710 = vmatprep.subr.mxu0 0.0
    %1711 = vmatpush1.msra.mxu0 0.0
    %1712 = vmatprep.subr.mxu0 0.0
    %1713 = vmatpush1.msra.mxu0 0.0
    %1714 = vmatprep.subr.mxu0 0.0
    %1715 = vmatpush1.msra.mxu0 0.0
    %1716 = vmatprep.subr.mxu0 0.0
    %1717 = vmatpush1.msra.mxu0 0.0
    %1718 = vmatprep.subr.mxu0 0.0
    %1719 = vmatpush1.msra.mxu0 0.0
    %1720 = vmatprep.subr.mxu0 0.0
    %1721 = vmatpush1.msra.mxu0 0.0
    %1722 = vmatprep.subr.mxu0 0.0
    %1723 = vmatpush1.msra.mxu0 0.0
    %1724 = vmatprep.subr.mxu0 0.0
    %1725 = vmatpush1.msra.mxu0 0.0
    %1726 = vmatprep.subr.mxu0 0.0
    %1727 = vmatpush1.msra.mxu0 0.0
    %1728 = vmatprep.subr.mxu0 0.0
    %1729 = vmatpush1.msra.mxu0 0.0
    %1730 = vmatprep.subr.mxu0 0.0
    %1731 = vmatpush1.msra.mxu0 0.0
    %1732 = vmatprep.subr.mxu0 0.0
    %1733 = vmatpush1.msra.mxu0 0.0
    %1734 = vmatprep.mubr.f32.mxu0 0.0
    %1735 = vmatmul.mubr.f32.gmra.mrb[0].mxu0 %v1665
    %v1736 = vpop.f32.mrb[0].mxu0
    %v1737 = vadd.f32 %v1662, %v1736
    %v1738 = vpop.f32.mrb[0].mxu0
    %1739 = vmatprep.mubr.f32.mxu0 0.0
    %1740 = vmatmul.mubr.f32.gmra.mrb[0].mxu0 %v1668
    %v1741 = vpop.f32.mrb[0].mxu0
    %v1742 = vadd.f32 %v1662, %v1741
    %v1743 = vpop.f32.mrb[0].mxu0
    %1744 = vdwg.mxu0
    %v1745 = vmax.f32 %v1737, 0.0
    %v1746 = vmax.f32 %v1742, 0.0
    %v1747 = vld [vmem:[%s7] sm:$0xff]
    %v1748 = vld [vmem:[%s7 + $0x8] sm:$0xff]
    %v1749 = vld [vmem:[%s7 + $0x10] sm:$0xff]
    %v1750 = vld [vmem:[%s7 + $0x18] sm:$0xff]
    %v1751 = vld [vmem:[%s7 + $0x20] sm:$0xff]
    %v1752 = vld [vmem:[%s7 + $0x28] sm:$0xff]
    %v1753 = vld [vmem:[%s7 + $0x30] sm:$0xff]
    %v1754 = vld [vmem:[%s7 + $0x38] sm:$0xff]
    %vm1755 = vcmask 523264
    %v1757 = vsel %vm1755, %v1745, 0
    %v1760 = vsel %vm1755, %v1746, 0
    %1762 = vmatprep.subr.mxu0 0.0
    %1763 = vmatpush1.msra.mxu0 %v1747
    %1764 = vmatprep.subr.mxu0 0.0
    %1765 = vmatpush1.msra.mxu0 %v1748
    %1766 = vmatprep.subr.mxu0 0.0
    %1767 = vmatpush1.msra.mxu0 %v1749
    %1768 = vmatprep.subr.mxu0 0.0
    %1769 = vmatpush1.msra.mxu0 %v1750
    %1770 = vmatprep.subr.mxu0 0.0
    %1771 = vmatpush1.msra.mxu0 %v1751
    %1772 = vmatprep.subr.mxu0 0.0
    %1773 = vmatpush1.msra.mxu0 %v1752
    %1774 = vmatprep.subr.mxu0 0.0
    %1775 = vmatpush1.msra.mxu0 %v1753
    %1776 = vmatprep.subr.mxu0 0.0
    %1777 = vmatpush1.msra.mxu0 %v1754
    %1778 = vmatprep.subr.mxu0 0.0
    %1779 = vmatpush1.msra.mxu0 0.0
    %1780 = vmatprep.subr.mxu0 0.0
    %1781 = vmatpush1.msra.mxu0 0.0
    %1782 = vmatprep.subr.mxu0 0.0
    %1783 = vmatpush1.msra.mxu0 0.0
    %1784 = vmatprep.subr.mxu0 0.0
    %1785 = vmatpush1.msra.mxu0 0.0
    %1786 = vmatprep.subr.mxu0 0.0
    %1787 = vmatpush1.msra.mxu0 0.0
    %1788 = vmatprep.subr.mxu0 0.0
    %1789 = vmatpush1.msra.mxu0 0.0
    %1790 = vmatprep.subr.mxu0 0.0
    %1791 = vmatpush1.msra.mxu0 0.0
    %1792 = vmatprep.subr.mxu0 0.0
    %1793 = vmatpush1.msra.mxu0 0.0
    %1794 = vmatprep.subr.mxu0 0.0
    %1795 = vmatpush1.msra.mxu0 0.0
    %1796 = vmatprep.subr.mxu0 0.0
    %1797 = vmatpush1.msra.mxu0 0.0
    %1798 = vmatprep.subr.mxu0 0.0
    %1799 = vmatpush1.msra.mxu0 0.0
    %1800 = vmatprep.subr.mxu0 0.0
    %1801 = vmatpush1.msra.mxu0 0.0
    %1802 = vmatprep.subr.mxu0 0.0
    %1803 = vmatpush1.msra.mxu0 0.0
    %1804 = vmatprep.subr.mxu0 0.0
    %1805 = vmatpush1.msra.mxu0 0.0
    %1806 = vmatprep.subr.mxu0 0.0
    %1807 = vmatpush1.msra.mxu0 0.0
    %1808 = vmatprep.subr.mxu0 0.0
    %1809 = vmatpush1.msra.mxu0 0.0
    %1810 = vmatprep.subr.mxu0 0.0
    %1811 = vmatpush1.msra.mxu0 0.0
    %1812 = vmatprep.subr.mxu0 0.0
    %1813 = vmatpush1.msra.mxu0 0.0
    %1814 = vmatprep.subr.mxu0 0.0
    %1815 = vmatpush1.msra.mxu0 0.0
    %1816 = vmatprep.subr.mxu0 0.0
    %1817 = vmatpush1.msra.mxu0 0.0
    %1818 = vmatprep.subr.mxu0 0.0
    %1819 = vmatpush1.msra.mxu0 0.0
    %1820 = vmatprep.subr.mxu0 0.0
    %1821 = vmatpush1.msra.mxu0 0.0
    %1822 = vmatprep.subr.mxu0 0.0
    %1823 = vmatpush1.msra.mxu0 0.0
    %1824 = vmatprep.subr.mxu0 0.0
    %1825 = vmatpush1.msra.mxu0 0.0
    %1826 = vmatprep.mubr.f32.mxu0 0.0
    %1827 = vmatmul.mubr.f32.gmra.mrb[0].mxu0 %v1757
    %v1828 = vpop.f32.mrb[0].mxu0
    %v1829 = vadd.f32 0.0, %v1828
    %v1830 = vpop.f32.mrb[0].mxu0
    %1831 = vmatprep.mubr.f32.mxu0 0.0
    %1832 = vmatmul.mubr.f32.gmra.mrb[0].mxu0 %v1760
    %v1833 = vpop.f32.mrb[0].mxu0
    %v1834 = vadd.f32 0.0, %v1833
    %v1835 = vpop.f32.mrb[0].mxu0
    %1836 = vdwg.mxu0
    %v1837 = vadd.f32 %v1613, %v1829
    %v1838 = vadd.f32 %v1614, %v1834
    %v1839 = vlaneseq
    %v1840 = vshrl.u32 %v1839, 7
    %v1841 = vsub.s32 5, %v1840
    %v1842 = vrot.slane %v38, %v1841
    %v1843 = vadd.f32 %v1837, %v1842
    %v1844 = vadd.f32 %v1838, %v1842
    %s1845 = scalar_lea.vmem %s1, 8
    %v1846 = vld [vmem:[%s1845] sm:$0x3f]
    %v1847 = vsel %vm39, %v1843, 0.0
    %1848 = vadd.xlane.f32.xlu0 %v1847
    %v1849 = vpop.xlane.xlu0 %1848
    %v1850 = vsel %vm39, %v1844, 0.0
    %1851 = vadd.xlane.f32.xlu0 %v1850
    %v1852 = vpop.xlane.xlu0 %1851
    %v1853 = vmul.f32 %v1849, %v46
    %v1854 = vmul.f32 %v1852, %v46
    %v1855 = vsub.f32 %v1843, %v1853
    %v1856 = vsub.f32 %v1844, %v1854
    %v1857 = vmul.f32 %v1855, %v1855
    %v1858 = vmul.f32 %v1856, %v1856
    %v1859 = vsel %vm39, %v1857, 0.0
    %1860 = vadd.xlane.f32.xlu0 %v1859
    %v1861 = vpop.xlane.xlu0 %1860
    %v1862 = vsel %vm39, %v1858, 0.0
    %1863 = vadd.xlane.f32.xlu0 %v1862
    %v1864 = vpop.xlane.xlu0 %1863
    %v1865 = vmul.f32 %v1861, %v46
    %v1866 = vmul.f32 %v1864, %v46
    %v1867 = vadd.f32 %v1865, 1e-05
    %v1868 = vadd.f32 %v1866, 1e-05
    %v1869 = vrsqrt.pop %v1867
    %v1870 = vrsqrt.pop %v1868
    %v1871 = vmul.f32 %v1855, %v1869
    %v1872 = vmul.f32 %v1856, %v1870
    %v1873 = vlaneseq
    %v1874 = vshrl.u32 %v1873, 7
    %v1875 = vsub.s32 0, %v1874
    %v1876 = vrot.slane %v1846, %v1875
    %v1877 = vmul.f32 %v1871, %v1876
    %v1878 = vmul.f32 %v1872, %v1876
    %v1879 = vlaneseq
    %v1880 = vshrl.u32 %v1879, 7
    %v1881 = vsub.s32 1, %v1880
    %v1882 = vrot.slane %v1846, %v1881
    %v1883 = vadd.f32 %v1877, %v1882
    %v1884 = vadd.f32 %v1878, %v1882
    %s1885 = scalar_lea.vmem %s2, 32
    %v1886 = vld [vmem:[%s1885] sm:$0xff]
    %v1887 = vld [vmem:[%s1885 + $0x8] sm:$0xff]
    %v1888 = vld [vmem:[%s1885 + $0x10] sm:$0xff]
    %v1889 = vld [vmem:[%s1885 + $0x18] sm:$0xff]
    %s1890 = scalar_lea.vmem %s3, 1
    %v1891 = vld [vmem:[%s1890] sm:$0x1]
    %v1893 = vlaneseq
    %v1894 = vshrl.u32 %v1893, 7
    %v1895 = vsub.s32 0, %v1894
    %v1896 = vrot.slane %v1891, %v1895
    %v1899 = vsel %vm39, %v1883, 0
    %v1902 = vsel %vm39, %v1884, 0
    %1904 = vmatprep.subr.mxu0 0.0
    %1905 = vmatpush1.msra.mxu0 %v1886
    %1906 = vmatprep.subr.mxu0 0.0
    %1907 = vmatpush1.msra.mxu0 %v1887
    %1908 = vmatprep.subr.mxu0 0.0
    %1909 = vmatpush1.msra.mxu0 %v1888
    %1910 = vmatprep.subr.mxu0 0.0
    %1911 = vmatpush1.msra.mxu0 %v1889
    %1912 = vmatprep.subr.mxu0 0.0
    %1913 = vmatpush1.msra.mxu0 0.0
    %1914 = vmatprep.subr.mxu0 0.0
    %1915 = vmatpush1.msra.mxu0 0.0
    %1916 = vmatprep.subr.mxu0 0.0
    %1917 = vmatpush1.msra.mxu0 0.0
    %1918 = vmatprep.subr.mxu0 0.0
    %1919 = vmatpush1.msra.mxu0 0.0
    %1920 = vmatprep.subr.mxu0 0.0
    %1921 = vmatpush1.msra.mxu0 0.0
    %1922 = vmatprep.subr.mxu0 0.0
    %1923 = vmatpush1.msra.mxu0 0.0
    %1924 = vmatprep.subr.mxu0 0.0
    %1925 = vmatpush1.msra.mxu0 0.0
    %1926 = vmatprep.subr.mxu0 0.0
    %1927 = vmatpush1.msra.mxu0 0.0
    %1928 = vmatprep.subr.mxu0 0.0
    %1929 = vmatpush1.msra.mxu0 0.0
    %1930 = vmatprep.subr.mxu0 0.0
    %1931 = vmatpush1.msra.mxu0 0.0
    %1932 = vmatprep.subr.mxu0 0.0
    %1933 = vmatpush1.msra.mxu0 0.0
    %1934 = vmatprep.subr.mxu0 0.0
    %1935 = vmatpush1.msra.mxu0 0.0
    %1936 = vmatprep.subr.mxu0 0.0
    %1937 = vmatpush1.msra.mxu0 0.0
    %1938 = vmatprep.subr.mxu0 0.0
    %1939 = vmatpush1.msra.mxu0 0.0
    %1940 = vmatprep.subr.mxu0 0.0
    %1941 = vmatpush1.msra.mxu0 0.0
    %1942 = vmatprep.subr.mxu0 0.0
    %1943 = vmatpush1.msra.mxu0 0.0
    %1944 = vmatprep.subr.mxu0 0.0
    %1945 = vmatpush1.msra.mxu0 0.0
    %1946 = vmatprep.subr.mxu0 0.0
    %1947 = vmatpush1.msra.mxu0 0.0
    %1948 = vmatprep.subr.mxu0 0.0
    %1949 = vmatpush1.msra.mxu0 0.0
    %1950 = vmatprep.subr.mxu0 0.0
    %1951 = vmatpush1.msra.mxu0 0.0
    %1952 = vmatprep.subr.mxu0 0.0
    %1953 = vmatpush1.msra.mxu0 0.0
    %1954 = vmatprep.subr.mxu0 0.0
    %1955 = vmatpush1.msra.mxu0 0.0
    %1956 = vmatprep.subr.mxu0 0.0
    %1957 = vmatpush1.msra.mxu0 0.0
    %1958 = vmatprep.subr.mxu0 0.0
    %1959 = vmatpush1.msra.mxu0 0.0
    %1960 = vmatprep.subr.mxu0 0.0
    %1961 = vmatpush1.msra.mxu0 0.0
    %1962 = vmatprep.subr.mxu0 0.0
    %1963 = vmatpush1.msra.mxu0 0.0
    %1964 = vmatprep.subr.mxu0 0.0
    %1965 = vmatpush1.msra.mxu0 0.0
    %1966 = vmatprep.subr.mxu0 0.0
    %1967 = vmatpush1.msra.mxu0 0.0
    %1968 = vmatprep.mubr.f32.mxu0 0.0
    %1969 = vmatmul.mubr.f32.gmra.mrb[0].mxu0 %v1899
    %v1970 = vpop.f32.mrb[0].mxu0
    %v1971 = vadd.f32 %v1896, %v1970
    %v1972 = vpop.f32.mrb[0].mxu0
    %1973 = vmatprep.mubr.f32.mxu0 0.0
    %1974 = vmatmul.mubr.f32.gmra.mrb[0].mxu0 %v1902
    %v1975 = vpop.f32.mrb[0].mxu0
    %v1976 = vadd.f32 %v1896, %v1975
    %v1977 = vpop.f32.mrb[0].mxu0
    %1978 = vdwg.mxu0
    %1980 = vrot.lane.b32.xlu0 %v1971, 120
    %v1981 = vpop.permute.xlu0 %1980
    %1982 = vrot.lane.b32.xlu0 %v1971, 112
    %v1983 = vpop.permute.xlu0 %1982
    %1984 = vrot.lane.b32.xlu0 %v1971, 104
    %v1985 = vpop.permute.xlu0 %1984
    %1987 = vrot.lane.b32.xlu0 %v1976, 120
    %v1988 = vpop.permute.xlu0 %1987
    %1989 = vrot.lane.b32.xlu0 %v1976, 112
    %v1990 = vpop.permute.xlu0 %1989
    %1991 = vrot.lane.b32.xlu0 %v1976, 104
    %v1992 = vpop.permute.xlu0 %1991
    %1993 = vrot.lane.b32.xlu0 %v1971, 96
    %v1994 = vpop.permute.xlu0 %1993
    %v1995 = vsel %vm187, %v1971, 0
    %v1997 = vsel %vm187, %v1994, 0
    %1999 = vmatprep.subr.mxu0 0.0
    %2000 = vmatpush1.xpose.msra.mxu0 %v1997
    %2001 = vmatprep.subr.mxu0 0.0
    %2002 = vmatpush1.xpose.msra.mxu0 0.0
    %2003 = vmatprep.subr.mxu0 0.0
    %2004 = vmatpush1.xpose.msra.mxu0 0.0
    %2005 = vmatprep.subr.mxu0 0.0
    %2006 = vmatpush1.xpose.msra.mxu0 0.0
    %2007 = vmatprep.subr.mxu0 0.0
    %2008 = vmatpush1.xpose.msra.mxu0 0.0
    %2009 = vmatprep.subr.mxu0 0.0
    %2010 = vmatpush1.xpose.msra.mxu0 0.0
    %2011 = vmatprep.subr.mxu0 0.0
    %2012 = vmatpush1.xpose.msra.mxu0 0.0
    %2013 = vmatprep.subr.mxu0 0.0
    %2014 = vmatpush1.xpose.msra.mxu0 0.0
    %2015 = vmatprep.subr.mxu0 0.0
    %2016 = vmatpush1.xpose.msra.mxu0 0.0
    %2017 = vmatprep.subr.mxu0 0.0
    %2018 = vmatpush1.xpose.msra.mxu0 0.0
    %2019 = vmatprep.subr.mxu0 0.0
    %2020 = vmatpush1.xpose.msra.mxu0 0.0
    %2021 = vmatprep.subr.mxu0 0.0
    %2022 = vmatpush1.xpose.msra.mxu0 0.0
    %2023 = vmatprep.subr.mxu0 0.0
    %2024 = vmatpush1.xpose.msra.mxu0 0.0
    %2025 = vmatprep.subr.mxu0 0.0
    %2026 = vmatpush1.xpose.msra.mxu0 0.0
    %2027 = vmatprep.subr.mxu0 0.0
    %2028 = vmatpush1.xpose.msra.mxu0 0.0
    %2029 = vmatprep.subr.mxu0 0.0
    %2030 = vmatpush1.xpose.msra.mxu0 0.0
    %2031 = vmatprep.subr.mxu0 0.0
    %2032 = vmatpush1.xpose.msra.mxu0 0.0
    %2033 = vmatprep.subr.mxu0 0.0
    %2034 = vmatpush1.xpose.msra.mxu0 0.0
    %2035 = vmatprep.subr.mxu0 0.0
    %2036 = vmatpush1.xpose.msra.mxu0 0.0
    %2037 = vmatprep.subr.mxu0 0.0
    %2038 = vmatpush1.xpose.msra.mxu0 0.0
    %2039 = vmatprep.subr.mxu0 0.0
    %2040 = vmatpush1.xpose.msra.mxu0 0.0
    %2041 = vmatprep.subr.mxu0 0.0
    %2042 = vmatpush1.xpose.msra.mxu0 0.0
    %2043 = vmatprep.subr.mxu0 0.0
    %2044 = vmatpush1.xpose.msra.mxu0 0.0
    %2045 = vmatprep.subr.mxu0 0.0
    %2046 = vmatpush1.xpose.msra.mxu0 0.0
    %2047 = vmatprep.subr.mxu0 0.0
    %2048 = vmatpush1.xpose.msra.mxu0 0.0
    %2049 = vmatprep.subr.mxu0 0.0
    %2050 = vmatpush1.xpose.msra.mxu0 0.0
    %2051 = vmatprep.subr.mxu0 0.0
    %2052 = vmatpush1.xpose.msra.mxu0 0.0
    %2053 = vmatprep.subr.mxu0 0.0
    %2054 = vmatpush1.xpose.msra.mxu0 0.0
    %2055 = vmatprep.subr.mxu0 0.0
    %2056 = vmatpush1.xpose.msra.mxu0 0.0
    %2057 = vmatprep.subr.mxu0 0.0
    %2058 = vmatpush1.xpose.msra.mxu0 0.0
    %2059 = vmatprep.subr.mxu0 0.0
    %2060 = vmatpush1.xpose.msra.mxu0 0.0
    %2061 = vmatprep.subr.mxu0 0.0
    %2062 = vmatpush1.xpose.msra.mxu0 0.0
    %2063 = vmatprep.mubr.f32.mxu0 0.0
    %2064 = vmatmul.mubr.f32.gmra.mrb[0].mxu0 %v1995
    %v2065 = vpop.f32.mrb[0].mxu0
    %v2066 = vadd.f32 0.0, %v2065
    %v2067 = vpop.f32.mrb[0].mxu0
    %2068 = vdwg.mxu0
    %2069 = vrot.lane.b32.xlu0 %v1981, 96
    %v2070 = vpop.permute.xlu0 %2069
    %v2071 = vsel %vm187, %v1981, 0
    %v2073 = vsel %vm187, %v2070, 0
    %2075 = vmatprep.subr.mxu0 0.0
    %2076 = vmatpush1.xpose.msra.mxu0 %v2073
    %2077 = vmatprep.subr.mxu0 0.0
    %2078 = vmatpush1.xpose.msra.mxu0 0.0
    %2079 = vmatprep.subr.mxu0 0.0
    %2080 = vmatpush1.xpose.msra.mxu0 0.0
    %2081 = vmatprep.subr.mxu0 0.0
    %2082 = vmatpush1.xpose.msra.mxu0 0.0
    %2083 = vmatprep.subr.mxu0 0.0
    %2084 = vmatpush1.xpose.msra.mxu0 0.0
    %2085 = vmatprep.subr.mxu0 0.0
    %2086 = vmatpush1.xpose.msra.mxu0 0.0
    %2087 = vmatprep.subr.mxu0 0.0
    %2088 = vmatpush1.xpose.msra.mxu0 0.0
    %2089 = vmatprep.subr.mxu0 0.0
    %2090 = vmatpush1.xpose.msra.mxu0 0.0
    %2091 = vmatprep.subr.mxu0 0.0
    %2092 = vmatpush1.xpose.msra.mxu0 0.0
    %2093 = vmatprep.subr.mxu0 0.0
    %2094 = vmatpush1.xpose.msra.mxu0 0.0
    %2095 = vmatprep.subr.mxu0 0.0
    %2096 = vmatpush1.xpose.msra.mxu0 0.0
    %2097 = vmatprep.subr.mxu0 0.0
    %2098 = vmatpush1.xpose.msra.mxu0 0.0
    %2099 = vmatprep.subr.mxu0 0.0
    %2100 = vmatpush1.xpose.msra.mxu0 0.0
    %2101 = vmatprep.subr.mxu0 0.0
    %2102 = vmatpush1.xpose.msra.mxu0 0.0
    %2103 = vmatprep.subr.mxu0 0.0
    %2104 = vmatpush1.xpose.msra.mxu0 0.0
    %2105 = vmatprep.subr.mxu0 0.0
    %2106 = vmatpush1.xpose.msra.mxu0 0.0
    %2107 = vmatprep.subr.mxu0 0.0
    %2108 = vmatpush1.xpose.msra.mxu0 0.0
    %2109 = vmatprep.subr.mxu0 0.0
    %2110 = vmatpush1.xpose.msra.mxu0 0.0
    %2111 = vmatprep.subr.mxu0 0.0
    %2112 = vmatpush1.xpose.msra.mxu0 0.0
    %2113 = vmatprep.subr.mxu0 0.0
    %2114 = vmatpush1.xpose.msra.mxu0 0.0
    %2115 = vmatprep.subr.mxu0 0.0
    %2116 = vmatpush1.xpose.msra.mxu0 0.0
    %2117 = vmatprep.subr.mxu0 0.0
    %2118 = vmatpush1.xpose.msra.mxu0 0.0
    %2119 = vmatprep.subr.mxu0 0.0
    %2120 = vmatpush1.xpose.msra.mxu0 0.0
    %2121 = vmatprep.subr.mxu0 0.0
    %2122 = vmatpush1.xpose.msra.mxu0 0.0
    %2123 = vmatprep.subr.mxu0 0.0
    %2124 = vmatpush1.xpose.msra.mxu0 0.0
    %2125 = vmatprep.subr.mxu0 0.0
    %2126 = vmatpush1.xpose.msra.mxu0 0.0
    %2127 = vmatprep.subr.mxu0 0.0
    %2128 = vmatpush1.xpose.msra.mxu0 0.0
    %2129 = vmatprep.subr.mxu0 0.0
    %2130 = vmatpush1.xpose.msra.mxu0 0.0
    %2131 = vmatprep.subr.mxu0 0.0
    %2132 = vmatpush1.xpose.msra.mxu0 0.0
    %2133 = vmatprep.subr.mxu0 0.0
    %2134 = vmatpush1.xpose.msra.mxu0 0.0
    %2135 = vmatprep.subr.mxu0 0.0
    %2136 = vmatpush1.xpose.msra.mxu0 0.0
    %2137 = vmatprep.subr.mxu0 0.0
    %2138 = vmatpush1.xpose.msra.mxu0 0.0
    %2139 = vmatprep.mubr.f32.mxu0 0.0
    %2140 = vmatmul.mubr.f32.gmra.mrb[0].mxu0 %v2071
    %v2141 = vpop.f32.mrb[0].mxu0
    %v2142 = vadd.f32 0.0, %v2141
    %v2143 = vpop.f32.mrb[0].mxu0
    %2144 = vdwg.mxu0
    %2145 = vrot.lane.b32.xlu0 %v1983, 96
    %v2146 = vpop.permute.xlu0 %2145
    %v2147 = vsel %vm187, %v1983, 0
    %v2149 = vsel %vm187, %v2146, 0
    %2151 = vmatprep.subr.mxu0 0.0
    %2152 = vmatpush1.xpose.msra.mxu0 %v2149
    %2153 = vmatprep.subr.mxu0 0.0
    %2154 = vmatpush1.xpose.msra.mxu0 0.0
    %2155 = vmatprep.subr.mxu0 0.0
    %2156 = vmatpush1.xpose.msra.mxu0 0.0
    %2157 = vmatprep.subr.mxu0 0.0
    %2158 = vmatpush1.xpose.msra.mxu0 0.0
    %2159 = vmatprep.subr.mxu0 0.0
    %2160 = vmatpush1.xpose.msra.mxu0 0.0
    %2161 = vmatprep.subr.mxu0 0.0
    %2162 = vmatpush1.xpose.msra.mxu0 0.0
    %2163 = vmatprep.subr.mxu0 0.0
    %2164 = vmatpush1.xpose.msra.mxu0 0.0
    %2165 = vmatprep.subr.mxu0 0.0
    %2166 = vmatpush1.xpose.msra.mxu0 0.0
    %2167 = vmatprep.subr.mxu0 0.0
    %2168 = vmatpush1.xpose.msra.mxu0 0.0
    %2169 = vmatprep.subr.mxu0 0.0
    %2170 = vmatpush1.xpose.msra.mxu0 0.0
    %2171 = vmatprep.subr.mxu0 0.0
    %2172 = vmatpush1.xpose.msra.mxu0 0.0
    %2173 = vmatprep.subr.mxu0 0.0
    %2174 = vmatpush1.xpose.msra.mxu0 0.0
    %2175 = vmatprep.subr.mxu0 0.0
    %2176 = vmatpush1.xpose.msra.mxu0 0.0
    %2177 = vmatprep.subr.mxu0 0.0
    %2178 = vmatpush1.xpose.msra.mxu0 0.0
    %2179 = vmatprep.subr.mxu0 0.0
    %2180 = vmatpush1.xpose.msra.mxu0 0.0
    %2181 = vmatprep.subr.mxu0 0.0
    %2182 = vmatpush1.xpose.msra.mxu0 0.0
    %2183 = vmatprep.subr.mxu0 0.0
    %2184 = vmatpush1.xpose.msra.mxu0 0.0
    %2185 = vmatprep.subr.mxu0 0.0
    %2186 = vmatpush1.xpose.msra.mxu0 0.0
    %2187 = vmatprep.subr.mxu0 0.0
    %2188 = vmatpush1.xpose.msra.mxu0 0.0
    %2189 = vmatprep.subr.mxu0 0.0
    %2190 = vmatpush1.xpose.msra.mxu0 0.0
    %2191 = vmatprep.subr.mxu0 0.0
    %2192 = vmatpush1.xpose.msra.mxu0 0.0
    %2193 = vmatprep.subr.mxu0 0.0
    %2194 = vmatpush1.xpose.msra.mxu0 0.0
    %2195 = vmatprep.subr.mxu0 0.0
    %2196 = vmatpush1.xpose.msra.mxu0 0.0
    %2197 = vmatprep.subr.mxu0 0.0
    %2198 = vmatpush1.xpose.msra.mxu0 0.0
    %2199 = vmatprep.subr.mxu0 0.0
    %2200 = vmatpush1.xpose.msra.mxu0 0.0
    %2201 = vmatprep.subr.mxu0 0.0
    %2202 = vmatpush1.xpose.msra.mxu0 0.0
    %2203 = vmatprep.subr.mxu0 0.0
    %2204 = vmatpush1.xpose.msra.mxu0 0.0
    %2205 = vmatprep.subr.mxu0 0.0
    %2206 = vmatpush1.xpose.msra.mxu0 0.0
    %2207 = vmatprep.subr.mxu0 0.0
    %2208 = vmatpush1.xpose.msra.mxu0 0.0
    %2209 = vmatprep.subr.mxu0 0.0
    %2210 = vmatpush1.xpose.msra.mxu0 0.0
    %2211 = vmatprep.subr.mxu0 0.0
    %2212 = vmatpush1.xpose.msra.mxu0 0.0
    %2213 = vmatprep.subr.mxu0 0.0
    %2214 = vmatpush1.xpose.msra.mxu0 0.0
    %2215 = vmatprep.mubr.f32.mxu0 0.0
    %2216 = vmatmul.mubr.f32.gmra.mrb[0].mxu0 %v2147
    %v2217 = vpop.f32.mrb[0].mxu0
    %v2218 = vadd.f32 0.0, %v2217
    %v2219 = vpop.f32.mrb[0].mxu0
    %2220 = vdwg.mxu0
    %2221 = vrot.lane.b32.xlu0 %v1985, 96
    %v2222 = vpop.permute.xlu0 %2221
    %v2223 = vsel %vm187, %v1985, 0
    %v2225 = vsel %vm187, %v2222, 0
    %2227 = vmatprep.subr.mxu0 0.0
    %2228 = vmatpush1.xpose.msra.mxu0 %v2225
    %2229 = vmatprep.subr.mxu0 0.0
    %2230 = vmatpush1.xpose.msra.mxu0 0.0
    %2231 = vmatprep.subr.mxu0 0.0
    %2232 = vmatpush1.xpose.msra.mxu0 0.0
    %2233 = vmatprep.subr.mxu0 0.0
    %2234 = vmatpush1.xpose.msra.mxu0 0.0
    %2235 = vmatprep.subr.mxu0 0.0
    %2236 = vmatpush1.xpose.msra.mxu0 0.0
    %2237 = vmatprep.subr.mxu0 0.0
    %2238 = vmatpush1.xpose.msra.mxu0 0.0
    %2239 = vmatprep.subr.mxu0 0.0
    %2240 = vmatpush1.xpose.msra.mxu0 0.0
    %2241 = vmatprep.subr.mxu0 0.0
    %2242 = vmatpush1.xpose.msra.mxu0 0.0
    %2243 = vmatprep.subr.mxu0 0.0
    %2244 = vmatpush1.xpose.msra.mxu0 0.0
    %2245 = vmatprep.subr.mxu0 0.0
    %2246 = vmatpush1.xpose.msra.mxu0 0.0
    %2247 = vmatprep.subr.mxu0 0.0
    %2248 = vmatpush1.xpose.msra.mxu0 0.0
    %2249 = vmatprep.subr.mxu0 0.0
    %2250 = vmatpush1.xpose.msra.mxu0 0.0
    %2251 = vmatprep.subr.mxu0 0.0
    %2252 = vmatpush1.xpose.msra.mxu0 0.0
    %2253 = vmatprep.subr.mxu0 0.0
    %2254 = vmatpush1.xpose.msra.mxu0 0.0
    %2255 = vmatprep.subr.mxu0 0.0
    %2256 = vmatpush1.xpose.msra.mxu0 0.0
    %2257 = vmatprep.subr.mxu0 0.0
    %2258 = vmatpush1.xpose.msra.mxu0 0.0
    %2259 = vmatprep.subr.mxu0 0.0
    %2260 = vmatpush1.xpose.msra.mxu0 0.0
    %2261 = vmatprep.subr.mxu0 0.0
    %2262 = vmatpush1.xpose.msra.mxu0 0.0
    %2263 = vmatprep.subr.mxu0 0.0
    %2264 = vmatpush1.xpose.msra.mxu0 0.0
    %2265 = vmatprep.subr.mxu0 0.0
    %2266 = vmatpush1.xpose.msra.mxu0 0.0
    %2267 = vmatprep.subr.mxu0 0.0
    %2268 = vmatpush1.xpose.msra.mxu0 0.0
    %2269 = vmatprep.subr.mxu0 0.0
    %2270 = vmatpush1.xpose.msra.mxu0 0.0
    %2271 = vmatprep.subr.mxu0 0.0
    %2272 = vmatpush1.xpose.msra.mxu0 0.0
    %2273 = vmatprep.subr.mxu0 0.0
    %2274 = vmatpush1.xpose.msra.mxu0 0.0
    %2275 = vmatprep.subr.mxu0 0.0
    %2276 = vmatpush1.xpose.msra.mxu0 0.0
    %2277 = vmatprep.subr.mxu0 0.0
    %2278 = vmatpush1.xpose.msra.mxu0 0.0
    %2279 = vmatprep.subr.mxu0 0.0
    %2280 = vmatpush1.xpose.msra.mxu0 0.0
    %2281 = vmatprep.subr.mxu0 0.0
    %2282 = vmatpush1.xpose.msra.mxu0 0.0
    %2283 = vmatprep.subr.mxu0 0.0
    %2284 = vmatpush1.xpose.msra.mxu0 0.0
    %2285 = vmatprep.subr.mxu0 0.0
    %2286 = vmatpush1.xpose.msra.mxu0 0.0
    %2287 = vmatprep.subr.mxu0 0.0
    %2288 = vmatpush1.xpose.msra.mxu0 0.0
    %2289 = vmatprep.subr.mxu0 0.0
    %2290 = vmatpush1.xpose.msra.mxu0 0.0
    %2291 = vmatprep.mubr.f32.mxu0 0.0
    %2292 = vmatmul.mubr.f32.gmra.mrb[0].mxu0 %v2223
    %v2293 = vpop.f32.mrb[0].mxu0
    %v2294 = vadd.f32 0.0, %v2293
    %v2295 = vpop.f32.mrb[0].mxu0
    %2296 = vdwg.mxu0
    %2297 = vrot.lane.b32.xlu0 %v1976, 96
    %v2298 = vpop.permute.xlu0 %2297
    %v2299 = vsel %vm187, %v1976, 0
    %v2301 = vsel %vm187, %v2298, 0
    %2303 = vmatprep.subr.mxu0 0.0
    %2304 = vmatpush1.xpose.msra.mxu0 %v2301
    %2305 = vmatprep.subr.mxu0 0.0
    %2306 = vmatpush1.xpose.msra.mxu0 0.0
    %2307 = vmatprep.subr.mxu0 0.0
    %2308 = vmatpush1.xpose.msra.mxu0 0.0
    %2309 = vmatprep.subr.mxu0 0.0
    %2310 = vmatpush1.xpose.msra.mxu0 0.0
    %2311 = vmatprep.subr.mxu0 0.0
    %2312 = vmatpush1.xpose.msra.mxu0 0.0
    %2313 = vmatprep.subr.mxu0 0.0
    %2314 = vmatpush1.xpose.msra.mxu0 0.0
    %2315 = vmatprep.subr.mxu0 0.0
    %2316 = vmatpush1.xpose.msra.mxu0 0.0
    %2317 = vmatprep.subr.mxu0 0.0
    %2318 = vmatpush1.xpose.msra.mxu0 0.0
    %2319 = vmatprep.subr.mxu0 0.0
    %2320 = vmatpush1.xpose.msra.mxu0 0.0
    %2321 = vmatprep.subr.mxu0 0.0
    %2322 = vmatpush1.xpose.msra.mxu0 0.0
    %2323 = vmatprep.subr.mxu0 0.0
    %2324 = vmatpush1.xpose.msra.mxu0 0.0
    %2325 = vmatprep.subr.mxu0 0.0
    %2326 = vmatpush1.xpose.msra.mxu0 0.0
    %2327 = vmatprep.subr.mxu0 0.0
    %2328 = vmatpush1.xpose.msra.mxu0 0.0
    %2329 = vmatprep.subr.mxu0 0.0
    %2330 = vmatpush1.xpose.msra.mxu0 0.0
    %2331 = vmatprep.subr.mxu0 0.0
    %2332 = vmatpush1.xpose.msra.mxu0 0.0
    %2333 = vmatprep.subr.mxu0 0.0
    %2334 = vmatpush1.xpose.msra.mxu0 0.0
    %2335 = vmatprep.subr.mxu0 0.0
    %2336 = vmatpush1.xpose.msra.mxu0 0.0
    %2337 = vmatprep.subr.mxu0 0.0
    %2338 = vmatpush1.xpose.msra.mxu0 0.0
    %2339 = vmatprep.subr.mxu0 0.0
    %2340 = vmatpush1.xpose.msra.mxu0 0.0
    %2341 = vmatprep.subr.mxu0 0.0
    %2342 = vmatpush1.xpose.msra.mxu0 0.0
    %2343 = vmatprep.subr.mxu0 0.0
    %2344 = vmatpush1.xpose.msra.mxu0 0.0
    %2345 = vmatprep.subr.mxu0 0.0
    %2346 = vmatpush1.xpose.msra.mxu0 0.0
    %2347 = vmatprep.subr.mxu0 0.0
    %2348 = vmatpush1.xpose.msra.mxu0 0.0
    %2349 = vmatprep.subr.mxu0 0.0
    %2350 = vmatpush1.xpose.msra.mxu0 0.0
    %2351 = vmatprep.subr.mxu0 0.0
    %2352 = vmatpush1.xpose.msra.mxu0 0.0
    %2353 = vmatprep.subr.mxu0 0.0
    %2354 = vmatpush1.xpose.msra.mxu0 0.0
    %2355 = vmatprep.subr.mxu0 0.0
    %2356 = vmatpush1.xpose.msra.mxu0 0.0
    %2357 = vmatprep.subr.mxu0 0.0
    %2358 = vmatpush1.xpose.msra.mxu0 0.0
    %2359 = vmatprep.subr.mxu0 0.0
    %2360 = vmatpush1.xpose.msra.mxu0 0.0
    %2361 = vmatprep.subr.mxu0 0.0
    %2362 = vmatpush1.xpose.msra.mxu0 0.0
    %2363 = vmatprep.subr.mxu0 0.0
    %2364 = vmatpush1.xpose.msra.mxu0 0.0
    %2365 = vmatprep.subr.mxu0 0.0
    %2366 = vmatpush1.xpose.msra.mxu0 0.0
    %2367 = vmatprep.mubr.f32.mxu0 0.0
    %2368 = vmatmul.mubr.f32.gmra.mrb[0].mxu0 %v2299
    %v2369 = vpop.f32.mrb[0].mxu0
    %v2370 = vadd.f32 0.0, %v2369
    %v2371 = vpop.f32.mrb[0].mxu0
    %2372 = vdwg.mxu0
    %2373 = vrot.lane.b32.xlu0 %v1988, 96
    %v2374 = vpop.permute.xlu0 %2373
    %v2375 = vsel %vm187, %v1988, 0
    %v2377 = vsel %vm187, %v2374, 0
    %2379 = vmatprep.subr.mxu0 0.0
    %2380 = vmatpush1.xpose.msra.mxu0 %v2377
    %2381 = vmatprep.subr.mxu0 0.0
    %2382 = vmatpush1.xpose.msra.mxu0 0.0
    %2383 = vmatprep.subr.mxu0 0.0
    %2384 = vmatpush1.xpose.msra.mxu0 0.0
    %2385 = vmatprep.subr.mxu0 0.0
    %2386 = vmatpush1.xpose.msra.mxu0 0.0
    %2387 = vmatprep.subr.mxu0 0.0
    %2388 = vmatpush1.xpose.msra.mxu0 0.0
    %2389 = vmatprep.subr.mxu0 0.0
    %2390 = vmatpush1.xpose.msra.mxu0 0.0
    %2391 = vmatprep.subr.mxu0 0.0
    %2392 = vmatpush1.xpose.msra.mxu0 0.0
    %2393 = vmatprep.subr.mxu0 0.0
    %2394 = vmatpush1.xpose.msra.mxu0 0.0
    %2395 = vmatprep.subr.mxu0 0.0
    %2396 = vmatpush1.xpose.msra.mxu0 0.0
    %2397 = vmatprep.subr.mxu0 0.0
    %2398 = vmatpush1.xpose.msra.mxu0 0.0
    %2399 = vmatprep.subr.mxu0 0.0
    %2400 = vmatpush1.xpose.msra.mxu0 0.0
    %2401 = vmatprep.subr.mxu0 0.0
    %2402 = vmatpush1.xpose.msra.mxu0 0.0
    %2403 = vmatprep.subr.mxu0 0.0
    %2404 = vmatpush1.xpose.msra.mxu0 0.0
    %2405 = vmatprep.subr.mxu0 0.0
    %2406 = vmatpush1.xpose.msra.mxu0 0.0
    %2407 = vmatprep.subr.mxu0 0.0
    %2408 = vmatpush1.xpose.msra.mxu0 0.0
    %2409 = vmatprep.subr.mxu0 0.0
    %2410 = vmatpush1.xpose.msra.mxu0 0.0
    %2411 = vmatprep.subr.mxu0 0.0
    %2412 = vmatpush1.xpose.msra.mxu0 0.0
    %2413 = vmatprep.subr.mxu0 0.0
    %2414 = vmatpush1.xpose.msra.mxu0 0.0
    %2415 = vmatprep.subr.mxu0 0.0
    %2416 = vmatpush1.xpose.msra.mxu0 0.0
    %2417 = vmatprep.subr.mxu0 0.0
    %2418 = vmatpush1.xpose.msra.mxu0 0.0
    %2419 = vmatprep.subr.mxu0 0.0
    %2420 = vmatpush1.xpose.msra.mxu0 0.0
    %2421 = vmatprep.subr.mxu0 0.0
    %2422 = vmatpush1.xpose.msra.mxu0 0.0
    %2423 = vmatprep.subr.mxu0 0.0
    %2424 = vmatpush1.xpose.msra.mxu0 0.0
    %2425 = vmatprep.subr.mxu0 0.0
    %2426 = vmatpush1.xpose.msra.mxu0 0.0
    %2427 = vmatprep.subr.mxu0 0.0
    %2428 = vmatpush1.xpose.msra.mxu0 0.0
    %2429 = vmatprep.subr.mxu0 0.0
    %2430 = vmatpush1.xpose.msra.mxu0 0.0
    %2431 = vmatprep.subr.mxu0 0.0
    %2432 = vmatpush1.xpose.msra.mxu0 0.0
    %2433 = vmatprep.subr.mxu0 0.0
    %2434 = vmatpush1.xpose.msra.mxu0 0.0
    %2435 = vmatprep.subr.mxu0 0.0
    %2436 = vmatpush1.xpose.msra.mxu0 0.0
    %2437 = vmatprep.subr.mxu0 0.0
    %2438 = vmatpush1.xpose.msra.mxu0 0.0
    %2439 = vmatprep.subr.mxu0 0.0
    %2440 = vmatpush1.xpose.msra.mxu0 0.0
    %2441 = vmatprep.subr.mxu0 0.0
    %2442 = vmatpush1.xpose.msra.mxu0 0.0
    %2443 = vmatprep.mubr.f32.mxu0 0.0
    %2444 = vmatmul.mubr.f32.gmra.mrb[0].mxu0 %v2375
    %v2445 = vpop.f32.mrb[0].mxu0
    %v2446 = vadd.f32 0.0, %v2445
    %v2447 = vpop.f32.mrb[0].mxu0
    %2448 = vdwg.mxu0
    %2449 = vrot.lane.b32.xlu0 %v1990, 96
    %v2450 = vpop.permute.xlu0 %2449
    %v2451 = vsel %vm187, %v1990, 0
    %v2453 = vsel %vm187, %v2450, 0
    %2455 = vmatprep.subr.mxu0 0.0
    %2456 = vmatpush1.xpose.msra.mxu0 %v2453
    %2457 = vmatprep.subr.mxu0 0.0
    %2458 = vmatpush1.xpose.msra.mxu0 0.0
    %2459 = vmatprep.subr.mxu0 0.0
    %2460 = vmatpush1.xpose.msra.mxu0 0.0
    %2461 = vmatprep.subr.mxu0 0.0
    %2462 = vmatpush1.xpose.msra.mxu0 0.0
    %2463 = vmatprep.subr.mxu0 0.0
    %2464 = vmatpush1.xpose.msra.mxu0 0.0
    %2465 = vmatprep.subr.mxu0 0.0
    %2466 = vmatpush1.xpose.msra.mxu0 0.0
    %2467 = vmatprep.subr.mxu0 0.0
    %2468 = vmatpush1.xpose.msra.mxu0 0.0
    %2469 = vmatprep.subr.mxu0 0.0
    %2470 = vmatpush1.xpose.msra.mxu0 0.0
    %2471 = vmatprep.subr.mxu0 0.0
    %2472 = vmatpush1.xpose.msra.mxu0 0.0
    %2473 = vmatprep.subr.mxu0 0.0
    %2474 = vmatpush1.xpose.msra.mxu0 0.0
    %2475 = vmatprep.subr.mxu0 0.0
    %2476 = vmatpush1.xpose.msra.mxu0 0.0
    %2477 = vmatprep.subr.mxu0 0.0
    %2478 = vmatpush1.xpose.msra.mxu0 0.0
    %2479 = vmatprep.subr.mxu0 0.0
    %2480 = vmatpush1.xpose.msra.mxu0 0.0
    %2481 = vmatprep.subr.mxu0 0.0
    %2482 = vmatpush1.xpose.msra.mxu0 0.0
    %2483 = vmatprep.subr.mxu0 0.0
    %2484 = vmatpush1.xpose.msra.mxu0 0.0
    %2485 = vmatprep.subr.mxu0 0.0
    %2486 = vmatpush1.xpose.msra.mxu0 0.0
    %2487 = vmatprep.subr.mxu0 0.0
    %2488 = vmatpush1.xpose.msra.mxu0 0.0
    %2489 = vmatprep.subr.mxu0 0.0
    %2490 = vmatpush1.xpose.msra.mxu0 0.0
    %2491 = vmatprep.subr.mxu0 0.0
    %2492 = vmatpush1.xpose.msra.mxu0 0.0
    %2493 = vmatprep.subr.mxu0 0.0
    %2494 = vmatpush1.xpose.msra.mxu0 0.0
    %2495 = vmatprep.subr.mxu0 0.0
    %2496 = vmatpush1.xpose.msra.mxu0 0.0
    %2497 = vmatprep.subr.mxu0 0.0
    %2498 = vmatpush1.xpose.msra.mxu0 0.0
    %2499 = vmatprep.subr.mxu0 0.0
    %2500 = vmatpush1.xpose.msra.mxu0 0.0
    %2501 = vmatprep.subr.mxu0 0.0
    %2502 = vmatpush1.xpose.msra.mxu0 0.0
    %2503 = vmatprep.subr.mxu0 0.0
    %2504 = vmatpush1.xpose.msra.mxu0 0.0
    %2505 = vmatprep.subr.mxu0 0.0
    %2506 = vmatpush1.xpose.msra.mxu0 0.0
    %2507 = vmatprep.subr.mxu0 0.0
    %2508 = vmatpush1.xpose.msra.mxu0 0.0
    %2509 = vmatprep.subr.mxu0 0.0
    %2510 = vmatpush1.xpose.msra.mxu0 0.0
    %2511 = vmatprep.subr.mxu0 0.0
    %2512 = vmatpush1.xpose.msra.mxu0 0.0
    %2513 = vmatprep.subr.mxu0 0.0
    %2514 = vmatpush1.xpose.msra.mxu0 0.0
    %2515 = vmatprep.subr.mxu0 0.0
    %2516 = vmatpush1.xpose.msra.mxu0 0.0
    %2517 = vmatprep.subr.mxu0 0.0
    %2518 = vmatpush1.xpose.msra.mxu0 0.0
    %2519 = vmatprep.mubr.f32.mxu0 0.0
    %2520 = vmatmul.mubr.f32.gmra.mrb[0].mxu0 %v2451
    %v2521 = vpop.f32.mrb[0].mxu0
    %v2522 = vadd.f32 0.0, %v2521
    %v2523 = vpop.f32.mrb[0].mxu0
    %2524 = vdwg.mxu0
    %2525 = vrot.lane.b32.xlu0 %v1992, 96
    %v2526 = vpop.permute.xlu0 %2525
    %v2527 = vsel %vm187, %v1992, 0
    %v2529 = vsel %vm187, %v2526, 0
    %2531 = vmatprep.subr.mxu0 0.0
    %2532 = vmatpush1.xpose.msra.mxu0 %v2529
    %2533 = vmatprep.subr.mxu0 0.0
    %2534 = vmatpush1.xpose.msra.mxu0 0.0
    %2535 = vmatprep.subr.mxu0 0.0
    %2536 = vmatpush1.xpose.msra.mxu0 0.0
    %2537 = vmatprep.subr.mxu0 0.0
    %2538 = vmatpush1.xpose.msra.mxu0 0.0
    %2539 = vmatprep.subr.mxu0 0.0
    %2540 = vmatpush1.xpose.msra.mxu0 0.0
    %2541 = vmatprep.subr.mxu0 0.0
    %2542 = vmatpush1.xpose.msra.mxu0 0.0
    %2543 = vmatprep.subr.mxu0 0.0
    %2544 = vmatpush1.xpose.msra.mxu0 0.0
    %2545 = vmatprep.subr.mxu0 0.0
    %2546 = vmatpush1.xpose.msra.mxu0 0.0
    %2547 = vmatprep.subr.mxu0 0.0
    %2548 = vmatpush1.xpose.msra.mxu0 0.0
    %2549 = vmatprep.subr.mxu0 0.0
    %2550 = vmatpush1.xpose.msra.mxu0 0.0
    %2551 = vmatprep.subr.mxu0 0.0
    %2552 = vmatpush1.xpose.msra.mxu0 0.0
    %2553 = vmatprep.subr.mxu0 0.0
    %2554 = vmatpush1.xpose.msra.mxu0 0.0
    %2555 = vmatprep.subr.mxu0 0.0
    %2556 = vmatpush1.xpose.msra.mxu0 0.0
    %2557 = vmatprep.subr.mxu0 0.0
    %2558 = vmatpush1.xpose.msra.mxu0 0.0
    %2559 = vmatprep.subr.mxu0 0.0
    %2560 = vmatpush1.xpose.msra.mxu0 0.0
    %2561 = vmatprep.subr.mxu0 0.0
    %2562 = vmatpush1.xpose.msra.mxu0 0.0
    %2563 = vmatprep.subr.mxu0 0.0
    %2564 = vmatpush1.xpose.msra.mxu0 0.0
    %2565 = vmatprep.subr.mxu0 0.0
    %2566 = vmatpush1.xpose.msra.mxu0 0.0
    %2567 = vmatprep.subr.mxu0 0.0
    %2568 = vmatpush1.xpose.msra.mxu0 0.0
    %2569 = vmatprep.subr.mxu0 0.0
    %2570 = vmatpush1.xpose.msra.mxu0 0.0
    %2571 = vmatprep.subr.mxu0 0.0
    %2572 = vmatpush1.xpose.msra.mxu0 0.0
    %2573 = vmatprep.subr.mxu0 0.0
    %2574 = vmatpush1.xpose.msra.mxu0 0.0
    %2575 = vmatprep.subr.mxu0 0.0
    %2576 = vmatpush1.xpose.msra.mxu0 0.0
    %2577 = vmatprep.subr.mxu0 0.0
    %2578 = vmatpush1.xpose.msra.mxu0 0.0
    %2579 = vmatprep.subr.mxu0 0.0
    %2580 = vmatpush1.xpose.msra.mxu0 0.0
    %2581 = vmatprep.subr.mxu0 0.0
    %2582 = vmatpush1.xpose.msra.mxu0 0.0
    %2583 = vmatprep.subr.mxu0 0.0
    %2584 = vmatpush1.xpose.msra.mxu0 0.0
    %2585 = vmatprep.subr.mxu0 0.0
    %2586 = vmatpush1.xpose.msra.mxu0 0.0
    %2587 = vmatprep.subr.mxu0 0.0
    %2588 = vmatpush1.xpose.msra.mxu0 0.0
    %2589 = vmatprep.subr.mxu0 0.0
    %2590 = vmatpush1.xpose.msra.mxu0 0.0
    %2591 = vmatprep.subr.mxu0 0.0
    %2592 = vmatpush1.xpose.msra.mxu0 0.0
    %2593 = vmatprep.subr.mxu0 0.0
    %2594 = vmatpush1.xpose.msra.mxu0 0.0
    %2595 = vmatprep.mubr.f32.mxu0 0.0
    %2596 = vmatmul.mubr.f32.gmra.mrb[0].mxu0 %v2527
    %v2597 = vpop.f32.mrb[0].mxu0
    %v2598 = vadd.f32 0.0, %v2597
    %v2599 = vpop.f32.mrb[0].mxu0
    %2600 = vdwg.mxu0
    %v2601 = vsel %vm187, %v2066, -inf
    %2602 = vmax.xlane.f32.xlu0 %v2601
    %v2603 = vpop.xlane.xlu0 %2602
    %v2604 = vsel %vm187, %v2142, -inf
    %2605 = vmax.xlane.f32.xlu0 %v2604
    %v2606 = vpop.xlane.xlu0 %2605
    %v2607 = vsel %vm187, %v2218, -inf
    %2608 = vmax.xlane.f32.xlu0 %v2607
    %v2609 = vpop.xlane.xlu0 %2608
    %v2610 = vsel %vm187, %v2294, -inf
    %2611 = vmax.xlane.f32.xlu0 %v2610
    %v2612 = vpop.xlane.xlu0 %2611
    %v2613 = vsel %vm187, %v2370, -inf
    %2614 = vmax.xlane.f32.xlu0 %v2613
    %v2615 = vpop.xlane.xlu0 %2614
    %v2616 = vsel %vm187, %v2446, -inf
    %2617 = vmax.xlane.f32.xlu0 %v2616
    %v2618 = vpop.xlane.xlu0 %2617
    %v2619 = vsel %vm187, %v2522, -inf
    %2620 = vmax.xlane.f32.xlu0 %v2619
    %v2621 = vpop.xlane.xlu0 %2620
    %v2622 = vsel %vm187, %v2598, -inf
    %2623 = vmax.xlane.f32.xlu0 %v2622
    %v2624 = vpop.xlane.xlu0 %2623
    %v2625 = vsub.f32 %v2066, %v2603
    %v2626 = vsub.f32 %v2142, %v2606
    %v2627 = vsub.f32 %v2218, %v2609
    %v2628 = vsub.f32 %v2294, %v2612
    %v2629 = vsub.f32 %v2370, %v2615
    %v2630 = vsub.f32 %v2446, %v2618
    %v2631 = vsub.f32 %v2522, %v2621
    %v2632 = vsub.f32 %v2598, %v2624
    %v2633 = vmul.f32 %v2625, 1.442695
    %v2634 = vpow.pop %v2633
    %v2635 = vmul.f32 %v2626, 1.442695
    %v2636 = vpow.pop %v2635
    %v2637 = vmul.f32 %v2627, 1.442695
    %v2638 = vpow.pop %v2637
    %v2639 = vmul.f32 %v2628, 1.442695
    %v2640 = vpow.pop %v2639
    %v2641 = vmul.f32 %v2629, 1.442695
    %v2642 = vpow.pop %v2641
    %v2643 = vmul.f32 %v2630, 1.442695
    %v2644 = vpow.pop %v2643
    %v2645 = vmul.f32 %v2631, 1.442695
    %v2646 = vpow.pop %v2645
    %v2647 = vmul.f32 %v2632, 1.442695
    %v2648 = vpow.pop %v2647
    %v2649 = vsel %vm187, %v2634, 0.0
    %2650 = vadd.xlane.f32.xlu0 %v2649
    %v2651 = vpop.xlane.xlu0 %2650
    %v2652 = vsel %vm187, %v2636, 0.0
    %2653 = vadd.xlane.f32.xlu0 %v2652
    %v2654 = vpop.xlane.xlu0 %2653
    %v2655 = vsel %vm187, %v2638, 0.0
    %2656 = vadd.xlane.f32.xlu0 %v2655
    %v2657 = vpop.xlane.xlu0 %2656
    %v2658 = vsel %vm187, %v2640, 0.0
    %2659 = vadd.xlane.f32.xlu0 %v2658
    %v2660 = vpop.xlane.xlu0 %2659
    %v2661 = vsel %vm187, %v2642, 0.0
    %2662 = vadd.xlane.f32.xlu0 %v2661
    %v2663 = vpop.xlane.xlu0 %2662
    %v2664 = vsel %vm187, %v2644, 0.0
    %2665 = vadd.xlane.f32.xlu0 %v2664
    %v2666 = vpop.xlane.xlu0 %2665
    %v2667 = vsel %vm187, %v2646, 0.0
    %2668 = vadd.xlane.f32.xlu0 %v2667
    %v2669 = vpop.xlane.xlu0 %2668
    %v2670 = vsel %vm187, %v2648, 0.0
    %2671 = vadd.xlane.f32.xlu0 %v2670
    %v2672 = vpop.xlane.xlu0 %2671
    %v2673 = vrcp.pop %v2651
    %v2674 = vmul.f32 %v2634, %v2673
    %v2675 = vrcp.pop %v2654
    %v2676 = vmul.f32 %v2636, %v2675
    %v2677 = vrcp.pop %v2657
    %v2678 = vmul.f32 %v2638, %v2677
    %v2679 = vrcp.pop %v2660
    %v2680 = vmul.f32 %v2640, %v2679
    %v2681 = vrcp.pop %v2663
    %v2682 = vmul.f32 %v2642, %v2681
    %v2683 = vrcp.pop %v2666
    %v2684 = vmul.f32 %v2644, %v2683
    %v2685 = vrcp.pop %v2669
    %v2686 = vmul.f32 %v2646, %v2685
    %v2687 = vrcp.pop %v2672
    %v2688 = vmul.f32 %v2648, %v2687
    %2689 = vrot.lane.b32.xlu0 %v1971, 64
    %v2690 = vpop.permute.xlu0 %2689
    %v2693 = vsel %vm187, %v2674, 0
    %2695 = vmatprep.subr.mxu0 0.0
    %2696 = vmatpush1.msra.mxu0 %v2690
    %2697 = vmatprep.subr.mxu0 0.0
    %2698 = vmatpush1.msra.mxu0 0.0
    %2699 = vmatprep.subr.mxu0 0.0
    %2700 = vmatpush1.msra.mxu0 0.0
    %2701 = vmatprep.subr.mxu0 0.0
    %2702 = vmatpush1.msra.mxu0 0.0
    %2703 = vmatprep.subr.mxu0 0.0
    %2704 = vmatpush1.msra.mxu0 0.0
    %2705 = vmatprep.subr.mxu0 0.0
    %2706 = vmatpush1.msra.mxu0 0.0
    %2707 = vmatprep.subr.mxu0 0.0
    %2708 = vmatpush1.msra.mxu0 0.0
    %2709 = vmatprep.subr.mxu0 0.0
    %2710 = vmatpush1.msra.mxu0 0.0
    %2711 = vmatprep.subr.mxu0 0.0
    %2712 = vmatpush1.msra.mxu0 0.0
    %2713 = vmatprep.subr.mxu0 0.0
    %2714 = vmatpush1.msra.mxu0 0.0
    %2715 = vmatprep.subr.mxu0 0.0
    %2716 = vmatpush1.msra.mxu0 0.0
    %2717 = vmatprep.subr.mxu0 0.0
    %2718 = vmatpush1.msra.mxu0 0.0
    %2719 = vmatprep.subr.mxu0 0.0
    %2720 = vmatpush1.msra.mxu0 0.0
    %2721 = vmatprep.subr.mxu0 0.0
    %2722 = vmatpush1.msra.mxu0 0.0
    %2723 = vmatprep.subr.mxu0 0.0
    %2724 = vmatpush1.msra.mxu0 0.0
    %2725 = vmatprep.subr.mxu0 0.0
    %2726 = vmatpush1.msra.mxu0 0.0
    %2727 = vmatprep.subr.mxu0 0.0
    %2728 = vmatpush1.msra.mxu0 0.0
    %2729 = vmatprep.subr.mxu0 0.0
    %2730 = vmatpush1.msra.mxu0 0.0
    %2731 = vmatprep.subr.mxu0 0.0
    %2732 = vmatpush1.msra.mxu0 0.0
    %2733 = vmatprep.subr.mxu0 0.0
    %2734 = vmatpush1.msra.mxu0 0.0
    %2735 = vmatprep.subr.mxu0 0.0
    %2736 = vmatpush1.msra.mxu0 0.0
    %2737 = vmatprep.subr.mxu0 0.0
    %2738 = vmatpush1.msra.mxu0 0.0
    %2739 = vmatprep.subr.mxu0 0.0
    %2740 = vmatpush1.msra.mxu0 0.0
    %2741 = vmatprep.subr.mxu0 0.0
    %2742 = vmatpush1.msra.mxu0 0.0
    %2743 = vmatprep.subr.mxu0 0.0
    %2744 = vmatpush1.msra.mxu0 0.0
    %2745 = vmatprep.subr.mxu0 0.0
    %2746 = vmatpush1.msra.mxu0 0.0
    %2747 = vmatprep.subr.mxu0 0.0
    %2748 = vmatpush1.msra.mxu0 0.0
    %2749 = vmatprep.subr.mxu0 0.0
    %2750 = vmatpush1.msra.mxu0 0.0
    %2751 = vmatprep.subr.mxu0 0.0
    %2752 = vmatpush1.msra.mxu0 0.0
    %2753 = vmatprep.subr.mxu0 0.0
    %2754 = vmatpush1.msra.mxu0 0.0
    %2755 = vmatprep.subr.mxu0 0.0
    %2756 = vmatpush1.msra.mxu0 0.0
    %2757 = vmatprep.subr.mxu0 0.0
    %2758 = vmatpush1.msra.mxu0 0.0
    %2759 = vmatprep.mubr.f32.mxu0 0.0
    %2760 = vmatmul.mubr.f32.gmra.mrb[0].mxu0 %v2693
    %v2761 = vpop.f32.mrb[0].mxu0
    %v2762 = vadd.f32 0.0, %v2761
    %v2763 = vpop.f32.mrb[0].mxu0
    %2764 = vdwg.mxu0
    %2765 = vrot.lane.b32.xlu0 %v1981, 64
    %v2766 = vpop.permute.xlu0 %2765
    %v2769 = vsel %vm187, %v2676, 0
    %2771 = vmatprep.subr.mxu0 0.0
    %2772 = vmatpush1.msra.mxu0 %v2766
    %2773 = vmatprep.subr.mxu0 0.0
    %2774 = vmatpush1.msra.mxu0 0.0
    %2775 = vmatprep.subr.mxu0 0.0
    %2776 = vmatpush1.msra.mxu0 0.0
    %2777 = vmatprep.subr.mxu0 0.0
    %2778 = vmatpush1.msra.mxu0 0.0
    %2779 = vmatprep.subr.mxu0 0.0
    %2780 = vmatpush1.msra.mxu0 0.0
    %2781 = vmatprep.subr.mxu0 0.0
    %2782 = vmatpush1.msra.mxu0 0.0
    %2783 = vmatprep.subr.mxu0 0.0
    %2784 = vmatpush1.msra.mxu0 0.0
    %2785 = vmatprep.subr.mxu0 0.0
    %2786 = vmatpush1.msra.mxu0 0.0
    %2787 = vmatprep.subr.mxu0 0.0
    %2788 = vmatpush1.msra.mxu0 0.0
    %2789 = vmatprep.subr.mxu0 0.0
    %2790 = vmatpush1.msra.mxu0 0.0
    %2791 = vmatprep.subr.mxu0 0.0
    %2792 = vmatpush1.msra.mxu0 0.0
    %2793 = vmatprep.subr.mxu0 0.0
    %2794 = vmatpush1.msra.mxu0 0.0
    %2795 = vmatprep.subr.mxu0 0.0
    %2796 = vmatpush1.msra.mxu0 0.0
    %2797 = vmatprep.subr.mxu0 0.0
    %2798 = vmatpush1.msra.mxu0 0.0
    %2799 = vmatprep.subr.mxu0 0.0
    %2800 = vmatpush1.msra.mxu0 0.0
    %2801 = vmatprep.subr.mxu0 0.0
    %2802 = vmatpush1.msra.mxu0 0.0
    %2803 = vmatprep.subr.mxu0 0.0
    %2804 = vmatpush1.msra.mxu0 0.0
    %2805 = vmatprep.subr.mxu0 0.0
    %2806 = vmatpush1.msra.mxu0 0.0
    %2807 = vmatprep.subr.mxu0 0.0
    %2808 = vmatpush1.msra.mxu0 0.0
    %2809 = vmatprep.subr.mxu0 0.0
    %2810 = vmatpush1.msra.mxu0 0.0
    %2811 = vmatprep.subr.mxu0 0.0
    %2812 = vmatpush1.msra.mxu0 0.0
    %2813 = vmatprep.subr.mxu0 0.0
    %2814 = vmatpush1.msra.mxu0 0.0
    %2815 = vmatprep.subr.mxu0 0.0
    %2816 = vmatpush1.msra.mxu0 0.0
    %2817 = vmatprep.subr.mxu0 0.0
    %2818 = vmatpush1.msra.mxu0 0.0
    %2819 = vmatprep.subr.mxu0 0.0
    %2820 = vmatpush1.msra.mxu0 0.0
    %2821 = vmatprep.subr.mxu0 0.0
    %2822 = vmatpush1.msra.mxu0 0.0
    %2823 = vmatprep.subr.mxu0 0.0
    %2824 = vmatpush1.msra.mxu0 0.0
    %2825 = vmatprep.subr.mxu0 0.0
    %2826 = vmatpush1.msra.mxu0 0.0
    %2827 = vmatprep.subr.mxu0 0.0
    %2828 = vmatpush1.msra.mxu0 0.0
    %2829 = vmatprep.subr.mxu0 0.0
    %2830 = vmatpush1.msra.mxu0 0.0
    %2831 = vmatprep.subr.mxu0 0.0
    %2832 = vmatpush1.msra.mxu0 0.0
    %2833 = vmatprep.subr.mxu0 0.0
    %2834 = vmatpush1.msra.mxu0 0.0
    %2835 = vmatprep.mubr.f32.mxu0 0.0
    %2836 = vmatmul.mubr.f32.gmra.mrb[0].mxu0 %v2769
    %v2837 = vpop.f32.mrb[0].mxu0
    %v2838 = vadd.f32 0.0, %v2837
    %v2839 = vpop.f32.mrb[0].mxu0
    %2840 = vdwg.mxu0
    %2841 = vrot.lane.b32.xlu0 %v1983, 64
    %v2842 = vpop.permute.xlu0 %2841
    %v2845 = vsel %vm187, %v2678, 0
    %2847 = vmatprep.subr.mxu0 0.0
    %2848 = vmatpush1.msra.mxu0 %v2842
    %2849 = vmatprep.subr.mxu0 0.0
    %2850 = vmatpush1.msra.mxu0 0.0
    %2851 = vmatprep.subr.mxu0 0.0
    %2852 = vmatpush1.msra.mxu0 0.0
    %2853 = vmatprep.subr.mxu0 0.0
    %2854 = vmatpush1.msra.mxu0 0.0
    %2855 = vmatprep.subr.mxu0 0.0
    %2856 = vmatpush1.msra.mxu0 0.0
    %2857 = vmatprep.subr.mxu0 0.0
    %2858 = vmatpush1.msra.mxu0 0.0
    %2859 = vmatprep.subr.mxu0 0.0
    %2860 = vmatpush1.msra.mxu0 0.0
    %2861 = vmatprep.subr.mxu0 0.0
    %2862 = vmatpush1.msra.mxu0 0.0
    %2863 = vmatprep.subr.mxu0 0.0
    %2864 = vmatpush1.msra.mxu0 0.0
    %2865 = vmatprep.subr.mxu0 0.0
    %2866 = vmatpush1.msra.mxu0 0.0
    %2867 = vmatprep.subr.mxu0 0.0
    %2868 = vmatpush1.msra.mxu0 0.0
    %2869 = vmatprep.subr.mxu0 0.0
    %2870 = vmatpush1.msra.mxu0 0.0
    %2871 = vmatprep.subr.mxu0 0.0
    %2872 = vmatpush1.msra.mxu0 0.0
    %2873 = vmatprep.subr.mxu0 0.0
    %2874 = vmatpush1.msra.mxu0 0.0
    %2875 = vmatprep.subr.mxu0 0.0
    %2876 = vmatpush1.msra.mxu0 0.0
    %2877 = vmatprep.subr.mxu0 0.0
    %2878 = vmatpush1.msra.mxu0 0.0
    %2879 = vmatprep.subr.mxu0 0.0
    %2880 = vmatpush1.msra.mxu0 0.0
    %2881 = vmatprep.subr.mxu0 0.0
    %2882 = vmatpush1.msra.mxu0 0.0
    %2883 = vmatprep.subr.mxu0 0.0
    %2884 = vmatpush1.msra.mxu0 0.0
    %2885 = vmatprep.subr.mxu0 0.0
    %2886 = vmatpush1.msra.mxu0 0.0
    %2887 = vmatprep.subr.mxu0 0.0
    %2888 = vmatpush1.msra.mxu0 0.0
    %2889 = vmatprep.subr.mxu0 0.0
    %2890 = vmatpush1.msra.mxu0 0.0
    %2891 = vmatprep.subr.mxu0 0.0
    %2892 = vmatpush1.msra.mxu0 0.0
    %2893 = vmatprep.subr.mxu0 0.0
    %2894 = vmatpush1.msra.mxu0 0.0
    %2895 = vmatprep.subr.mxu0 0.0
    %2896 = vmatpush1.msra.mxu0 0.0
    %2897 = vmatprep.subr.mxu0 0.0
    %2898 = vmatpush1.msra.mxu0 0.0
    %2899 = vmatprep.subr.mxu0 0.0
    %2900 = vmatpush1.msra.mxu0 0.0
    %2901 = vmatprep.subr.mxu0 0.0
    %2902 = vmatpush1.msra.mxu0 0.0
    %2903 = vmatprep.subr.mxu0 0.0
    %2904 = vmatpush1.msra.mxu0 0.0
    %2905 = vmatprep.subr.mxu0 0.0
    %2906 = vmatpush1.msra.mxu0 0.0
    %2907 = vmatprep.subr.mxu0 0.0
    %2908 = vmatpush1.msra.mxu0 0.0
    %2909 = vmatprep.subr.mxu0 0.0
    %2910 = vmatpush1.msra.mxu0 0.0
    %2911 = vmatprep.mubr.f32.mxu0 0.0
    %2912 = vmatmul.mubr.f32.gmra.mrb[0].mxu0 %v2845
    %v2913 = vpop.f32.mrb[0].mxu0
    %v2914 = vadd.f32 0.0, %v2913
    %v2915 = vpop.f32.mrb[0].mxu0
    %2916 = vdwg.mxu0
    %2917 = vrot.lane.b32.xlu0 %v1985, 64
    %v2918 = vpop.permute.xlu0 %2917
    %v2921 = vsel %vm187, %v2680, 0
    %2923 = vmatprep.subr.mxu0 0.0
    %2924 = vmatpush1.msra.mxu0 %v2918
    %2925 = vmatprep.subr.mxu0 0.0
    %2926 = vmatpush1.msra.mxu0 0.0
    %2927 = vmatprep.subr.mxu0 0.0
    %2928 = vmatpush1.msra.mxu0 0.0
    %2929 = vmatprep.subr.mxu0 0.0
    %2930 = vmatpush1.msra.mxu0 0.0
    %2931 = vmatprep.subr.mxu0 0.0
    %2932 = vmatpush1.msra.mxu0 0.0
    %2933 = vmatprep.subr.mxu0 0.0
    %2934 = vmatpush1.msra.mxu0 0.0
    %2935 = vmatprep.subr.mxu0 0.0
    %2936 = vmatpush1.msra.mxu0 0.0
    %2937 = vmatprep.subr.mxu0 0.0
    %2938 = vmatpush1.msra.mxu0 0.0
    %2939 = vmatprep.subr.mxu0 0.0
    %2940 = vmatpush1.msra.mxu0 0.0
    %2941 = vmatprep.subr.mxu0 0.0
    %2942 = vmatpush1.msra.mxu0 0.0
    %2943 = vmatprep.subr.mxu0 0.0
    %2944 = vmatpush1.msra.mxu0 0.0
    %2945 = vmatprep.subr.mxu0 0.0
    %2946 = vmatpush1.msra.mxu0 0.0
    %2947 = vmatprep.subr.mxu0 0.0
    %2948 = vmatpush1.msra.mxu0 0.0
    %2949 = vmatprep.subr.mxu0 0.0
    %2950 = vmatpush1.msra.mxu0 0.0
    %2951 = vmatprep.subr.mxu0 0.0
    %2952 = vmatpush1.msra.mxu0 0.0
    %2953 = vmatprep.subr.mxu0 0.0
    %2954 = vmatpush1.msra.mxu0 0.0
    %2955 = vmatprep.subr.mxu0 0.0
    %2956 = vmatpush1.msra.mxu0 0.0
    %2957 = vmatprep.subr.mxu0 0.0
    %2958 = vmatpush1.msra.mxu0 0.0
    %2959 = vmatprep.subr.mxu0 0.0
    %2960 = vmatpush1.msra.mxu0 0.0
    %2961 = vmatprep.subr.mxu0 0.0
    %2962 = vmatpush1.msra.mxu0 0.0
    %2963 = vmatprep.subr.mxu0 0.0
    %2964 = vmatpush1.msra.mxu0 0.0
    %2965 = vmatprep.subr.mxu0 0.0
    %2966 = vmatpush1.msra.mxu0 0.0
    %2967 = vmatprep.subr.mxu0 0.0
    %2968 = vmatpush1.msra.mxu0 0.0
    %2969 = vmatprep.subr.mxu0 0.0
    %2970 = vmatpush1.msra.mxu0 0.0
    %2971 = vmatprep.subr.mxu0 0.0
    %2972 = vmatpush1.msra.mxu0 0.0
    %2973 = vmatprep.subr.mxu0 0.0
    %2974 = vmatpush1.msra.mxu0 0.0
    %2975 = vmatprep.subr.mxu0 0.0
    %2976 = vmatpush1.msra.mxu0 0.0
    %2977 = vmatprep.subr.mxu0 0.0
    %2978 = vmatpush1.msra.mxu0 0.0
    %2979 = vmatprep.subr.mxu0 0.0
    %2980 = vmatpush1.msra.mxu0 0.0
    %2981 = vmatprep.subr.mxu0 0.0
    %2982 = vmatpush1.msra.mxu0 0.0
    %2983 = vmatprep.subr.mxu0 0.0
    %2984 = vmatpush1.msra.mxu0 0.0
    %2985 = vmatprep.subr.mxu0 0.0
    %2986 = vmatpush1.msra.mxu0 0.0
    %2987 = vmatprep.mubr.f32.mxu0 0.0
    %2988 = vmatmul.mubr.f32.gmra.mrb[0].mxu0 %v2921
    %v2989 = vpop.f32.mrb[0].mxu0
    %v2990 = vadd.f32 0.0, %v2989
    %v2991 = vpop.f32.mrb[0].mxu0
    %2992 = vdwg.mxu0
    %2993 = vrot.lane.b32.xlu0 %v1976, 64
    %v2994 = vpop.permute.xlu0 %2993
    %v2997 = vsel %vm187, %v2682, 0
    %2999 = vmatprep.subr.mxu0 0.0
    %3000 = vmatpush1.msra.mxu0 %v2994
    %3001 = vmatprep.subr.mxu0 0.0
    %3002 = vmatpush1.msra.mxu0 0.0
    %3003 = vmatprep.subr.mxu0 0.0
    %3004 = vmatpush1.msra.mxu0 0.0
    %3005 = vmatprep.subr.mxu0 0.0
    %3006 = vmatpush1.msra.mxu0 0.0
    %3007 = vmatprep.subr.mxu0 0.0
    %3008 = vmatpush1.msra.mxu0 0.0
    %3009 = vmatprep.subr.mxu0 0.0
    %3010 = vmatpush1.msra.mxu0 0.0
    %3011 = vmatprep.subr.mxu0 0.0
    %3012 = vmatpush1.msra.mxu0 0.0
    %3013 = vmatprep.subr.mxu0 0.0
    %3014 = vmatpush1.msra.mxu0 0.0
    %3015 = vmatprep.subr.mxu0 0.0
    %3016 = vmatpush1.msra.mxu0 0.0
    %3017 = vmatprep.subr.mxu0 0.0
    %3018 = vmatpush1.msra.mxu0 0.0
    %3019 = vmatprep.subr.mxu0 0.0
    %3020 = vmatpush1.msra.mxu0 0.0
    %3021 = vmatprep.subr.mxu0 0.0
    %3022 = vmatpush1.msra.mxu0 0.0
    %3023 = vmatprep.subr.mxu0 0.0
    %3024 = vmatpush1.msra.mxu0 0.0
    %3025 = vmatprep.subr.mxu0 0.0
    %3026 = vmatpush1.msra.mxu0 0.0
    %3027 = vmatprep.subr.mxu0 0.0
    %3028 = vmatpush1.msra.mxu0 0.0
    %3029 = vmatprep.subr.mxu0 0.0
    %3030 = vmatpush1.msra.mxu0 0.0
    %3031 = vmatprep.subr.mxu0 0.0
    %3032 = vmatpush1.msra.mxu0 0.0
    %3033 = vmatprep.subr.mxu0 0.0
    %3034 = vmatpush1.msra.mxu0 0.0
    %3035 = vmatprep.subr.mxu0 0.0
    %3036 = vmatpush1.msra.mxu0 0.0
    %3037 = vmatprep.subr.mxu0 0.0
    %3038 = vmatpush1.msra.mxu0 0.0
    %3039 = vmatprep.subr.mxu0 0.0
    %3040 = vmatpush1.msra.mxu0 0.0
    %3041 = vmatprep.subr.mxu0 0.0
    %3042 = vmatpush1.msra.mxu0 0.0
    %3043 = vmatprep.subr.mxu0 0.0
    %3044 = vmatpush1.msra.mxu0 0.0
    %3045 = vmatprep.subr.mxu0 0.0
    %3046 = vmatpush1.msra.mxu0 0.0
    %3047 = vmatprep.subr.mxu0 0.0
    %3048 = vmatpush1.msra.mxu0 0.0
    %3049 = vmatprep.subr.mxu0 0.0
    %3050 = vmatpush1.msra.mxu0 0.0
    %3051 = vmatprep.subr.mxu0 0.0
    %3052 = vmatpush1.msra.mxu0 0.0
    %3053 = vmatprep.subr.mxu0 0.0
    %3054 = vmatpush1.msra.mxu0 0.0
    %3055 = vmatprep.subr.mxu0 0.0
    %3056 = vmatpush1.msra.mxu0 0.0
    %3057 = vmatprep.subr.mxu0 0.0
    %3058 = vmatpush1.msra.mxu0 0.0
    %3059 = vmatprep.subr.mxu0 0.0
    %3060 = vmatpush1.msra.mxu0 0.0
    %3061 = vmatprep.subr.mxu0 0.0
    %3062 = vmatpush1.msra.mxu0 0.0
    %3063 = vmatprep.mubr.f32.mxu0 0.0
    %3064 = vmatmul.mubr.f32.gmra.mrb[0].mxu0 %v2997
    %v3065 = vpop.f32.mrb[0].mxu0
    %v3066 = vadd.f32 0.0, %v3065
    %v3067 = vpop.f32.mrb[0].mxu0
    %3068 = vdwg.mxu0
    %3069 = vrot.lane.b32.xlu0 %v1988, 64
    %v3070 = vpop.permute.xlu0 %3069
    %v3073 = vsel %vm187, %v2684, 0
    %3075 = vmatprep.subr.mxu0 0.0
    %3076 = vmatpush1.msra.mxu0 %v3070
    %3077 = vmatprep.subr.mxu0 0.0
    %3078 = vmatpush1.msra.mxu0 0.0
    %3079 = vmatprep.subr.mxu0 0.0
    %3080 = vmatpush1.msra.mxu0 0.0
    %3081 = vmatprep.subr.mxu0 0.0
    %3082 = vmatpush1.msra.mxu0 0.0
    %3083 = vmatprep.subr.mxu0 0.0
    %3084 = vmatpush1.msra.mxu0 0.0
    %3085 = vmatprep.subr.mxu0 0.0
    %3086 = vmatpush1.msra.mxu0 0.0
    %3087 = vmatprep.subr.mxu0 0.0
    %3088 = vmatpush1.msra.mxu0 0.0
    %3089 = vmatprep.subr.mxu0 0.0
    %3090 = vmatpush1.msra.mxu0 0.0
    %3091 = vmatprep.subr.mxu0 0.0
    %3092 = vmatpush1.msra.mxu0 0.0
    %3093 = vmatprep.subr.mxu0 0.0
    %3094 = vmatpush1.msra.mxu0 0.0
    %3095 = vmatprep.subr.mxu0 0.0
    %3096 = vmatpush1.msra.mxu0 0.0
    %3097 = vmatprep.subr.mxu0 0.0
    %3098 = vmatpush1.msra.mxu0 0.0
    %3099 = vmatprep.subr.mxu0 0.0
    %3100 = vmatpush1.msra.mxu0 0.0
    %3101 = vmatprep.subr.mxu0 0.0
    %3102 = vmatpush1.msra.mxu0 0.0
    %3103 = vmatprep.subr.mxu0 0.0
    %3104 = vmatpush1.msra.mxu0 0.0
    %3105 = vmatprep.subr.mxu0 0.0
    %3106 = vmatpush1.msra.mxu0 0.0
    %3107 = vmatprep.subr.mxu0 0.0
    %3108 = vmatpush1.msra.mxu0 0.0
    %3109 = vmatprep.subr.mxu0 0.0
    %3110 = vmatpush1.msra.mxu0 0.0
    %3111 = vmatprep.subr.mxu0 0.0
    %3112 = vmatpush1.msra.mxu0 0.0
    %3113 = vmatprep.subr.mxu0 0.0
    %3114 = vmatpush1.msra.mxu0 0.0
    %3115 = vmatprep.subr.mxu0 0.0
    %3116 = vmatpush1.msra.mxu0 0.0
    %3117 = vmatprep.subr.mxu0 0.0
    %3118 = vmatpush1.msra.mxu0 0.0
    %3119 = vmatprep.subr.mxu0 0.0
    %3120 = vmatpush1.msra.mxu0 0.0
    %3121 = vmatprep.subr.mxu0 0.0
    %3122 = vmatpush1.msra.mxu0 0.0
    %3123 = vmatprep.subr.mxu0 0.0
    %3124 = vmatpush1.msra.mxu0 0.0
    %3125 = vmatprep.subr.mxu0 0.0
    %3126 = vmatpush1.msra.mxu0 0.0
    %3127 = vmatprep.subr.mxu0 0.0
    %3128 = vmatpush1.msra.mxu0 0.0
    %3129 = vmatprep.subr.mxu0 0.0
    %3130 = vmatpush1.msra.mxu0 0.0
    %3131 = vmatprep.subr.mxu0 0.0
    %3132 = vmatpush1.msra.mxu0 0.0
    %3133 = vmatprep.subr.mxu0 0.0
    %3134 = vmatpush1.msra.mxu0 0.0
    %3135 = vmatprep.subr.mxu0 0.0
    %3136 = vmatpush1.msra.mxu0 0.0
    %3137 = vmatprep.subr.mxu0 0.0
    %3138 = vmatpush1.msra.mxu0 0.0
    %3139 = vmatprep.mubr.f32.mxu0 0.0
    %3140 = vmatmul.mubr.f32.gmra.mrb[0].mxu0 %v3073
    %v3141 = vpop.f32.mrb[0].mxu0
    %v3142 = vadd.f32 0.0, %v3141
    %v3143 = vpop.f32.mrb[0].mxu0
    %3144 = vdwg.mxu0
    %3145 = vrot.lane.b32.xlu0 %v1990, 64
    %v3146 = vpop.permute.xlu0 %3145
    %v3149 = vsel %vm187, %v2686, 0
    %3151 = vmatprep.subr.mxu0 0.0
    %3152 = vmatpush1.msra.mxu0 %v3146
    %3153 = vmatprep.subr.mxu0 0.0
    %3154 = vmatpush1.msra.mxu0 0.0
    %3155 = vmatprep.subr.mxu0 0.0
    %3156 = vmatpush1.msra.mxu0 0.0
    %3157 = vmatprep.subr.mxu0 0.0
    %3158 = vmatpush1.msra.mxu0 0.0
    %3159 = vmatprep.subr.mxu0 0.0
    %3160 = vmatpush1.msra.mxu0 0.0
    %3161 = vmatprep.subr.mxu0 0.0
    %3162 = vmatpush1.msra.mxu0 0.0
    %3163 = vmatprep.subr.mxu0 0.0
    %3164 = vmatpush1.msra.mxu0 0.0
    %3165 = vmatprep.subr.mxu0 0.0
    %3166 = vmatpush1.msra.mxu0 0.0
    %3167 = vmatprep.subr.mxu0 0.0
    %3168 = vmatpush1.msra.mxu0 0.0
    %3169 = vmatprep.subr.mxu0 0.0
    %3170 = vmatpush1.msra.mxu0 0.0
    %3171 = vmatprep.subr.mxu0 0.0
    %3172 = vmatpush1.msra.mxu0 0.0
    %3173 = vmatprep.subr.mxu0 0.0
    %3174 = vmatpush1.msra.mxu0 0.0
    %3175 = vmatprep.subr.mxu0 0.0
    %3176 = vmatpush1.msra.mxu0 0.0
    %3177 = vmatprep.subr.mxu0 0.0
    %3178 = vmatpush1.msra.mxu0 0.0
    %3179 = vmatprep.subr.mxu0 0.0
    %3180 = vmatpush1.msra.mxu0 0.0
    %3181 = vmatprep.subr.mxu0 0.0
    %3182 = vmatpush1.msra.mxu0 0.0
    %3183 = vmatprep.subr.mxu0 0.0
    %3184 = vmatpush1.msra.mxu0 0.0
    %3185 = vmatprep.subr.mxu0 0.0
    %3186 = vmatpush1.msra.mxu0 0.0
    %3187 = vmatprep.subr.mxu0 0.0
    %3188 = vmatpush1.msra.mxu0 0.0
    %3189 = vmatprep.subr.mxu0 0.0
    %3190 = vmatpush1.msra.mxu0 0.0
    %3191 = vmatprep.subr.mxu0 0.0
    %3192 = vmatpush1.msra.mxu0 0.0
    %3193 = vmatprep.subr.mxu0 0.0
    %3194 = vmatpush1.msra.mxu0 0.0
    %3195 = vmatprep.subr.mxu0 0.0
    %3196 = vmatpush1.msra.mxu0 0.0
    %3197 = vmatprep.subr.mxu0 0.0
    %3198 = vmatpush1.msra.mxu0 0.0
    %3199 = vmatprep.subr.mxu0 0.0
    %3200 = vmatpush1.msra.mxu0 0.0
    %3201 = vmatprep.subr.mxu0 0.0
    %3202 = vmatpush1.msra.mxu0 0.0
    %3203 = vmatprep.subr.mxu0 0.0
    %3204 = vmatpush1.msra.mxu0 0.0
    %3205 = vmatprep.subr.mxu0 0.0
    %3206 = vmatpush1.msra.mxu0 0.0
    %3207 = vmatprep.subr.mxu0 0.0
    %3208 = vmatpush1.msra.mxu0 0.0
    %3209 = vmatprep.subr.mxu0 0.0
    %3210 = vmatpush1.msra.mxu0 0.0
    %3211 = vmatprep.subr.mxu0 0.0
    %3212 = vmatpush1.msra.mxu0 0.0
    %3213 = vmatprep.subr.mxu0 0.0
    %3214 = vmatpush1.msra.mxu0 0.0
    %3215 = vmatprep.mubr.f32.mxu0 0.0
    %3216 = vmatmul.mubr.f32.gmra.mrb[0].mxu0 %v3149
    %v3217 = vpop.f32.mrb[0].mxu0
    %v3218 = vadd.f32 0.0, %v3217
    %v3219 = vpop.f32.mrb[0].mxu0
    %3220 = vdwg.mxu0
    %3221 = vrot.lane.b32.xlu0 %v1992, 64
    %v3222 = vpop.permute.xlu0 %3221
    %v3225 = vsel %vm187, %v2688, 0
    %3227 = vmatprep.subr.mxu0 0.0
    %3228 = vmatpush1.msra.mxu0 %v3222
    %3229 = vmatprep.subr.mxu0 0.0
    %3230 = vmatpush1.msra.mxu0 0.0
    %3231 = vmatprep.subr.mxu0 0.0
    %3232 = vmatpush1.msra.mxu0 0.0
    %3233 = vmatprep.subr.mxu0 0.0
    %3234 = vmatpush1.msra.mxu0 0.0
    %3235 = vmatprep.subr.mxu0 0.0
    %3236 = vmatpush1.msra.mxu0 0.0
    %3237 = vmatprep.subr.mxu0 0.0
    %3238 = vmatpush1.msra.mxu0 0.0
    %3239 = vmatprep.subr.mxu0 0.0
    %3240 = vmatpush1.msra.mxu0 0.0
    %3241 = vmatprep.subr.mxu0 0.0
    %3242 = vmatpush1.msra.mxu0 0.0
    %3243 = vmatprep.subr.mxu0 0.0
    %3244 = vmatpush1.msra.mxu0 0.0
    %3245 = vmatprep.subr.mxu0 0.0
    %3246 = vmatpush1.msra.mxu0 0.0
    %3247 = vmatprep.subr.mxu0 0.0
    %3248 = vmatpush1.msra.mxu0 0.0
    %3249 = vmatprep.subr.mxu0 0.0
    %3250 = vmatpush1.msra.mxu0 0.0
    %3251 = vmatprep.subr.mxu0 0.0
    %3252 = vmatpush1.msra.mxu0 0.0
    %3253 = vmatprep.subr.mxu0 0.0
    %3254 = vmatpush1.msra.mxu0 0.0
    %3255 = vmatprep.subr.mxu0 0.0
    %3256 = vmatpush1.msra.mxu0 0.0
    %3257 = vmatprep.subr.mxu0 0.0
    %3258 = vmatpush1.msra.mxu0 0.0
    %3259 = vmatprep.subr.mxu0 0.0
    %3260 = vmatpush1.msra.mxu0 0.0
    %3261 = vmatprep.subr.mxu0 0.0
    %3262 = vmatpush1.msra.mxu0 0.0
    %3263 = vmatprep.subr.mxu0 0.0
    %3264 = vmatpush1.msra.mxu0 0.0
    %3265 = vmatprep.subr.mxu0 0.0
    %3266 = vmatpush1.msra.mxu0 0.0
    %3267 = vmatprep.subr.mxu0 0.0
    %3268 = vmatpush1.msra.mxu0 0.0
    %3269 = vmatprep.subr.mxu0 0.0
    %3270 = vmatpush1.msra.mxu0 0.0
    %3271 = vmatprep.subr.mxu0 0.0
    %3272 = vmatpush1.msra.mxu0 0.0
    %3273 = vmatprep.subr.mxu0 0.0
    %3274 = vmatpush1.msra.mxu0 0.0
    %3275 = vmatprep.subr.mxu0 0.0
    %3276 = vmatpush1.msra.mxu0 0.0
    %3277 = vmatprep.subr.mxu0 0.0
    %3278 = vmatpush1.msra.mxu0 0.0
    %3279 = vmatprep.subr.mxu0 0.0
    %3280 = vmatpush1.msra.mxu0 0.0
    %3281 = vmatprep.subr.mxu0 0.0
    %3282 = vmatpush1.msra.mxu0 0.0
    %3283 = vmatprep.subr.mxu0 0.0
    %3284 = vmatpush1.msra.mxu0 0.0
    %3285 = vmatprep.subr.mxu0 0.0
    %3286 = vmatpush1.msra.mxu0 0.0
    %3287 = vmatprep.subr.mxu0 0.0
    %3288 = vmatpush1.msra.mxu0 0.0
    %3289 = vmatprep.subr.mxu0 0.0
    %3290 = vmatpush1.msra.mxu0 0.0
    %3291 = vmatprep.mubr.f32.mxu0 0.0
    %3292 = vmatmul.mubr.f32.gmra.mrb[0].mxu0 %v3225
    %v3293 = vpop.f32.mrb[0].mxu0
    %v3294 = vadd.f32 0.0, %v3293
    %v3295 = vpop.f32.mrb[0].mxu0
    %3296 = vdwg.mxu0
    %3298 = vrot.lane.b32.xlu0 %v2838, 8
    %v3299 = vpop.permute.xlu0 %3298
    %3302 = vrot.lane.b32.xlu0 %v2914, 16
    %v3303 = vpop.permute.xlu0 %3302
    %3306 = vrot.lane.b32.xlu0 %v2990, 24
    %v3307 = vpop.permute.xlu0 %3306
    %v3309 = vsel %vm187, %v2762, %v3299
    %v3310 = vsel %vm1503, %v3309, %v3303
    %v3311 = vsel %vm1505, %v3310, %v3307
    %3313 = vrot.lane.b32.xlu0 %v3142, 8
    %v3314 = vpop.permute.xlu0 %3313
    %3317 = vrot.lane.b32.xlu0 %v3218, 16
    %v3318 = vpop.permute.xlu0 %3317
    %3321 = vrot.lane.b32.xlu0 %v3294, 24
    %v3322 = vpop.permute.xlu0 %3321
    %v3324 = vsel %vm187, %v3066, %v3314
    %v3325 = vsel %vm1503, %v3324, %v3318
    %v3326 = vsel %vm1505, %v3325, %v3322
    %s3327 = scalar_lea.vmem %s4, 32
    %v3328 = vld [vmem:[%s3327] sm:$0xff]
    %v3329 = vld [vmem:[%s3327 + $0x8] sm:$0xff]
    %v3330 = vld [vmem:[%s3327 + $0x10] sm:$0xff]
    %v3331 = vld [vmem:[%s3327 + $0x18] sm:$0xff]
    %v3333 = vsel %vm39, %v3311, 0
    %v3336 = vsel %vm39, %v3326, 0
    %3338 = vmatprep.subr.mxu0 0.0
    %3339 = vmatpush1.msra.mxu0 %v3328
    %3340 = vmatprep.subr.mxu0 0.0
    %3341 = vmatpush1.msra.mxu0 %v3329
    %3342 = vmatprep.subr.mxu0 0.0
    %3343 = vmatpush1.msra.mxu0 %v3330
    %3344 = vmatprep.subr.mxu0 0.0
    %3345 = vmatpush1.msra.mxu0 %v3331
    %3346 = vmatprep.subr.mxu0 0.0
    %3347 = vmatpush1.msra.mxu0 0.0
    %3348 = vmatprep.subr.mxu0 0.0
    %3349 = vmatpush1.msra.mxu0 0.0
    %3350 = vmatprep.subr.mxu0 0.0
    %3351 = vmatpush1.msra.mxu0 0.0
    %3352 = vmatprep.subr.mxu0 0.0
    %3353 = vmatpush1.msra.mxu0 0.0
    %3354 = vmatprep.subr.mxu0 0.0
    %3355 = vmatpush1.msra.mxu0 0.0
    %3356 = vmatprep.subr.mxu0 0.0
    %3357 = vmatpush1.msra.mxu0 0.0
    %3358 = vmatprep.subr.mxu0 0.0
    %3359 = vmatpush1.msra.mxu0 0.0
    %3360 = vmatprep.subr.mxu0 0.0
    %3361 = vmatpush1.msra.mxu0 0.0
    %3362 = vmatprep.subr.mxu0 0.0
    %3363 = vmatpush1.msra.mxu0 0.0
    %3364 = vmatprep.subr.mxu0 0.0
    %3365 = vmatpush1.msra.mxu0 0.0
    %3366 = vmatprep.subr.mxu0 0.0
    %3367 = vmatpush1.msra.mxu0 0.0
    %3368 = vmatprep.subr.mxu0 0.0
    %3369 = vmatpush1.msra.mxu0 0.0
    %3370 = vmatprep.subr.mxu0 0.0
    %3371 = vmatpush1.msra.mxu0 0.0
    %3372 = vmatprep.subr.mxu0 0.0
    %3373 = vmatpush1.msra.mxu0 0.0
    %3374 = vmatprep.subr.mxu0 0.0
    %3375 = vmatpush1.msra.mxu0 0.0
    %3376 = vmatprep.subr.mxu0 0.0
    %3377 = vmatpush1.msra.mxu0 0.0
    %3378 = vmatprep.subr.mxu0 0.0
    %3379 = vmatpush1.msra.mxu0 0.0
    %3380 = vmatprep.subr.mxu0 0.0
    %3381 = vmatpush1.msra.mxu0 0.0
    %3382 = vmatprep.subr.mxu0 0.0
    %3383 = vmatpush1.msra.mxu0 0.0
    %3384 = vmatprep.subr.mxu0 0.0
    %3385 = vmatpush1.msra.mxu0 0.0
    %3386 = vmatprep.subr.mxu0 0.0
    %3387 = vmatpush1.msra.mxu0 0.0
    %3388 = vmatprep.subr.mxu0 0.0
    %3389 = vmatpush1.msra.mxu0 0.0
    %3390 = vmatprep.subr.mxu0 0.0
    %3391 = vmatpush1.msra.mxu0 0.0
    %3392 = vmatprep.subr.mxu0 0.0
    %3393 = vmatpush1.msra.mxu0 0.0
    %3394 = vmatprep.subr.mxu0 0.0
    %3395 = vmatpush1.msra.mxu0 0.0
    %3396 = vmatprep.subr.mxu0 0.0
    %3397 = vmatpush1.msra.mxu0 0.0
    %3398 = vmatprep.subr.mxu0 0.0
    %3399 = vmatpush1.msra.mxu0 0.0
    %3400 = vmatprep.subr.mxu0 0.0
    %3401 = vmatpush1.msra.mxu0 0.0
    %3402 = vmatprep.mubr.f32.mxu0 0.0
    %3403 = vmatmul.mubr.f32.gmra.mrb[0].mxu0 %v3333
    %v3404 = vpop.f32.mrb[0].mxu0
    %v3405 = vadd.f32 0.0, %v3404
    %v3406 = vpop.f32.mrb[0].mxu0
    %3407 = vmatprep.mubr.f32.mxu0 0.0
    %3408 = vmatmul.mubr.f32.gmra.mrb[0].mxu0 %v3336
    %v3409 = vpop.f32.mrb[0].mxu0
    %v3410 = vadd.f32 0.0, %v3409
    %v3411 = vpop.f32.mrb[0].mxu0
    %3412 = vdwg.mxu0
    %v3413 = vadd.f32 %v1843, %v3405
    %v3414 = vadd.f32 %v1844, %v3410
    %v3415 = vlaneseq
    %v3416 = vshrl.u32 %v3415, 7
    %v3417 = vsub.s32 4, %v3416
    %v3418 = vrot.slane %v1846, %v3417
    %v3419 = vadd.f32 %v3413, %v3418
    %v3420 = vadd.f32 %v3414, %v3418
    %v3421 = vsel %vm39, %v3419, 0.0
    %3422 = vadd.xlane.f32.xlu0 %v3421
    %v3423 = vpop.xlane.xlu0 %3422
    %v3424 = vsel %vm39, %v3420, 0.0
    %3425 = vadd.xlane.f32.xlu0 %v3424
    %v3426 = vpop.xlane.xlu0 %3425
    %v3427 = vmul.f32 %v3423, %v46
    %v3428 = vmul.f32 %v3426, %v46
    %v3429 = vsub.f32 %v3419, %v3427
    %v3430 = vsub.f32 %v3420, %v3428
    %v3431 = vmul.f32 %v3429, %v3429
    %v3432 = vmul.f32 %v3430, %v3430
    %v3433 = vsel %vm39, %v3431, 0.0
    %3434 = vadd.xlane.f32.xlu0 %v3433
    %v3435 = vpop.xlane.xlu0 %3434
    %v3436 = vsel %vm39, %v3432, 0.0
    %3437 = vadd.xlane.f32.xlu0 %v3436
    %v3438 = vpop.xlane.xlu0 %3437
    %v3439 = vmul.f32 %v3435, %v46
    %v3440 = vmul.f32 %v3438, %v46
    %v3441 = vadd.f32 %v3439, 1e-05
    %v3442 = vadd.f32 %v3440, 1e-05
    %v3443 = vrsqrt.pop %v3441
    %v3444 = vrsqrt.pop %v3442
    %v3445 = vmul.f32 %v3429, %v3443
    %v3446 = vmul.f32 %v3430, %v3444
    %v3447 = vlaneseq
    %v3448 = vshrl.u32 %v3447, 7
    %v3449 = vsub.s32 2, %v3448
    %v3450 = vrot.slane %v1846, %v3449
    %v3451 = vmul.f32 %v3445, %v3450
    %v3452 = vmul.f32 %v3446, %v3450
    %v3453 = vlaneseq
    %v3454 = vshrl.u32 %v3453, 7
    %v3455 = vsub.s32 3, %v3454
    %v3456 = vrot.slane %v1846, %v3455
    %v3457 = vadd.f32 %v3451, %v3456
    %v3458 = vadd.f32 %v3452, %v3456
    %s3459 = scalar_lea.vmem %s5, 32
    %v3460 = vld [vmem:[%s3459] sm:$0xff]
    %v3461 = vld [vmem:[%s3459 + $0x8] sm:$0xff]
    %v3462 = vld [vmem:[%s3459 + $0x10] sm:$0xff]
    %v3463 = vld [vmem:[%s3459 + $0x18] sm:$0xff]
    %s3464 = scalar_lea.vmem %s6, 1
    %v3465 = vld [vmem:[%s3464] sm:$0x1]
    %v3467 = vlaneseq
    %v3468 = vshrl.u32 %v3467, 7
    %v3469 = vsub.s32 0, %v3468
    %v3470 = vrot.slane %v3465, %v3469
    %v3473 = vsel %vm39, %v3457, 0
    %v3476 = vsel %vm39, %v3458, 0
    %3478 = vmatprep.subr.mxu0 0.0
    %3479 = vmatpush1.msra.mxu0 %v3460
    %3480 = vmatprep.subr.mxu0 0.0
    %3481 = vmatpush1.msra.mxu0 %v3461
    %3482 = vmatprep.subr.mxu0 0.0
    %3483 = vmatpush1.msra.mxu0 %v3462
    %3484 = vmatprep.subr.mxu0 0.0
    %3485 = vmatpush1.msra.mxu0 %v3463
    %3486 = vmatprep.subr.mxu0 0.0
    %3487 = vmatpush1.msra.mxu0 0.0
    %3488 = vmatprep.subr.mxu0 0.0
    %3489 = vmatpush1.msra.mxu0 0.0
    %3490 = vmatprep.subr.mxu0 0.0
    %3491 = vmatpush1.msra.mxu0 0.0
    %3492 = vmatprep.subr.mxu0 0.0
    %3493 = vmatpush1.msra.mxu0 0.0
    %3494 = vmatprep.subr.mxu0 0.0
    %3495 = vmatpush1.msra.mxu0 0.0
    %3496 = vmatprep.subr.mxu0 0.0
    %3497 = vmatpush1.msra.mxu0 0.0
    %3498 = vmatprep.subr.mxu0 0.0
    %3499 = vmatpush1.msra.mxu0 0.0
    %3500 = vmatprep.subr.mxu0 0.0
    %3501 = vmatpush1.msra.mxu0 0.0
    %3502 = vmatprep.subr.mxu0 0.0
    %3503 = vmatpush1.msra.mxu0 0.0
    %3504 = vmatprep.subr.mxu0 0.0
    %3505 = vmatpush1.msra.mxu0 0.0
    %3506 = vmatprep.subr.mxu0 0.0
    %3507 = vmatpush1.msra.mxu0 0.0
    %3508 = vmatprep.subr.mxu0 0.0
    %3509 = vmatpush1.msra.mxu0 0.0
    %3510 = vmatprep.subr.mxu0 0.0
    %3511 = vmatpush1.msra.mxu0 0.0
    %3512 = vmatprep.subr.mxu0 0.0
    %3513 = vmatpush1.msra.mxu0 0.0
    %3514 = vmatprep.subr.mxu0 0.0
    %3515 = vmatpush1.msra.mxu0 0.0
    %3516 = vmatprep.subr.mxu0 0.0
    %3517 = vmatpush1.msra.mxu0 0.0
    %3518 = vmatprep.subr.mxu0 0.0
    %3519 = vmatpush1.msra.mxu0 0.0
    %3520 = vmatprep.subr.mxu0 0.0
    %3521 = vmatpush1.msra.mxu0 0.0
    %3522 = vmatprep.subr.mxu0 0.0
    %3523 = vmatpush1.msra.mxu0 0.0
    %3524 = vmatprep.subr.mxu0 0.0
    %3525 = vmatpush1.msra.mxu0 0.0
    %3526 = vmatprep.subr.mxu0 0.0
    %3527 = vmatpush1.msra.mxu0 0.0
    %3528 = vmatprep.subr.mxu0 0.0
    %3529 = vmatpush1.msra.mxu0 0.0
    %3530 = vmatprep.subr.mxu0 0.0
    %3531 = vmatpush1.msra.mxu0 0.0
    %3532 = vmatprep.subr.mxu0 0.0
    %3533 = vmatpush1.msra.mxu0 0.0
    %3534 = vmatprep.subr.mxu0 0.0
    %3535 = vmatpush1.msra.mxu0 0.0
    %3536 = vmatprep.subr.mxu0 0.0
    %3537 = vmatpush1.msra.mxu0 0.0
    %3538 = vmatprep.subr.mxu0 0.0
    %3539 = vmatpush1.msra.mxu0 0.0
    %3540 = vmatprep.subr.mxu0 0.0
    %3541 = vmatpush1.msra.mxu0 0.0
    %3542 = vmatprep.mubr.f32.mxu0 0.0
    %3543 = vmatmul.mubr.f32.gmra.mrb[0].mxu0 %v3473
    %v3544 = vpop.f32.mrb[0].mxu0
    %v3545 = vadd.f32 %v3470, %v3544
    %v3546 = vpop.f32.mrb[0].mxu0
    %3547 = vmatprep.mubr.f32.mxu0 0.0
    %3548 = vmatmul.mubr.f32.gmra.mrb[0].mxu0 %v3476
    %v3549 = vpop.f32.mrb[0].mxu0
    %v3550 = vadd.f32 %v3470, %v3549
    %v3551 = vpop.f32.mrb[0].mxu0
    %3552 = vdwg.mxu0
    %v3553 = vmax.f32 %v3545, 0.0
    %v3554 = vmax.f32 %v3550, 0.0
    %s3555 = scalar_lea.vmem %s7, 64
    %v3556 = vld [vmem:[%s3555] sm:$0xff]
    %v3557 = vld [vmem:[%s3555 + $0x8] sm:$0xff]
    %v3558 = vld [vmem:[%s3555 + $0x10] sm:$0xff]
    %v3559 = vld [vmem:[%s3555 + $0x18] sm:$0xff]
    %v3560 = vld [vmem:[%s3555 + $0x20] sm:$0xff]
    %v3561 = vld [vmem:[%s3555 + $0x28] sm:$0xff]
    %v3562 = vld [vmem:[%s3555 + $0x30] sm:$0xff]
    %v3563 = vld [vmem:[%s3555 + $0x38] sm:$0xff]
    %v3565 = vsel %vm1755, %v3553, 0
    %v3568 = vsel %vm1755, %v3554, 0
    %3570 = vmatprep.subr.mxu0 0.0
    %3571 = vmatpush1.msra.mxu0 %v3556
    %3572 = vmatprep.subr.mxu0 0.0
    %3573 = vmatpush1.msra.mxu0 %v3557
    %3574 = vmatprep.subr.mxu0 0.0
    %3575 = vmatpush1.msra.mxu0 %v3558
    %3576 = vmatprep.subr.mxu0 0.0
    %3577 = vmatpush1.msra.mxu0 %v3559
    %3578 = vmatprep.subr.mxu0 0.0
    %3579 = vmatpush1.msra.mxu0 %v3560
    %3580 = vmatprep.subr.mxu0 0.0
    %3581 = vmatpush1.msra.mxu0 %v3561
    %3582 = vmatprep.subr.mxu0 0.0
    %3583 = vmatpush1.msra.mxu0 %v3562
    %3584 = vmatprep.subr.mxu0 0.0
    %3585 = vmatpush1.msra.mxu0 %v3563
    %3586 = vmatprep.subr.mxu0 0.0
    %3587 = vmatpush1.msra.mxu0 0.0
    %3588 = vmatprep.subr.mxu0 0.0
    %3589 = vmatpush1.msra.mxu0 0.0
    %3590 = vmatprep.subr.mxu0 0.0
    %3591 = vmatpush1.msra.mxu0 0.0
    %3592 = vmatprep.subr.mxu0 0.0
    %3593 = vmatpush1.msra.mxu0 0.0
    %3594 = vmatprep.subr.mxu0 0.0
    %3595 = vmatpush1.msra.mxu0 0.0
    %3596 = vmatprep.subr.mxu0 0.0
    %3597 = vmatpush1.msra.mxu0 0.0
    %3598 = vmatprep.subr.mxu0 0.0
    %3599 = vmatpush1.msra.mxu0 0.0
    %3600 = vmatprep.subr.mxu0 0.0
    %3601 = vmatpush1.msra.mxu0 0.0
    %3602 = vmatprep.subr.mxu0 0.0
    %3603 = vmatpush1.msra.mxu0 0.0
    %3604 = vmatprep.subr.mxu0 0.0
    %3605 = vmatpush1.msra.mxu0 0.0
    %3606 = vmatprep.subr.mxu0 0.0
    %3607 = vmatpush1.msra.mxu0 0.0
    %3608 = vmatprep.subr.mxu0 0.0
    %3609 = vmatpush1.msra.mxu0 0.0
    %3610 = vmatprep.subr.mxu0 0.0
    %3611 = vmatpush1.msra.mxu0 0.0
    %3612 = vmatprep.subr.mxu0 0.0
    %3613 = vmatpush1.msra.mxu0 0.0
    %3614 = vmatprep.subr.mxu0 0.0
    %3615 = vmatpush1.msra.mxu0 0.0
    %3616 = vmatprep.subr.mxu0 0.0
    %3617 = vmatpush1.msra.mxu0 0.0
    %3618 = vmatprep.subr.mxu0 0.0
    %3619 = vmatpush1.msra.mxu0 0.0
    %3620 = vmatprep.subr.mxu0 0.0
    %3621 = vmatpush1.msra.mxu0 0.0
    %3622 = vmatprep.subr.mxu0 0.0
    %3623 = vmatpush1.msra.mxu0 0.0
    %3624 = vmatprep.subr.mxu0 0.0
    %3625 = vmatpush1.msra.mxu0 0.0
    %3626 = vmatprep.subr.mxu0 0.0
    %3627 = vmatpush1.msra.mxu0 0.0
    %3628 = vmatprep.subr.mxu0 0.0
    %3629 = vmatpush1.msra.mxu0 0.0
    %3630 = vmatprep.subr.mxu0 0.0
    %3631 = vmatpush1.msra.mxu0 0.0
    %3632 = vmatprep.subr.mxu0 0.0
    %3633 = vmatpush1.msra.mxu0 0.0
    %3634 = vmatprep.mubr.f32.mxu0 0.0
    %3635 = vmatmul.mubr.f32.gmra.mrb[0].mxu0 %v3565
    %v3636 = vpop.f32.mrb[0].mxu0
    %v3637 = vadd.f32 0.0, %v3636
    %v3638 = vpop.f32.mrb[0].mxu0
    %3639 = vmatprep.mubr.f32.mxu0 0.0
    %3640 = vmatmul.mubr.f32.gmra.mrb[0].mxu0 %v3568
    %v3641 = vpop.f32.mrb[0].mxu0
    %v3642 = vadd.f32 0.0, %v3641
    %v3643 = vpop.f32.mrb[0].mxu0
    %3644 = vdwg.mxu0
    %v3645 = vadd.f32 %v3419, %v3637
    %v3646 = vadd.f32 %v3420, %v3642
    %v3647 = vlaneseq
    %v3648 = vshrl.u32 %v3647, 7
    %v3649 = vsub.s32 5, %v3648
    %v3650 = vrot.slane %v1846, %v3649
    %v3651 = vadd.f32 %v3645, %v3650
    %v3652 = vadd.f32 %v3646, %v3650
    %v3653 = vld [vmem:[%s8] sm:$0xff]
    %v3654 = vld [vmem:[%s8 + $0x8] sm:$0xff]
    %v3655 = vld [vmem:[%s8 + $0x10] sm:$0xff]
    %v3656 = vld [vmem:[%s8 + $0x18] sm:$0xff]
    %v3657 = vld [vmem:[%s9] sm:$0x1]
    %v3659 = vlaneseq
    %v3660 = vshrl.u32 %v3659, 7
    %v3661 = vsub.s32 0, %v3660
    %v3662 = vrot.slane %v3657, %v3661
    %v3665 = vsel %vm39, %v3651, 0
    %v3668 = vsel %vm39, %v3652, 0
    %3670 = vmatprep.subr.mxu0 0.0
    %3671 = vmatpush1.msra.mxu0 %v3653
    %3672 = vmatprep.subr.mxu0 0.0
    %3673 = vmatpush1.msra.mxu0 %v3654
    %3674 = vmatprep.subr.mxu0 0.0
    %3675 = vmatpush1.msra.mxu0 %v3655
    %3676 = vmatprep.subr.mxu0 0.0
    %3677 = vmatpush1.msra.mxu0 %v3656
    %3678 = vmatprep.subr.mxu0 0.0
    %3679 = vmatpush1.msra.mxu0 0.0
    %3680 = vmatprep.subr.mxu0 0.0
    %3681 = vmatpush1.msra.mxu0 0.0
    %3682 = vmatprep.subr.mxu0 0.0
    %3683 = vmatpush1.msra.mxu0 0.0
    %3684 = vmatprep.subr.mxu0 0.0
    %3685 = vmatpush1.msra.mxu0 0.0
    %3686 = vmatprep.subr.mxu0 0.0
    %3687 = vmatpush1.msra.mxu0 0.0
    %3688 = vmatprep.subr.mxu0 0.0
    %3689 = vmatpush1.msra.mxu0 0.0
    %3690 = vmatprep.subr.mxu0 0.0
    %3691 = vmatpush1.msra.mxu0 0.0
    %3692 = vmatprep.subr.mxu0 0.0
    %3693 = vmatpush1.msra.mxu0 0.0
    %3694 = vmatprep.subr.mxu0 0.0
    %3695 = vmatpush1.msra.mxu0 0.0
    %3696 = vmatprep.subr.mxu0 0.0
    %3697 = vmatpush1.msra.mxu0 0.0
    %3698 = vmatprep.subr.mxu0 0.0
    %3699 = vmatpush1.msra.mxu0 0.0
    %3700 = vmatprep.subr.mxu0 0.0
    %3701 = vmatpush1.msra.mxu0 0.0
    %3702 = vmatprep.subr.mxu0 0.0
    %3703 = vmatpush1.msra.mxu0 0.0
    %3704 = vmatprep.subr.mxu0 0.0
    %3705 = vmatpush1.msra.mxu0 0.0
    %3706 = vmatprep.subr.mxu0 0.0
    %3707 = vmatpush1.msra.mxu0 0.0
    %3708 = vmatprep.subr.mxu0 0.0
    %3709 = vmatpush1.msra.mxu0 0.0
    %3710 = vmatprep.subr.mxu0 0.0
    %3711 = vmatpush1.msra.mxu0 0.0
    %3712 = vmatprep.subr.mxu0 0.0
    %3713 = vmatpush1.msra.mxu0 0.0
    %3714 = vmatprep.subr.mxu0 0.0
    %3715 = vmatpush1.msra.mxu0 0.0
    %3716 = vmatprep.subr.mxu0 0.0
    %3717 = vmatpush1.msra.mxu0 0.0
    %3718 = vmatprep.subr.mxu0 0.0
    %3719 = vmatpush1.msra.mxu0 0.0
    %3720 = vmatprep.subr.mxu0 0.0
    %3721 = vmatpush1.msra.mxu0 0.0
    %3722 = vmatprep.subr.mxu0 0.0
    %3723 = vmatpush1.msra.mxu0 0.0
    %3724 = vmatprep.subr.mxu0 0.0
    %3725 = vmatpush1.msra.mxu0 0.0
    %3726 = vmatprep.subr.mxu0 0.0
    %3727 = vmatpush1.msra.mxu0 0.0
    %3728 = vmatprep.subr.mxu0 0.0
    %3729 = vmatpush1.msra.mxu0 0.0
    %3730 = vmatprep.subr.mxu0 0.0
    %3731 = vmatpush1.msra.mxu0 0.0
    %3732 = vmatprep.subr.mxu0 0.0
    %3733 = vmatpush1.msra.mxu0 0.0
    %3734 = vmatprep.mubr.f32.mxu0 0.0
    %3735 = vmatmul.mubr.f32.gmra.mrb[0].mxu0 %v3665
    %v3736 = vpop.f32.mrb[0].mxu0
    %v3737 = vadd.f32 %v3662, %v3736
    %v3738 = vpop.f32.mrb[0].mxu0
    %3739 = vmatprep.mubr.f32.mxu0 0.0
    %3740 = vmatmul.mubr.f32.gmra.mrb[0].mxu0 %v3668
    %v3741 = vpop.f32.mrb[0].mxu0
    %v3742 = vadd.f32 %v3662, %v3741
    %v3743 = vpop.f32.mrb[0].mxu0
    %3744 = vdwg.mxu0
    %3745 = vst.msk [vmem:[#allocation2] sm:$0xff] %vm1503, %v3737
    %3746 = vst.msk [vmem:[#allocation2 + $0x8] sm:$0xff] %vm1503, %v3742
    // Predicated region
    $region42: #{tpu_custom_call.1} parent=1 // pred_check
      _
    $region43: #{tpu_custom_call.1} parent=1 // pred_check_branch
      %3748 = sbr.rel (0) target = $region45
    $region44: #{tpu_custom_call.1} parent=1 // pred_region
      %s3750 = ssub.s32 256, 256
      %3751 = vsyncadd [#allocation3], %s3750
      %s3752 = sshll.u32 [#allocation2], 4
      %s3753 = int_to_ptr.vmem [resolvable:$true] %s3752
      %3758 = dma.vmem_to_hbm [thread:$0]  %s3753, 256, %s10, [#allocation3], 128, 128, 8
    $region45: #{tpu_custom_call.1} parent=1 // pred_fallthru
      _
    // Predicated region
    $region46: #{tpu_custom_call.1} parent=1 // pred_check
      _
    $region47: #{tpu_custom_call.1} parent=1 // pred_check_branch
      %3760 = sbr.rel (0) target = $region49
    $region48: #{tpu_custom_call.1} parent=1 // pred_region
      %3761 = dma.done [#allocation3], 256
    $region49: #{tpu_custom_call.1} parent=1 // pred_fallthru
      _
    %3762 = vsyncpa [#allocation3], 1

</llo_original>
